<compile_context>
chip_gen: v7x
topology: tpu7x:2x2x1
jax: 0.10.0
libtpu: 0.0.40
codegen_flags: <defaults>
</compile_context>

<pallas_src>
import functools

import jax
import jax.numpy as jnp
from jax.experimental import pallas as pl
from jax.experimental.pallas import tpu as pltpu


FPAD = 128      # lane-padded feature width used for every layer inside the kernel
N_LAYERS = 4


# ----------------------------------------------------------------------------
# The single fused Pallas kernel
# ----------------------------------------------------------------------------

def _fused_forward_kernel(x_ref, emb_w_ref, emb_b_ref, e0_ref,
                          a0_ref, a1_ref, w1a_ref, w1b_ref, b1_ref,
                          w2_ref, b2_ref, mask_ref,
                          lm0_ref, pool_ref,
                          hw1_ref, hb1_ref, hw2_ref, hb2_ref, hw3_ref, hb3_ref,
                          o_ref):
    bf16 = jnp.bfloat16

    def mm(a, b):
        # bf16 MXU inputs, f32 accumulation (operators/masks are {0,1} -> exact).
        return jnp.dot(a.astype(bf16), b.astype(bf16),
                       preferred_element_type=jnp.float32)

    # embedding: Linear(11 -> E)   (features zero-padded to 128 lanes)
    emb = mm(x_ref[...], emb_w_ref[...]) + emb_b_ref[...]           # [N, 128]

    # ptensors0.from_matrix + linmaps1: lift to one row per (domain, atom)
    p = mm(e0_ref[...], emb)                                        # [N*N, 128]

    # four ConvolutionalLayers; transfer1 = precomputed masked operators.
    for i in range(N_LAYERS):
        part0 = mm(a0_ref[i], p)          # broadcast (overlap-sum) map
        part1 = mm(a1_ref[i], p)          # copy map
        # BN1 folded into W1; W1 split into halves <=> concat(part0, part1)
        h = mm(part0, w1a_ref[i]) + mm(part1, w1b_ref[i]) + b1_ref[i]
        h = jnp.maximum(h, 0.0)
        # BN2 folded into W2
        h = jnp.maximum(mm(h, w2_ref[i]) + b2_ref[i], 0.0)
        # keep rows outside each reference domain exactly zero (ptens semantics)
        p = h * mask_ref[i]

    # linmaps0 (masked sum over atoms per domain), then sum pooling over graphs
    x0 = mm(lm0_ref[...], p)                                        # [N, 128]
    pooled = mm(pool_ref[...], x0)                                  # [Gpad, 128]

    # head MLP (BatchNorm folded into hw1 / hb1)
    h = jnp.maximum(mm(pooled, hw1_ref[...]) + hb1_ref[...], 0.0)
    h = jnp.maximum(mm(h, hw2_ref[...]) + hb2_ref[...], 0.0)
    o_ref[...] = mm(h, hw3_ref[...]) + hb3_ref[...]


# ----------------------------------------------------------------------------
# ptens-style graph glue (cheap, graph-only; plain JAX)
# ----------------------------------------------------------------------------
# TODO(synk): real ptens.transfer1 / linmaps operate on ragged per-domain atom
# lists; here they are modelled with dense {0,1} operators built from masks.

def nhood_mask(adj, k):
    """k-hop neighbourhood membership mask (including self), {0,1} float."""
    n = adj.shape[0]
    m = jnp.eye(n, dtype=jnp.float32) + adj
    acc = m
    for _ in range(k - 1):
        acc = acc @ m
    return (acc > 0).astype(jnp.float32)


def transfer1_operators(m_old, m_new):
    """Dense [N^2, N^2] operators for the transfer1 broadcast / copy maps.

    Row/col flattening is (domain, atom) row-major.  Both operators are {0,1}
    so they are exact in bf16.
    """
    n = m_old.shape[0]
    inter = ((m_old @ m_new.T) > 0).astype(jnp.float32)        # [old, new]
    eye = jnp.eye(n, dtype=jnp.float32)
    # copy map:      part1[(n,a)] = m_new[n,a] * sum_o inter[o,n] m_old[o,a] p[o,a]
    a1 = jnp.einsum('na,on,oc,ac->naoc', m_new, inter, m_old, eye)
    # broadcast map: part0[(n,a)] = m_new[n,a] * sum_{o,c} inter[o,n] m_new[n,c] m_old[o,c] p[o,c]
    a0 = jnp.einsum('na,on,nc,oc->naoc', m_new, inter, m_new, m_old)
    return a0.reshape(n * n, n * n), a1.reshape(n * n, n * n)


def build_graph_operators(adj, batch, g_pad):
    n = adj.shape[0]
    eye = jnp.eye(n, dtype=jnp.float32)
    masks = [eye] + [nhood_mask(adj, k) for k in range(1, N_LAYERS + 1)]
    pairs = [transfer1_operators(masks[i], masks[i + 1]) for i in range(N_LAYERS)]
    a0s = [p[0] for p in pairs]
    a1s = [p[1] for p in pairs]
    bf16 = jnp.bfloat16
    return {
        # linmaps1 lift: rows (d, a) pick emb[d] when a == d
        'e0': jnp.einsum('da,dc->dac', eye, eye).reshape(n * n, n).astype(bf16),
        'a0': jnp.stack(a0s).astype(bf16),                       # [4, N^2, N^2]
        'a1': jnp.stack(a1s).astype(bf16),                       # [4, N^2, N^2]
        'mask': jnp.stack([masks[i + 1].reshape(n * n, 1)
                           for i in range(N_LAYERS)]),           # [4, N^2, 1] f32
        # linmaps0: masked sum over atoms per domain
        'lm0': jnp.einsum('nm,ma->nma', eye,
                          masks[N_LAYERS]).reshape(n, n * n).astype(bf16),
        # sum pooling over graphs (one-hot rows, padded to g_pad)
        'pool': (jnp.arange(g_pad)[:, None] == batch[None, :]).astype(bf16),
    }


# ----------------------------------------------------------------------------
# Parameter initialization (deterministic, PyTorch-like shapes)
# ----------------------------------------------------------------------------

def _linear_params(key, fan_in, fan_out):
    kw, kb = jax.random.split(key)
    lim = 1.0 / jnp.sqrt(fan_in)
    w = jax.random.uniform(kw, (fan_in, fan_out), jnp.float32, -lim, lim)
    b = jax.random.uniform(kb, (1, fan_out), jnp.float32, -lim, lim)
    return w, b


def _bn_params(key, c, eps=1e-5):
    k1, k2, k3 = jax.random.split(key, 3)
    gamma = 1.0 + 0.1 * jax.random.normal(k1, (1, c), jnp.float32)
    beta = 0.1 * jax.random.normal(k2, (1, c), jnp.float32)
    running_mean = 0.1 * jax.random.normal(k3, (1, c), jnp.float32)
    running_var = jnp.ones((1, c), jnp.float32)
    scale = gamma / jnp.sqrt(running_var + eps)
    shift = beta - running_mean * scale
    return scale, shift


def init_params(key, embedding_dim, convolution_dim, dense_dim):
    keys = jax.random.split(key, 32)
    p = {}
    p['emb_w'], p['emb_b'] = _linear_params(keys[0], 11, embedding_dim)

    conv_dims = [(embedding_dim, convolution_dim),
                 (convolution_dim, convolution_dim),
                 (convolution_dim, convolution_dim),
                 (convolution_dim, dense_dim)]
    for i, (cin, cout) in enumerate(conv_dims):
        base = 1 + 5 * i
        p[f'c{i}_bn1_s'], p[f'c{i}_bn1_t'] = _bn_params(keys[base], 2 * cin)
        p[f'c{i}_w1'], p[f'c{i}_b1'] = _linear_params(keys[base + 1], 2 * cin, cin)
        p[f'c{i}_bn2_s'], p[f'c{i}_bn2_t'] = _bn_params(keys[base + 2], cin)
        p[f'c{i}_w2'], p[f'c{i}_b2'] = _linear_params(keys[base + 3], cin, cout)

    p['h_bn_s'], p['h_bn_t'] = _bn_params(keys[22], dense_dim)
    p['h_w1'], p['h_b1'] = _linear_params(keys[23], dense_dim, dense_dim)
    p['h_w2'], p['h_b2'] = _linear_params(keys[24], dense_dim, dense_dim)
    p['h_w3'], p['h_b3'] = _linear_params(keys[25], dense_dim, dense_dim)
    return p


# ----------------------------------------------------------------------------
# Parameter prep: fold BatchNorms into the Linears, pad to 128 lanes, stack
# ----------------------------------------------------------------------------

def _pad2(a, rows, cols):
    return jnp.zeros((rows, cols), a.dtype).at[:a.shape[0], :a.shape[1]].set(a)


def fold_and_pad_params(p, dims):
    embedding_dim, convolution_dim, dense_dim = dims
    conv_dims = [(embedding_dim, convolution_dim),
                 (convolution_dim, convolution_dim),
                 (convolution_dim, convolution_dim),
                 (convolution_dim, dense_dim)]
    bf16 = jnp.bfloat16
    w1a, w1b, b1, w2, b2 = [], [], [], [], []
    for i, (cin, cout) in enumerate(conv_dims):
        s1, t1 = p[f'c{i}_bn1_s'], p[f'c{i}_bn1_t']          # [1, 2cin]
        w1, bb1 = p[f'c{i}_w1'], p[f'c{i}_b1']               # [2cin, cin]
        w1f = s1.T * w1                                       # diag(s1) @ W1
        b1f = bb1 + t1 @ w1
        s2, t2 = p[f'c{i}_bn2_s'], p[f'c{i}_bn2_t']          # [1, cin]
        w2_, bb2 = p[f'c{i}_w2'], p[f'c{i}_b2']              # [cin, cout]
        w2f = s2.T * w2_
        b2f = bb2 + t2 @ w2_
        w1a.append(_pad2(w1f[:cin], FPAD, FPAD))              # acts on part0
        w1b.append(_pad2(w1f[cin:], FPAD, FPAD))              # acts on part1
        b1.append(_pad2(b1f, 1, FPAD))
        w2.append(_pad2(w2f, FPAD, FPAD))
        b2.append(_pad2(b2f, 1, FPAD))

    hw1f = p['h_bn_s'].T * p['h_w1']
    hb1f = p['h_b1'] + p['h_bn_t'] @ p['h_w1']

    return {
        'emb_w': _pad2(p['emb_w'], FPAD, FPAD).astype(bf16),
        'emb_b': _pad2(p['emb_b'], 1, FPAD),
        'w1a': jnp.stack(w1a).astype(bf16),
        'w1b': jnp.stack(w1b).astype(bf16),
        'b1': jnp.stack(b1),
        'w2': jnp.stack(w2).astype(bf16),
        'b2': jnp.stack(b2),
        'hw1': _pad2(hw1f, FPAD, FPAD).astype(bf16),
        'hb1': _pad2(hb1f, 1, FPAD),
        'hw2': _pad2(p['h_w2'], FPAD, FPAD).astype(bf16),
        'hb2': _pad2(p['h_b2'], 1, FPAD),
        'hw3': _pad2(p['h_w3'], FPAD, FPAD).astype(bf16),
        'hb3': _pad2(p['h_b3'], 1, FPAD),
    }


# ----------------------------------------------------------------------------
# Forward pass: one fused pallas_call
# ----------------------------------------------------------------------------

@functools.partial(jax.jit, static_argnames=('num_graphs', 'dims'))
def model_forward(params, x_nodes, adj, batch, num_graphs, dims):
    _, _, dense_dim = dims
    n = x_nodes.shape[0]
    g_pad = max(8, -(-num_graphs // 8) * 8)

    fused = fold_and_pad_params(params, dims)
    ops = build_graph_operators(adj, batch, g_pad)
    x_pad = _pad2(x_nodes, n, FPAD)

    inputs = (x_pad, fused['emb_w'], fused['emb_b'], ops['e0'],
              ops['a0'], ops['a1'],
              fused['w1a'], fused['w1b'], fused['b1'],
              fused['w2'], fused['b2'], ops['mask'],
              ops['lm0'], ops['pool'],
              fused['hw1'], fused['hb1'], fused['hw2'], fused['hb2'],
              fused['hw3'], fused['hb3'])

    # Everything (weights ~1 MiB, activations a few KiB) fits in VMEM as a
    # single block, so a single grid point with full-array VMEM blocks is the
    # fastest configuration at these sizes.
    out = pl.pallas_call(
        _fused_forward_kernel,
        out_shape=jax.ShapeDtypeStruct((g_pad, FPAD), jnp.float32),
        in_specs=[pl.BlockSpec(memory_space=pltpu.MemorySpace.VMEM)
                  for _ in inputs],
        out_specs=pl.BlockSpec(memory_space=pltpu.MemorySpace.VMEM),
    )(*inputs)

    return out[:num_graphs, :dense_dim]


# ----------------------------------------------------------------------------
# Main
# ----------------------------------------------------------------------------

if __name__ == "__main__":
    embedding_dim, convolution_dim, dense_dim = 16, 16, 32
    n_nodes, num_graphs = 8, 2

    key = jax.random.PRNGKey(0)
    k_params, k_x = jax.random.split(key)

    params = init_params(k_params, embedding_dim, convolution_dim, dense_dim)

    # Two disjoint path-graphs of 4 nodes each.
    edges = [(0, 1), (1, 2), (2, 3), (4, 5), (5, 6), (6, 7)]
    adj = jnp.zeros((n_nodes, n_nodes), jnp.float32)
    for i, j in edges:
        adj = adj.at[i, j].set(1.0).at[j, i].set(1.0)
    batch = jnp.array([0, 0, 0, 0, 1, 1, 1, 1], jnp.int32)

    x_nodes = jax.random.normal(k_x, (n_nodes, 11), jnp.float32)

    out = model_forward(params, x_nodes, adj, batch, num_graphs,
                        (embedding_dim, convolution_dim, dense_dim))
    out = jax.block_until_ready(out)
    assert out.shape == (num_graphs, dense_dim)
    assert bool(jnp.all(jnp.isfinite(out)))
    print("KERNEL_OK")
</pallas_src>

<mosaic_0001>
module attributes {stable_mosaic.version = 11 : i64} {
  func.func @_fused_forward_kernel(%arg0: memref<8x128xf32, #tpu.memory_space<vmem>>, %arg1: memref<128x128xbf16, #tpu.memory_space<vmem>>, %arg2: memref<1x128xf32, #tpu.memory_space<vmem>>, %arg3: memref<64x8xbf16, #tpu.memory_space<vmem>>, %arg4: memref<4x64x64xbf16, #tpu.memory_space<vmem>>, %arg5: memref<4x64x64xbf16, #tpu.memory_space<vmem>>, %arg6: memref<4x128x128xbf16, #tpu.memory_space<vmem>>, %arg7: memref<4x128x128xbf16, #tpu.memory_space<vmem>>, %arg8: memref<4x1x128xf32, #tpu.memory_space<vmem>>, %arg9: memref<4x128x128xbf16, #tpu.memory_space<vmem>>, %arg10: memref<4x1x128xf32, #tpu.memory_space<vmem>>, %arg11: memref<4x64x1xf32, #tpu.memory_space<vmem>>, %arg12: memref<8x64xbf16, #tpu.memory_space<vmem>>, %arg13: memref<8x8xbf16, #tpu.memory_space<vmem>>, %arg14: memref<128x128xbf16, #tpu.memory_space<vmem>>, %arg15: memref<1x128xf32, #tpu.memory_space<vmem>>, %arg16: memref<128x128xbf16, #tpu.memory_space<vmem>>, %arg17: memref<1x128xf32, #tpu.memory_space<vmem>>, %arg18: memref<128x128xbf16, #tpu.memory_space<vmem>>, %arg19: memref<1x128xf32, #tpu.memory_space<vmem>>, %arg20: memref<8x128xf32, #tpu.memory_space<vmem>>) attributes {dimension_semantics = [], scalar_prefetch = 0 : i64, scratch_operands = 0 : i64, tpu.core_type = #tpu.core_type<tc>} {
    %c0 = arith.constant 0 : index
    %c0_0 = arith.constant 0 : index
    %0 = vector.load %arg0[%c0, %c0_0] : memref<8x128xf32, #tpu.memory_space<vmem>>, vector<8x128xf32>
    %c0_1 = arith.constant 0 : index
    %c0_2 = arith.constant 0 : index
    %1 = vector.load %arg1[%c0_1, %c0_2] : memref<128x128xbf16, #tpu.memory_space<vmem>>, vector<128x128xbf16>
    %2 = arith.truncf %0 : vector<8x128xf32> to vector<8x128xbf16>
    %cst = arith.constant dense<0.000000e+00> : vector<8x128xf32>
    %3 = tpu.matmul %2, %1, %cst {dimension_numbers = #tpu.dot_dimension_numbers<[1], [0], [0], [1], [0, 0, 1, 1], [], []>} : vector<8x128xbf16>, vector<128x128xbf16>, vector<8x128xf32> -> vector<8x128xf32>
    %c0_3 = arith.constant 0 : index
    %c0_4 = arith.constant 0 : index
    %4 = vector.load %arg2[%c0_3, %c0_4] : memref<1x128xf32, #tpu.memory_space<vmem>>, vector<1x128xf32>
    %5 = vector.broadcast %4 : vector<1x128xf32> to vector<8x128xf32>
    %6 = arith.addf %3, %5 : vector<8x128xf32>
    %c0_5 = arith.constant 0 : index
    %c0_6 = arith.constant 0 : index
    %7 = vector.load %arg3[%c0_5, %c0_6] : memref<64x8xbf16, #tpu.memory_space<vmem>>, vector<64x8xbf16>
    %8 = arith.truncf %6 : vector<8x128xf32> to vector<8x128xbf16>
    %cst_7 = arith.constant dense<0.000000e+00> : vector<64x128xf32>
    %9 = tpu.matmul %7, %8, %cst_7 {dimension_numbers = #tpu.dot_dimension_numbers<[1], [0], [0], [1], [0, 0, 1, 1], [], []>} : vector<64x8xbf16>, vector<8x128xbf16>, vector<64x128xf32> -> vector<64x128xf32>
    %c0_8 = arith.constant 0 : index
    %c0_9 = arith.constant 0 : index
    %c0_10 = arith.constant 0 : index
    %10 = vector.load %arg4[%c0_8, %c0_9, %c0_10] : memref<4x64x64xbf16, #tpu.memory_space<vmem>>, vector<1x64x64xbf16>
    %11 = vector.shape_cast %10 : vector<1x64x64xbf16> to vector<64x64xbf16>
    %12 = arith.truncf %9 : vector<64x128xf32> to vector<64x128xbf16>
    %cst_11 = arith.constant dense<0.000000e+00> : vector<64x128xf32>
    %13 = tpu.matmul %11, %12, %cst_11 {dimension_numbers = #tpu.dot_dimension_numbers<[1], [0], [0], [1], [0, 0, 1, 1], [], []>} : vector<64x64xbf16>, vector<64x128xbf16>, vector<64x128xf32> -> vector<64x128xf32>
    %c0_12 = arith.constant 0 : index
    %c0_13 = arith.constant 0 : index
    %c0_14 = arith.constant 0 : index
    %14 = vector.load %arg5[%c0_12, %c0_13, %c0_14] : memref<4x64x64xbf16, #tpu.memory_space<vmem>>, vector<1x64x64xbf16>
    %15 = vector.shape_cast %14 : vector<1x64x64xbf16> to vector<64x64xbf16>
    %16 = arith.truncf %9 : vector<64x128xf32> to vector<64x128xbf16>
    %cst_15 = arith.constant dense<0.000000e+00> : vector<64x128xf32>
    %17 = tpu.matmul %15, %16, %cst_15 {dimension_numbers = #tpu.dot_dimension_numbers<[1], [0], [0], [1], [0, 0, 1, 1], [], []>} : vector<64x64xbf16>, vector<64x128xbf16>, vector<64x128xf32> -> vector<64x128xf32>
    %c0_16 = arith.constant 0 : index
    %c0_17 = arith.constant 0 : index
    %c0_18 = arith.constant 0 : index
    %18 = vector.load %arg6[%c0_16, %c0_17, %c0_18] : memref<4x128x128xbf16, #tpu.memory_space<vmem>>, vector<1x128x128xbf16>
    %19 = vector.shape_cast %18 : vector<1x128x128xbf16> to vector<128x128xbf16>
    %20 = arith.truncf %13 : vector<64x128xf32> to vector<64x128xbf16>
    %cst_19 = arith.constant dense<0.000000e+00> : vector<64x128xf32>
    %21 = tpu.matmul %20, %19, %cst_19 {dimension_numbers = #tpu.dot_dimension_numbers<[1], [0], [0], [1], [0, 0, 1, 1], [], []>} : vector<64x128xbf16>, vector<128x128xbf16>, vector<64x128xf32> -> vector<64x128xf32>
    %c0_20 = arith.constant 0 : index
    %c0_21 = arith.constant 0 : index
    %c0_22 = arith.constant 0 : index
    %22 = vector.load %arg7[%c0_20, %c0_21, %c0_22] : memref<4x128x128xbf16, #tpu.memory_space<vmem>>, vector<1x128x128xbf16>
    %23 = vector.shape_cast %22 : vector<1x128x128xbf16> to vector<128x128xbf16>
    %24 = arith.truncf %17 : vector<64x128xf32> to vector<64x128xbf16>
    %cst_23 = arith.constant dense<0.000000e+00> : vector<64x128xf32>
    %25 = tpu.matmul %24, %23, %cst_23 {dimension_numbers = #tpu.dot_dimension_numbers<[1], [0], [0], [1], [0, 0, 1, 1], [], []>} : vector<64x128xbf16>, vector<128x128xbf16>, vector<64x128xf32> -> vector<64x128xf32>
    %26 = arith.addf %21, %25 : vector<64x128xf32>
    %c0_24 = arith.constant 0 : index
    %c0_25 = arith.constant 0 : index
    %c0_26 = arith.constant 0 : index
    %27 = vector.load %arg8[%c0_24, %c0_25, %c0_26] : memref<4x1x128xf32, #tpu.memory_space<vmem>>, vector<1x1x128xf32>
    %28 = vector.shape_cast %27 : vector<1x1x128xf32> to vector<1x128xf32>
    %29 = vector.broadcast %28 : vector<1x128xf32> to vector<64x128xf32>
    %30 = arith.addf %26, %29 : vector<64x128xf32>
    %cst_27 = arith.constant 0.000000e+00 : f32
    %31 = vector.broadcast %cst_27 : f32 to vector<64x128xf32>
    %32 = arith.maximumf %30, %31 : vector<64x128xf32>
    %c0_28 = arith.constant 0 : index
    %c0_29 = arith.constant 0 : index
    %c0_30 = arith.constant 0 : index
    %33 = vector.load %arg9[%c0_28, %c0_29, %c0_30] : memref<4x128x128xbf16, #tpu.memory_space<vmem>>, vector<1x128x128xbf16>
    %34 = vector.shape_cast %33 : vector<1x128x128xbf16> to vector<128x128xbf16>
    %35 = arith.truncf %32 : vector<64x128xf32> to vector<64x128xbf16>
    %cst_31 = arith.constant dense<0.000000e+00> : vector<64x128xf32>
    %36 = tpu.matmul %35, %34, %cst_31 {dimension_numbers = #tpu.dot_dimension_numbers<[1], [0], [0], [1], [0, 0, 1, 1], [], []>} : vector<64x128xbf16>, vector<128x128xbf16>, vector<64x128xf32> -> vector<64x128xf32>
    %c0_32 = arith.constant 0 : index
    %c0_33 = arith.constant 0 : index
    %c0_34 = arith.constant 0 : index
    %37 = vector.load %arg10[%c0_32, %c0_33, %c0_34] : memref<4x1x128xf32, #tpu.memory_space<vmem>>, vector<1x1x128xf32>
    %38 = vector.shape_cast %37 : vector<1x1x128xf32> to vector<1x128xf32>
    %39 = vector.broadcast %38 : vector<1x128xf32> to vector<64x128xf32>
    %40 = arith.addf %36, %39 : vector<64x128xf32>
    %cst_35 = arith.constant 0.000000e+00 : f32
    %41 = vector.broadcast %cst_35 : f32 to vector<64x128xf32>
    %42 = arith.maximumf %40, %41 : vector<64x128xf32>
    %c0_36 = arith.constant 0 : index
    %c0_37 = arith.constant 0 : index
    %c0_38 = arith.constant 0 : index
    %43 = vector.load %arg11[%c0_36, %c0_37, %c0_38] : memref<4x64x1xf32, #tpu.memory_space<vmem>>, vector<1x64x1xf32>
    %44 = vector.shape_cast %43 : vector<1x64x1xf32> to vector<64x1xf32>
    %45 = vector.broadcast %44 : vector<64x1xf32> to vector<64x128xf32>
    %46 = arith.mulf %42, %45 : vector<64x128xf32>
    %c1 = arith.constant 1 : index
    %c0_39 = arith.constant 0 : index
    %c0_40 = arith.constant 0 : index
    %47 = vector.load %arg4[%c1, %c0_39, %c0_40] : memref<4x64x64xbf16, #tpu.memory_space<vmem>>, vector<1x64x64xbf16>
    %48 = vector.shape_cast %47 : vector<1x64x64xbf16> to vector<64x64xbf16>
    %49 = arith.truncf %46 : vector<64x128xf32> to vector<64x128xbf16>
    %cst_41 = arith.constant dense<0.000000e+00> : vector<64x128xf32>
    %50 = tpu.matmul %48, %49, %cst_41 {dimension_numbers = #tpu.dot_dimension_numbers<[1], [0], [0], [1], [0, 0, 1, 1], [], []>} : vector<64x64xbf16>, vector<64x128xbf16>, vector<64x128xf32> -> vector<64x128xf32>
    %c1_42 = arith.constant 1 : index
    %c0_43 = arith.constant 0 : index
    %c0_44 = arith.constant 0 : index
    %51 = vector.load %arg5[%c1_42, %c0_43, %c0_44] : memref<4x64x64xbf16, #tpu.memory_space<vmem>>, vector<1x64x64xbf16>
    %52 = vector.shape_cast %51 : vector<1x64x64xbf16> to vector<64x64xbf16>
    %53 = arith.truncf %46 : vector<64x128xf32> to vector<64x128xbf16>
    %cst_45 = arith.constant dense<0.000000e+00> : vector<64x128xf32>
    %54 = tpu.matmul %52, %53, %cst_45 {dimension_numbers = #tpu.dot_dimension_numbers<[1], [0], [0], [1], [0, 0, 1, 1], [], []>} : vector<64x64xbf16>, vector<64x128xbf16>, vector<64x128xf32> -> vector<64x128xf32>
    %c1_46 = arith.constant 1 : index
    %c0_47 = arith.constant 0 : index
    %c0_48 = arith.constant 0 : index
    %55 = vector.load %arg6[%c1_46, %c0_47, %c0_48] : memref<4x128x128xbf16, #tpu.memory_space<vmem>>, vector<1x128x128xbf16>
    %56 = vector.shape_cast %55 : vector<1x128x128xbf16> to vector<128x128xbf16>
    %57 = arith.truncf %50 : vector<64x128xf32> to vector<64x128xbf16>
    %cst_49 = arith.constant dense<0.000000e+00> : vector<64x128xf32>
    %58 = tpu.matmul %57, %56, %cst_49 {dimension_numbers = #tpu.dot_dimension_numbers<[1], [0], [0], [1], [0, 0, 1, 1], [], []>} : vector<64x128xbf16>, vector<128x128xbf16>, vector<64x128xf32> -> vector<64x128xf32>
    %c1_50 = arith.constant 1 : index
    %c0_51 = arith.constant 0 : index
    %c0_52 = arith.constant 0 : index
    %59 = vector.load %arg7[%c1_50, %c0_51, %c0_52] : memref<4x128x128xbf16, #tpu.memory_space<vmem>>, vector<1x128x128xbf16>
    %60 = vector.shape_cast %59 : vector<1x128x128xbf16> to vector<128x128xbf16>
    %61 = arith.truncf %54 : vector<64x128xf32> to vector<64x128xbf16>
    %cst_53 = arith.constant dense<0.000000e+00> : vector<64x128xf32>
    %62 = tpu.matmul %61, %60, %cst_53 {dimension_numbers = #tpu.dot_dimension_numbers<[1], [0], [0], [1], [0, 0, 1, 1], [], []>} : vector<64x128xbf16>, vector<128x128xbf16>, vector<64x128xf32> -> vector<64x128xf32>
    %63 = arith.addf %58, %62 : vector<64x128xf32>
    %c1_54 = arith.constant 1 : index
    %c0_55 = arith.constant 0 : index
    %c0_56 = arith.constant 0 : index
    %64 = vector.load %arg8[%c1_54, %c0_55, %c0_56] : memref<4x1x128xf32, #tpu.memory_space<vmem>>, vector<1x1x128xf32>
    %65 = vector.shape_cast %64 : vector<1x1x128xf32> to vector<1x128xf32>
    %66 = vector.broadcast %65 : vector<1x128xf32> to vector<64x128xf32>
    %67 = arith.addf %63, %66 : vector<64x128xf32>
    %cst_57 = arith.constant 0.000000e+00 : f32
    %68 = vector.broadcast %cst_57 : f32 to vector<64x128xf32>
    %69 = arith.maximumf %67, %68 : vector<64x128xf32>
    %c1_58 = arith.constant 1 : index
    %c0_59 = arith.constant 0 : index
    %c0_60 = arith.constant 0 : index
    %70 = vector.load %arg9[%c1_58, %c0_59, %c0_60] : memref<4x128x128xbf16, #tpu.memory_space<vmem>>, vector<1x128x128xbf16>
    %71 = vector.shape_cast %70 : vector<1x128x128xbf16> to vector<128x128xbf16>
    %72 = arith.truncf %69 : vector<64x128xf32> to vector<64x128xbf16>
    %cst_61 = arith.constant dense<0.000000e+00> : vector<64x128xf32>
    %73 = tpu.matmul %72, %71, %cst_61 {dimension_numbers = #tpu.dot_dimension_numbers<[1], [0], [0], [1], [0, 0, 1, 1], [], []>} : vector<64x128xbf16>, vector<128x128xbf16>, vector<64x128xf32> -> vector<64x128xf32>
    %c1_62 = arith.constant 1 : index
    %c0_63 = arith.constant 0 : index
    %c0_64 = arith.constant 0 : index
    %74 = vector.load %arg10[%c1_62, %c0_63, %c0_64] : memref<4x1x128xf32, #tpu.memory_space<vmem>>, vector<1x1x128xf32>
    %75 = vector.shape_cast %74 : vector<1x1x128xf32> to vector<1x128xf32>
    %76 = vector.broadcast %75 : vector<1x128xf32> to vector<64x128xf32>
    %77 = arith.addf %73, %76 : vector<64x128xf32>
    %cst_65 = arith.constant 0.000000e+00 : f32
    %78 = vector.broadcast %cst_65 : f32 to vector<64x128xf32>
    %79 = arith.maximumf %77, %78 : vector<64x128xf32>
    %c1_66 = arith.constant 1 : index
    %c0_67 = arith.constant 0 : index
    %c0_68 = arith.constant 0 : index
    %80 = vector.load %arg11[%c1_66, %c0_67, %c0_68] : memref<4x64x1xf32, #tpu.memory_space<vmem>>, vector<1x64x1xf32>
    %81 = vector.shape_cast %80 : vector<1x64x1xf32> to vector<64x1xf32>
    %82 = vector.broadcast %81 : vector<64x1xf32> to vector<64x128xf32>
    %83 = arith.mulf %79, %82 : vector<64x128xf32>
    %c2 = arith.constant 2 : index
    %c0_69 = arith.constant 0 : index
    %c0_70 = arith.constant 0 : index
    %84 = vector.load %arg4[%c2, %c0_69, %c0_70] : memref<4x64x64xbf16, #tpu.memory_space<vmem>>, vector<1x64x64xbf16>
    %85 = vector.shape_cast %84 : vector<1x64x64xbf16> to vector<64x64xbf16>
    %86 = arith.truncf %83 : vector<64x128xf32> to vector<64x128xbf16>
    %cst_71 = arith.constant dense<0.000000e+00> : vector<64x128xf32>
    %87 = tpu.matmul %85, %86, %cst_71 {dimension_numbers = #tpu.dot_dimension_numbers<[1], [0], [0], [1], [0, 0, 1, 1], [], []>} : vector<64x64xbf16>, vector<64x128xbf16>, vector<64x128xf32> -> vector<64x128xf32>
    %c2_72 = arith.constant 2 : index
    %c0_73 = arith.constant 0 : index
    %c0_74 = arith.constant 0 : index
    %88 = vector.load %arg5[%c2_72, %c0_73, %c0_74] : memref<4x64x64xbf16, #tpu.memory_space<vmem>>, vector<1x64x64xbf16>
    %89 = vector.shape_cast %88 : vector<1x64x64xbf16> to vector<64x64xbf16>
    %90 = arith.truncf %83 : vector<64x128xf32> to vector<64x128xbf16>
    %cst_75 = arith.constant dense<0.000000e+00> : vector<64x128xf32>
    %91 = tpu.matmul %89, %90, %cst_75 {dimension_numbers = #tpu.dot_dimension_numbers<[1], [0], [0], [1], [0, 0, 1, 1], [], []>} : vector<64x64xbf16>, vector<64x128xbf16>, vector<64x128xf32> -> vector<64x128xf32>
    %c2_76 = arith.constant 2 : index
    %c0_77 = arith.constant 0 : index
    %c0_78 = arith.constant 0 : index
    %92 = vector.load %arg6[%c2_76, %c0_77, %c0_78] : memref<4x128x128xbf16, #tpu.memory_space<vmem>>, vector<1x128x128xbf16>
    %93 = vector.shape_cast %92 : vector<1x128x128xbf16> to vector<128x128xbf16>
    %94 = arith.truncf %87 : vector<64x128xf32> to vector<64x128xbf16>
    %cst_79 = arith.constant dense<0.000000e+00> : vector<64x128xf32>
    %95 = tpu.matmul %94, %93, %cst_79 {dimension_numbers = #tpu.dot_dimension_numbers<[1], [0], [0], [1], [0, 0, 1, 1], [], []>} : vector<64x128xbf16>, vector<128x128xbf16>, vector<64x128xf32> -> vector<64x128xf32>
    %c2_80 = arith.constant 2 : index
    %c0_81 = arith.constant 0 : index
    %c0_82 = arith.constant 0 : index
    %96 = vector.load %arg7[%c2_80, %c0_81, %c0_82] : memref<4x128x128xbf16, #tpu.memory_space<vmem>>, vector<1x128x128xbf16>
    %97 = vector.shape_cast %96 : vector<1x128x128xbf16> to vector<128x128xbf16>
    %98 = arith.truncf %91 : vector<64x128xf32> to vector<64x128xbf16>
    %cst_83 = arith.constant dense<0.000000e+00> : vector<64x128xf32>
    %99 = tpu.matmul %98, %97, %cst_83 {dimension_numbers = #tpu.dot_dimension_numbers<[1], [0], [0], [1], [0, 0, 1, 1], [], []>} : vector<64x128xbf16>, vector<128x128xbf16>, vector<64x128xf32> -> vector<64x128xf32>
    %100 = arith.addf %95, %99 : vector<64x128xf32>
    %c2_84 = arith.constant 2 : index
    %c0_85 = arith.constant 0 : index
    %c0_86 = arith.constant 0 : index
    %101 = vector.load %arg8[%c2_84, %c0_85, %c0_86] : memref<4x1x128xf32, #tpu.memory_space<vmem>>, vector<1x1x128xf32>
    %102 = vector.shape_cast %101 : vector<1x1x128xf32> to vector<1x128xf32>
    %103 = vector.broadcast %102 : vector<1x128xf32> to vector<64x128xf32>
    %104 = arith.addf %100, %103 : vector<64x128xf32>
    %cst_87 = arith.constant 0.000000e+00 : f32
    %105 = vector.broadcast %cst_87 : f32 to vector<64x128xf32>
    %106 = arith.maximumf %104, %105 : vector<64x128xf32>
    %c2_88 = arith.constant 2 : index
    %c0_89 = arith.constant 0 : index
    %c0_90 = arith.constant 0 : index
    %107 = vector.load %arg9[%c2_88, %c0_89, %c0_90] : memref<4x128x128xbf16, #tpu.memory_space<vmem>>, vector<1x128x128xbf16>
    %108 = vector.shape_cast %107 : vector<1x128x128xbf16> to vector<128x128xbf16>
    %109 = arith.truncf %106 : vector<64x128xf32> to vector<64x128xbf16>
    %cst_91 = arith.constant dense<0.000000e+00> : vector<64x128xf32>
    %110 = tpu.matmul %109, %108, %cst_91 {dimension_numbers = #tpu.dot_dimension_numbers<[1], [0], [0], [1], [0, 0, 1, 1], [], []>} : vector<64x128xbf16>, vector<128x128xbf16>, vector<64x128xf32> -> vector<64x128xf32>
    %c2_92 = arith.constant 2 : index
    %c0_93 = arith.constant 0 : index
    %c0_94 = arith.constant 0 : index
    %111 = vector.load %arg10[%c2_92, %c0_93, %c0_94] : memref<4x1x128xf32, #tpu.memory_space<vmem>>, vector<1x1x128xf32>
    %112 = vector.shape_cast %111 : vector<1x1x128xf32> to vector<1x128xf32>
    %113 = vector.broadcast %112 : vector<1x128xf32> to vector<64x128xf32>
    %114 = arith.addf %110, %113 : vector<64x128xf32>
    %cst_95 = arith.constant 0.000000e+00 : f32
    %115 = vector.broadcast %cst_95 : f32 to vector<64x128xf32>
    %116 = arith.maximumf %114, %115 : vector<64x128xf32>
    %c2_96 = arith.constant 2 : index
    %c0_97 = arith.constant 0 : index
    %c0_98 = arith.constant 0 : index
    %117 = vector.load %arg11[%c2_96, %c0_97, %c0_98] : memref<4x64x1xf32, #tpu.memory_space<vmem>>, vector<1x64x1xf32>
    %118 = vector.shape_cast %117 : vector<1x64x1xf32> to vector<64x1xf32>
    %119 = vector.broadcast %118 : vector<64x1xf32> to vector<64x128xf32>
    %120 = arith.mulf %116, %119 : vector<64x128xf32>
    %c3 = arith.constant 3 : index
    %c0_99 = arith.constant 0 : index
    %c0_100 = arith.constant 0 : index
    %121 = vector.load %arg4[%c3, %c0_99, %c0_100] : memref<4x64x64xbf16, #tpu.memory_space<vmem>>, vector<1x64x64xbf16>
    %122 = vector.shape_cast %121 : vector<1x64x64xbf16> to vector<64x64xbf16>
    %123 = arith.truncf %120 : vector<64x128xf32> to vector<64x128xbf16>
    %cst_101 = arith.constant dense<0.000000e+00> : vector<64x128xf32>
    %124 = tpu.matmul %122, %123, %cst_101 {dimension_numbers = #tpu.dot_dimension_numbers<[1], [0], [0], [1], [0, 0, 1, 1], [], []>} : vector<64x64xbf16>, vector<64x128xbf16>, vector<64x128xf32> -> vector<64x128xf32>
    %c3_102 = arith.constant 3 : index
    %c0_103 = arith.constant 0 : index
    %c0_104 = arith.constant 0 : index
    %125 = vector.load %arg5[%c3_102, %c0_103, %c0_104] : memref<4x64x64xbf16, #tpu.memory_space<vmem>>, vector<1x64x64xbf16>
    %126 = vector.shape_cast %125 : vector<1x64x64xbf16> to vector<64x64xbf16>
    %127 = arith.truncf %120 : vector<64x128xf32> to vector<64x128xbf16>
    %cst_105 = arith.constant dense<0.000000e+00> : vector<64x128xf32>
    %128 = tpu.matmul %126, %127, %cst_105 {dimension_numbers = #tpu.dot_dimension_numbers<[1], [0], [0], [1], [0, 0, 1, 1], [], []>} : vector<64x64xbf16>, vector<64x128xbf16>, vector<64x128xf32> -> vector<64x128xf32>
    %c3_106 = arith.constant 3 : index
    %c0_107 = arith.constant 0 : index
    %c0_108 = arith.constant 0 : index
    %129 = vector.load %arg6[%c3_106, %c0_107, %c0_108] : memref<4x128x128xbf16, #tpu.memory_space<vmem>>, vector<1x128x128xbf16>
    %130 = vector.shape_cast %129 : vector<1x128x128xbf16> to vector<128x128xbf16>
    %131 = arith.truncf %124 : vector<64x128xf32> to vector<64x128xbf16>
    %cst_109 = arith.constant dense<0.000000e+00> : vector<64x128xf32>
    %132 = tpu.matmul %131, %130, %cst_109 {dimension_numbers = #tpu.dot_dimension_numbers<[1], [0], [0], [1], [0, 0, 1, 1], [], []>} : vector<64x128xbf16>, vector<128x128xbf16>, vector<64x128xf32> -> vector<64x128xf32>
    %c3_110 = arith.constant 3 : index
    %c0_111 = arith.constant 0 : index
    %c0_112 = arith.constant 0 : index
    %133 = vector.load %arg7[%c3_110, %c0_111, %c0_112] : memref<4x128x128xbf16, #tpu.memory_space<vmem>>, vector<1x128x128xbf16>
    %134 = vector.shape_cast %133 : vector<1x128x128xbf16> to vector<128x128xbf16>
    %135 = arith.truncf %128 : vector<64x128xf32> to vector<64x128xbf16>
    %cst_113 = arith.constant dense<0.000000e+00> : vector<64x128xf32>
    %136 = tpu.matmul %135, %134, %cst_113 {dimension_numbers = #tpu.dot_dimension_numbers<[1], [0], [0], [1], [0, 0, 1, 1], [], []>} : vector<64x128xbf16>, vector<128x128xbf16>, vector<64x128xf32> -> vector<64x128xf32>
    %137 = arith.addf %132, %136 : vector<64x128xf32>
    %c3_114 = arith.constant 3 : index
    %c0_115 = arith.constant 0 : index
    %c0_116 = arith.constant 0 : index
    %138 = vector.load %arg8[%c3_114, %c0_115, %c0_116] : memref<4x1x128xf32, #tpu.memory_space<vmem>>, vector<1x1x128xf32>
    %139 = vector.shape_cast %138 : vector<1x1x128xf32> to vector<1x128xf32>
    %140 = vector.broadcast %139 : vector<1x128xf32> to vector<64x128xf32>
    %141 = arith.addf %137, %140 : vector<64x128xf32>
    %cst_117 = arith.constant 0.000000e+00 : f32
    %142 = vector.broadcast %cst_117 : f32 to vector<64x128xf32>
    %143 = arith.maximumf %141, %142 : vector<64x128xf32>
    %c3_118 = arith.constant 3 : index
    %c0_119 = arith.constant 0 : index
    %c0_120 = arith.constant 0 : index
    %144 = vector.load %arg9[%c3_118, %c0_119, %c0_120] : memref<4x128x128xbf16, #tpu.memory_space<vmem>>, vector<1x128x128xbf16>
    %145 = vector.shape_cast %144 : vector<1x128x128xbf16> to vector<128x128xbf16>
    %146 = arith.truncf %143 : vector<64x128xf32> to vector<64x128xbf16>
    %cst_121 = arith.constant dense<0.000000e+00> : vector<64x128xf32>
    %147 = tpu.matmul %146, %145, %cst_121 {dimension_numbers = #tpu.dot_dimension_numbers<[1], [0], [0], [1], [0, 0, 1, 1], [], []>} : vector<64x128xbf16>, vector<128x128xbf16>, vector<64x128xf32> -> vector<64x128xf32>
    %c3_122 = arith.constant 3 : index
    %c0_123 = arith.constant 0 : index
    %c0_124 = arith.constant 0 : index
    %148 = vector.load %arg10[%c3_122, %c0_123, %c0_124] : memref<4x1x128xf32, #tpu.memory_space<vmem>>, vector<1x1x128xf32>
    %149 = vector.shape_cast %148 : vector<1x1x128xf32> to vector<1x128xf32>
    %150 = vector.broadcast %149 : vector<1x128xf32> to vector<64x128xf32>
    %151 = arith.addf %147, %150 : vector<64x128xf32>
    %cst_125 = arith.constant 0.000000e+00 : f32
    %152 = vector.broadcast %cst_125 : f32 to vector<64x128xf32>
    %153 = arith.maximumf %151, %152 : vector<64x128xf32>
    %c3_126 = arith.constant 3 : index
    %c0_127 = arith.constant 0 : index
    %c0_128 = arith.constant 0 : index
    %154 = vector.load %arg11[%c3_126, %c0_127, %c0_128] : memref<4x64x1xf32, #tpu.memory_space<vmem>>, vector<1x64x1xf32>
    %155 = vector.shape_cast %154 : vector<1x64x1xf32> to vector<64x1xf32>
    %156 = vector.broadcast %155 : vector<64x1xf32> to vector<64x128xf32>
    %157 = arith.mulf %153, %156 : vector<64x128xf32>
    %c0_129 = arith.constant 0 : index
    %c0_130 = arith.constant 0 : index
    %158 = vector.load %arg12[%c0_129, %c0_130] : memref<8x64xbf16, #tpu.memory_space<vmem>>, vector<8x64xbf16>
    %159 = arith.truncf %157 : vector<64x128xf32> to vector<64x128xbf16>
    %cst_131 = arith.constant dense<0.000000e+00> : vector<8x128xf32>
    %160 = tpu.matmul %158, %159, %cst_131 {dimension_numbers = #tpu.dot_dimension_numbers<[1], [0], [0], [1], [0, 0, 1, 1], [], []>} : vector<8x64xbf16>, vector<64x128xbf16>, vector<8x128xf32> -> vector<8x128xf32>
    %c0_132 = arith.constant 0 : index
    %c0_133 = arith.constant 0 : index
    %161 = vector.load %arg13[%c0_132, %c0_133] : memref<8x8xbf16, #tpu.memory_space<vmem>>, vector<8x8xbf16>
    %162 = arith.truncf %160 : vector<8x128xf32> to vector<8x128xbf16>
    %cst_134 = arith.constant dense<0.000000e+00> : vector<8x128xf32>
    %163 = tpu.matmul %161, %162, %cst_134 {dimension_numbers = #tpu.dot_dimension_numbers<[1], [0], [0], [1], [0, 0, 1, 1], [], []>} : vector<8x8xbf16>, vector<8x128xbf16>, vector<8x128xf32> -> vector<8x128xf32>
    %c0_135 = arith.constant 0 : index
    %c0_136 = arith.constant 0 : index
    %164 = vector.load %arg14[%c0_135, %c0_136] : memref<128x128xbf16, #tpu.memory_space<vmem>>, vector<128x128xbf16>
    %165 = arith.truncf %163 : vector<8x128xf32> to vector<8x128xbf16>
    %cst_137 = arith.constant dense<0.000000e+00> : vector<8x128xf32>
    %166 = tpu.matmul %165, %164, %cst_137 {dimension_numbers = #tpu.dot_dimension_numbers<[1], [0], [0], [1], [0, 0, 1, 1], [], []>} : vector<8x128xbf16>, vector<128x128xbf16>, vector<8x128xf32> -> vector<8x128xf32>
    %c0_138 = arith.constant 0 : index
    %c0_139 = arith.constant 0 : index
    %167 = vector.load %arg15[%c0_138, %c0_139] : memref<1x128xf32, #tpu.memory_space<vmem>>, vector<1x128xf32>
    %168 = vector.broadcast %167 : vector<1x128xf32> to vector<8x128xf32>
    %169 = arith.addf %166, %168 : vector<8x128xf32>
    %cst_140 = arith.constant 0.000000e+00 : f32
    %170 = vector.broadcast %cst_140 : f32 to vector<8x128xf32>
    %171 = arith.maximumf %169, %170 : vector<8x128xf32>
    %c0_141 = arith.constant 0 : index
    %c0_142 = arith.constant 0 : index
    %172 = vector.load %arg16[%c0_141, %c0_142] : memref<128x128xbf16, #tpu.memory_space<vmem>>, vector<128x128xbf16>
    %173 = arith.truncf %171 : vector<8x128xf32> to vector<8x128xbf16>
    %cst_143 = arith.constant dense<0.000000e+00> : vector<8x128xf32>
    %174 = tpu.matmul %173, %172, %cst_143 {dimension_numbers = #tpu.dot_dimension_numbers<[1], [0], [0], [1], [0, 0, 1, 1], [], []>} : vector<8x128xbf16>, vector<128x128xbf16>, vector<8x128xf32> -> vector<8x128xf32>
    %c0_144 = arith.constant 0 : index
    %c0_145 = arith.constant 0 : index
    %175 = vector.load %arg17[%c0_144, %c0_145] : memref<1x128xf32, #tpu.memory_space<vmem>>, vector<1x128xf32>
    %176 = vector.broadcast %175 : vector<1x128xf32> to vector<8x128xf32>
    %177 = arith.addf %174, %176 : vector<8x128xf32>
    %cst_146 = arith.constant 0.000000e+00 : f32
    %178 = vector.broadcast %cst_146 : f32 to vector<8x128xf32>
    %179 = arith.maximumf %177, %178 : vector<8x128xf32>
    %c0_147 = arith.constant 0 : index
    %c0_148 = arith.constant 0 : index
    %180 = vector.load %arg18[%c0_147, %c0_148] : memref<128x128xbf16, #tpu.memory_space<vmem>>, vector<128x128xbf16>
    %181 = arith.truncf %179 : vector<8x128xf32> to vector<8x128xbf16>
    %cst_149 = arith.constant dense<0.000000e+00> : vector<8x128xf32>
    %182 = tpu.matmul %181, %180, %cst_149 {dimension_numbers = #tpu.dot_dimension_numbers<[1], [0], [0], [1], [0, 0, 1, 1], [], []>} : vector<8x128xbf16>, vector<128x128xbf16>, vector<8x128xf32> -> vector<8x128xf32>
    %c0_150 = arith.constant 0 : index
    %c0_151 = arith.constant 0 : index
    %183 = vector.load %arg19[%c0_150, %c0_151] : memref<1x128xf32, #tpu.memory_space<vmem>>, vector<1x128xf32>
    %184 = vector.broadcast %183 : vector<1x128xf32> to vector<8x128xf32>
    %185 = arith.addf %182, %184 : vector<8x128xf32>
    %c0_152 = arith.constant 0 : index
    %c0_153 = arith.constant 0 : index
    %186 = vector.load %arg20[%c0_152, %c0_153] : memref<8x128xf32, #tpu.memory_space<vmem>>, vector<8x128xf32>
    tpu.vector_store %arg20[%c0_152, %c0_153], %185 {strides = array<i32>} : memref<8x128xf32, #tpu.memory_space<vmem>>, vector<8x128xf32>,
    return
  }
}

</mosaic_0001>

<llo_original>
// kernel: model_forward.1
$region0: #{model_forward.1}
  #allocation0 [shape = 'u32[]', space=smem, size = 0x4, offset = 0x4, fixed_abs, tag = 'smem constant byte address 0x4 - core index']
  #allocation1 [shape = 'u32[144,128]{1,0:T(1,128)}', space=vmem, size = 0x12000, scoped, tag = 'internal scratch']
  %s0 = inlined_call_operand.vmem [shape: f32[8,128], index: 0, kind: input, shape index: {}]
  %s1 = inlined_call_operand.vmem [shape: bf16[128,128], index: 1, kind: input, shape index: {}]
  %s2 = inlined_call_operand.vmem [shape: f32[1,128], index: 2, kind: input, shape index: {}]
  %s3 = inlined_call_operand.vmem [shape: bf16[64,8], index: 3, kind: input, shape index: {}]
  %s4 = inlined_call_operand.vmem [shape: bf16[4,64,64], index: 4, kind: input, shape index: {}]
  %s5 = inlined_call_operand.vmem [shape: bf16[4,64,64], index: 5, kind: input, shape index: {}]
  %s6 = inlined_call_operand.vmem [shape: bf16[4,128,128], index: 6, kind: input, shape index: {}]
  %s7 = inlined_call_operand.vmem [shape: bf16[4,128,128], index: 7, kind: input, shape index: {}]
  %s8 = inlined_call_operand.vmem [shape: f32[4,1,128], index: 8, kind: input, shape index: {}]
  %s9 = inlined_call_operand.vmem [shape: bf16[4,128,128], index: 9, kind: input, shape index: {}]
  %s10 = inlined_call_operand.vmem [shape: f32[4,1,128], index: 10, kind: input, shape index: {}]
  %s11 = inlined_call_operand.vmem [shape: f32[4,64,1], index: 11, kind: input, shape index: {}]
  %s12 = inlined_call_operand.vmem [shape: bf16[8,64], index: 12, kind: input, shape index: {}]
  %s13 = inlined_call_operand.vmem [shape: bf16[8,8], index: 13, kind: input, shape index: {}]
  %s14 = inlined_call_operand.vmem [shape: bf16[128,128], index: 14, kind: input, shape index: {}]
  %s15 = inlined_call_operand.vmem [shape: f32[1,128], index: 15, kind: input, shape index: {}]
  %s16 = inlined_call_operand.vmem [shape: bf16[128,128], index: 16, kind: input, shape index: {}]
  %s17 = inlined_call_operand.vmem [shape: f32[1,128], index: 17, kind: input, shape index: {}]
  %s18 = inlined_call_operand.vmem [shape: bf16[128,128], index: 18, kind: input, shape index: {}]
  %s19 = inlined_call_operand.vmem [shape: f32[1,128], index: 19, kind: input, shape index: {}]
  %s20 = inlined_call_operand.vmem [shape: f32[8,128], index: 20, kind: output, shape index: {}]
  %s21 = sld [smem:[#allocation0]]
  $region90: #{model_forward.1} parent=0
    _
  %s23 = ssub.s32 1, %s21
  %s24 = scalar_select 0, %s23, %s21
  // Predicated region
  $region2: #{model_forward.1} parent=0 // pred_check
    _
  $region3: #{model_forward.1} parent=0 // pred_check_branch
    %26 = sbr.rel (0) target = $region5
  $region4: #{model_forward.1} parent=0 // pred_region
    _
  $region5: #{model_forward.1} parent=0 // pred_fallthru
    _
  // Predicated region
  $region6: #{model_forward.1} parent=0 // pred_check
    _
  $region7: #{model_forward.1} parent=0 // pred_check_branch
    %28 = sbr.rel (0) target = $region9
  $region8: #{model_forward.1} parent=0 // pred_region
    _
  $region9: #{model_forward.1} parent=0 // pred_fallthru
    _
  // Predicated region
  $region10: #{model_forward.1} parent=0 // pred_check
    _
  $region11: #{model_forward.1} parent=0 // pred_check_branch
    %30 = sbr.rel (0) target = $region13
  $region12: #{model_forward.1} parent=0 // pred_region
    _
  $region13: #{model_forward.1} parent=0 // pred_fallthru
    _
  // Predicated region
  $region14: #{model_forward.1} parent=0 // pred_check
    _
  $region15: #{model_forward.1} parent=0 // pred_check_branch
    %32 = sbr.rel (0) target = $region17
  $region16: #{model_forward.1} parent=0 // pred_region
    _
  $region17: #{model_forward.1} parent=0 // pred_fallthru
    _
  // Predicated region
  $region18: #{model_forward.1} parent=0 // pred_check
    _
  $region19: #{model_forward.1} parent=0 // pred_check_branch
    %34 = sbr.rel (0) target = $region21
  $region20: #{model_forward.1} parent=0 // pred_region
    _
  $region21: #{model_forward.1} parent=0 // pred_fallthru
    _
  // Predicated region
  $region22: #{model_forward.1} parent=0 // pred_check
    _
  $region23: #{model_forward.1} parent=0 // pred_check_branch
    %36 = sbr.rel (0) target = $region25
  $region24: #{model_forward.1} parent=0 // pred_region
    _
  $region25: #{model_forward.1} parent=0 // pred_fallthru
    _
  // Predicated region
  $region26: #{model_forward.1} parent=0 // pred_check
    _
  $region27: #{model_forward.1} parent=0 // pred_check_branch
    %38 = sbr.rel (0) target = $region29
  $region28: #{model_forward.1} parent=0 // pred_region
    _
  $region29: #{model_forward.1} parent=0 // pred_fallthru
    _
  // Predicated region
  $region30: #{model_forward.1} parent=0 // pred_check
    _
  $region31: #{model_forward.1} parent=0 // pred_check_branch
    %40 = sbr.rel (0) target = $region33
  $region32: #{model_forward.1} parent=0 // pred_region
    _
  $region33: #{model_forward.1} parent=0 // pred_fallthru
    _
  // Predicated region
  $region34: #{model_forward.1} parent=0 // pred_check
    _
  $region35: #{model_forward.1} parent=0 // pred_check_branch
    %42 = sbr.rel (0) target = $region37
  $region36: #{model_forward.1} parent=0 // pred_region
    _
  $region37: #{model_forward.1} parent=0 // pred_fallthru
    _
  // Predicated region
  $region38: #{model_forward.1} parent=0 // pred_check
    _
  $region39: #{model_forward.1} parent=0 // pred_check_branch
    %44 = sbr.rel (0) target = $region41
  $region40: #{model_forward.1} parent=0 // pred_region
    _
  $region41: #{model_forward.1} parent=0 // pred_fallthru
    _
  // Predicated region
  $region42: #{model_forward.1} parent=0 // pred_check
    _
  $region43: #{model_forward.1} parent=0 // pred_check_branch
    %46 = sbr.rel (0) target = $region45
  $region44: #{model_forward.1} parent=0 // pred_region
    _
  $region45: #{model_forward.1} parent=0 // pred_fallthru
    _
  // Predicated region
  $region46: #{model_forward.1} parent=0 // pred_check
    _
  $region47: #{model_forward.1} parent=0 // pred_check_branch
    %48 = sbr.rel (0) target = $region49
  $region48: #{model_forward.1} parent=0 // pred_region
    _
  $region49: #{model_forward.1} parent=0 // pred_fallthru
    _
  // Predicated region
  $region50: #{model_forward.1} parent=0 // pred_check
    _
  $region51: #{model_forward.1} parent=0 // pred_check_branch
    %50 = sbr.rel (0) target = $region53
  $region52: #{model_forward.1} parent=0 // pred_region
    _
  $region53: #{model_forward.1} parent=0 // pred_fallthru
    _
  // Predicated region
  $region54: #{model_forward.1} parent=0 // pred_check
    _
  $region55: #{model_forward.1} parent=0 // pred_check_branch
    %52 = sbr.rel (0) target = $region57
  $region56: #{model_forward.1} parent=0 // pred_region
    _
  $region57: #{model_forward.1} parent=0 // pred_fallthru
    _
  // Predicated region
  $region58: #{model_forward.1} parent=0 // pred_check
    _
  $region59: #{model_forward.1} parent=0 // pred_check_branch
    %54 = sbr.rel (0) target = $region61
  $region60: #{model_forward.1} parent=0 // pred_region
    _
  $region61: #{model_forward.1} parent=0 // pred_fallthru
    _
  // Predicated region
  $region62: #{model_forward.1} parent=0 // pred_check
    _
  $region63: #{model_forward.1} parent=0 // pred_check_branch
    %56 = sbr.rel (0) target = $region65
  $region64: #{model_forward.1} parent=0 // pred_region
    _
  $region65: #{model_forward.1} parent=0 // pred_fallthru
    _
  // Predicated region
  $region66: #{model_forward.1} parent=0 // pred_check
    _
  $region67: #{model_forward.1} parent=0 // pred_check_branch
    %58 = sbr.rel (0) target = $region69
  $region68: #{model_forward.1} parent=0 // pred_region
    _
  $region69: #{model_forward.1} parent=0 // pred_fallthru
    _
  // Predicated region
  $region70: #{model_forward.1} parent=0 // pred_check
    _
  $region71: #{model_forward.1} parent=0 // pred_check_branch
    %60 = sbr.rel (0) target = $region73
  $region72: #{model_forward.1} parent=0 // pred_region
    _
  $region73: #{model_forward.1} parent=0 // pred_fallthru
    _
  // Predicated region
  $region74: #{model_forward.1} parent=0 // pred_check
    _
  $region75: #{model_forward.1} parent=0 // pred_check_branch
    %62 = sbr.rel (0) target = $region77
  $region76: #{model_forward.1} parent=0 // pred_region
    _
  $region77: #{model_forward.1} parent=0 // pred_fallthru
    _
  // Predicated region
  $region78: #{model_forward.1} parent=0 // pred_check
    _
  $region79: #{model_forward.1} parent=0 // pred_check_branch
    %64 = sbr.rel (0) target = $region81
  $region80: #{model_forward.1} parent=0 // pred_region
    _
  $region81: #{model_forward.1} parent=0 // pred_fallthru
    _
  %v66 = vld [vmem:[%s0] sm:$0xff]
  %v67 = vld [vmem:[%s1] sm:$0xf]
  %v68 = vld [vmem:[%s1 + $0x4] sm:$0xf]
  %v69 = vld [vmem:[%s1 + $0x8] sm:$0xf]
  %v70 = vld [vmem:[%s1 + $0xc] sm:$0xf]
  %v71 = vld [vmem:[%s1 + $0x10] sm:$0xf]
  %v72 = vld [vmem:[%s1 + $0x14] sm:$0xf]
  %v73 = vld [vmem:[%s1 + $0x18] sm:$0xf]
  %v74 = vld [vmem:[%s1 + $0x1c] sm:$0xf]
  %v75 = vld [vmem:[%s1 + $0x20] sm:$0xf]
  %v76 = vld [vmem:[%s1 + $0x24] sm:$0xf]
  %v77 = vld [vmem:[%s1 + $0x28] sm:$0xf]
  %v78 = vld [vmem:[%s1 + $0x2c] sm:$0xf]
  %v79 = vld [vmem:[%s1 + $0x30] sm:$0xf]
  %v80 = vld [vmem:[%s1 + $0x34] sm:$0xf]
  %v81 = vld [vmem:[%s1 + $0x38] sm:$0xf]
  %v82 = vld [vmem:[%s1 + $0x3c] sm:$0xf]
  %v83 = vpack.c.bf16 %v66, %v66
  %v84 = vld [vmem:[%s2] sm:$0x1]
  %v86 = vlaneseq
  %v87 = vshrl.u32 %v86, 7
  %v88 = vsub.s32 0, %v87
  %v89 = vrot.slane %v84, %v88
  %v107 = vunpack.c.l.b16 %v67
  %v108 = vunpack.c.l.b16 %v68
  %v109 = vunpack.c.l.b16 %v69
  %v110 = vunpack.c.l.b16 %v70
  %v111 = vunpack.c.l.b16 %v71
  %v112 = vunpack.c.l.b16 %v72
  %v113 = vunpack.c.l.b16 %v73
  %v114 = vunpack.c.l.b16 %v74
  %v115 = vunpack.c.l.b16 %v75
  %v116 = vunpack.c.l.b16 %v76
  %v117 = vunpack.c.l.b16 %v77
  %v118 = vunpack.c.l.b16 %v78
  %v119 = vunpack.c.l.b16 %v79
  %v120 = vunpack.c.l.b16 %v80
  %v121 = vunpack.c.l.b16 %v81
  %v122 = vunpack.c.l.b16 %v82
  %v123 = vpack.c.b16 %v108, %v107
  %v124 = vpack.c.b16 %v110, %v109
  %v125 = vpack.c.b16 %v112, %v111
  %v126 = vpack.c.b16 %v114, %v113
  %v127 = vpack.c.b16 %v116, %v115
  %v128 = vpack.c.b16 %v118, %v117
  %v129 = vpack.c.b16 %v120, %v119
  %v130 = vpack.c.b16 %v122, %v121
  %139 = vmatprep.subr.bf16.mxu0 0
  %140 = vmatpush1.bf16.msra.mxu0 %v123
  %141 = vmatprep.subr.bf16.mxu0 0
  %142 = vmatpush1.bf16.msra.mxu0 %v124
  %143 = vmatprep.subr.bf16.mxu0 0
  %144 = vmatpush1.bf16.msra.mxu0 %v125
  %145 = vmatprep.subr.bf16.mxu0 0
  %146 = vmatpush1.bf16.msra.mxu0 %v126
  %147 = vmatprep.subr.bf16.mxu0 0
  %148 = vmatpush1.bf16.msra.mxu0 %v127
  %149 = vmatprep.subr.bf16.mxu0 0
  %150 = vmatpush1.bf16.msra.mxu0 %v128
  %151 = vmatprep.subr.bf16.mxu0 0
  %152 = vmatpush1.bf16.msra.mxu0 %v129
  %153 = vmatprep.subr.bf16.mxu0 0
  %154 = vmatpush1.bf16.msra.mxu0 %v130
  %155 = vmatprep.subr.bf16.mxu0 0
  %156 = vmatpush1.bf16.msra.mxu0 0
  %157 = vmatprep.subr.bf16.mxu0 0
  %158 = vmatpush1.bf16.msra.mxu0 0
  %159 = vmatprep.subr.bf16.mxu0 0
  %160 = vmatpush1.bf16.msra.mxu0 0
  %161 = vmatprep.subr.bf16.mxu0 0
  %162 = vmatpush1.bf16.msra.mxu0 0
  %163 = vmatprep.subr.bf16.mxu0 0
  %164 = vmatpush1.bf16.msra.mxu0 0
  %165 = vmatprep.subr.bf16.mxu0 0
  %166 = vmatpush1.bf16.msra.mxu0 0
  %167 = vmatprep.subr.bf16.mxu0 0
  %168 = vmatpush1.bf16.msra.mxu0 0
  %169 = vmatprep.subr.bf16.mxu0 0
  %170 = vmatpush1.bf16.msra.mxu0 0
  %171 = vmatprep.mubr.bf16.mxu0 0
  %172 = vmatmul.mubr.bf16.gmra.mrb[0].mxu0 %v83
  %v173 = vpop.f32.mrb[0].mxu0
  %v174 = vadd.f32 %v89, %v173
  %v175 = vpop.f32.mrb[0].mxu0
  %v176 = vpop.f32.mrb[0].mxu0
  %v177 = vpop.f32.mrb[0].mxu0
  %178 = vdwg.mxu0
  %v179 = vld [vmem:[%s3] sm:$0xf]
  %v180 = vld [vmem:[%s3 + $0x4] sm:$0xf]
  %v181 = vld [vmem:[%s3 + $0x8] sm:$0xf]
  %v182 = vld [vmem:[%s3 + $0xc] sm:$0xf]
  %v183 = vld [vmem:[%s3 + $0x10] sm:$0xf]
  %v184 = vld [vmem:[%s3 + $0x14] sm:$0xf]
  %v185 = vld [vmem:[%s3 + $0x18] sm:$0xf]
  %v186 = vld [vmem:[%s3 + $0x1c] sm:$0xf]
  %v187 = vpack.c.bf16 %v174, %v174
  %v196 = vunpack.c.l.b16 %v179
  %v197 = vunpack.c.l.b16 %v180
  %v198 = vunpack.c.l.b16 %v181
  %v199 = vunpack.c.l.b16 %v182
  %v200 = vunpack.c.l.b16 %v183
  %v201 = vunpack.c.l.b16 %v184
  %v202 = vunpack.c.l.b16 %v185
  %v203 = vunpack.c.l.b16 %v186
  %v204 = vpack.c.b16 %v197, %v196
  %v205 = vpack.c.b16 %v199, %v198
  %v206 = vpack.c.b16 %v201, %v200
  %v207 = vpack.c.b16 %v203, %v202
  %vm208 = vcmask 64512
  %v210 = vsel %vm208, %v204, 0
  %v213 = vsel %vm208, %v205, 0
  %v216 = vsel %vm208, %v206, 0
  %v219 = vsel %vm208, %v207, 0
  %vm221 = vcmask 1043456
  %v223 = vsel %vm221, %v187, 0
  %225 = vmatprep.subr.bf16.mxu0 0
  %226 = vmatpush1.bf16.msra.mxu0 %v223
  %227 = vmatprep.subr.bf16.mxu0 0
  %228 = vmatpush1.bf16.msra.mxu0 0
  %229 = vmatprep.subr.bf16.mxu0 0
  %230 = vmatpush1.bf16.msra.mxu0 0
  %231 = vmatprep.subr.bf16.mxu0 0
  %232 = vmatpush1.bf16.msra.mxu0 0
  %233 = vmatprep.subr.bf16.mxu0 0
  %234 = vmatpush1.bf16.msra.mxu0 0
  %235 = vmatprep.subr.bf16.mxu0 0
  %236 = vmatpush1.bf16.msra.mxu0 0
  %237 = vmatprep.subr.bf16.mxu0 0
  %238 = vmatpush1.bf16.msra.mxu0 0
  %239 = vmatprep.subr.bf16.mxu0 0
  %240 = vmatpush1.bf16.msra.mxu0 0
  %241 = vmatprep.subr.bf16.mxu0 0
  %242 = vmatpush1.bf16.msra.mxu0 0
  %243 = vmatprep.subr.bf16.mxu0 0
  %244 = vmatpush1.bf16.msra.mxu0 0
  %245 = vmatprep.subr.bf16.mxu0 0
  %246 = vmatpush1.bf16.msra.mxu0 0
  %247 = vmatprep.subr.bf16.mxu0 0
  %248 = vmatpush1.bf16.msra.mxu0 0
  %249 = vmatprep.subr.bf16.mxu0 0
  %250 = vmatpush1.bf16.msra.mxu0 0
  %251 = vmatprep.subr.bf16.mxu0 0
  %252 = vmatpush1.bf16.msra.mxu0 0
  %253 = vmatprep.subr.bf16.mxu0 0
  %254 = vmatpush1.bf16.msra.mxu0 0
  %255 = vmatprep.subr.bf16.mxu0 0
  %256 = vmatpush1.bf16.msra.mxu0 0
  %257 = vmatprep.mubr.bf16.mxu0 0
  %258 = vmatmul.mubr.bf16.gmra.mrb[0].mxu0 %v210
  %v259 = vpop.f32.mrb[0].mxu0
  %v260 = vadd.f32 0.0, %v259
  %v261 = vpop.f32.mrb[0].mxu0
  %v262 = vpop.f32.mrb[0].mxu0
  %v263 = vadd.f32 0.0, %v262
  %v264 = vpop.f32.mrb[0].mxu0
  %265 = vmatprep.mubr.bf16.mxu0 0
  %266 = vmatmul.mubr.bf16.gmra.mrb[0].mxu0 %v213
  %v267 = vpop.f32.mrb[0].mxu0
  %v268 = vadd.f32 0.0, %v267
  %v269 = vpop.f32.mrb[0].mxu0
  %v270 = vpop.f32.mrb[0].mxu0
  %v271 = vadd.f32 0.0, %v270
  %v272 = vpop.f32.mrb[0].mxu0
  %273 = vmatprep.mubr.bf16.mxu0 0
  %274 = vmatmul.mubr.bf16.gmra.mrb[0].mxu0 %v216
  %v275 = vpop.f32.mrb[0].mxu0
  %v276 = vadd.f32 0.0, %v275
  %v277 = vpop.f32.mrb[0].mxu0
  %v278 = vpop.f32.mrb[0].mxu0
  %v279 = vadd.f32 0.0, %v278
  %v280 = vpop.f32.mrb[0].mxu0
  %281 = vmatprep.mubr.bf16.mxu0 0
  %282 = vmatmul.mubr.bf16.gmra.mrb[0].mxu0 %v219
  %v283 = vpop.f32.mrb[0].mxu0
  %v284 = vadd.f32 0.0, %v283
  %v285 = vpop.f32.mrb[0].mxu0
  %v286 = vpop.f32.mrb[0].mxu0
  %v287 = vadd.f32 0.0, %v286
  %v288 = vpop.f32.mrb[0].mxu0
  %289 = vdwg.mxu0
  %v290 = vld [vmem:[%s4] sm:$0xf]
  %v291 = vld [vmem:[%s4 + $0x4] sm:$0xf]
  %v292 = vld [vmem:[%s4 + $0x8] sm:$0xf]
  %v293 = vld [vmem:[%s4 + $0xc] sm:$0xf]
  %v294 = vld [vmem:[%s4 + $0x10] sm:$0xf]
  %v295 = vld [vmem:[%s4 + $0x14] sm:$0xf]
  %v296 = vld [vmem:[%s4 + $0x18] sm:$0xf]
  %v297 = vld [vmem:[%s4 + $0x1c] sm:$0xf]
  %v298 = vpack.c.bf16 %v263, %v260
  %v299 = vpack.c.bf16 %v271, %v268
  %v300 = vpack.c.bf16 %v279, %v276
  %v301 = vpack.c.bf16 %v287, %v284
  %v310 = vunpack.c.l.b16 %v290
  %v311 = vunpack.c.l.b16 %v291
  %v312 = vunpack.c.l.b16 %v292
  %v313 = vunpack.c.l.b16 %v293
  %v314 = vunpack.c.l.b16 %v294
  %v315 = vunpack.c.l.b16 %v295
  %v316 = vunpack.c.l.b16 %v296
  %v317 = vunpack.c.l.b16 %v297
  %v318 = vpack.c.b16 %v311, %v310
  %v319 = vpack.c.b16 %v313, %v312
  %v320 = vpack.c.b16 %v315, %v314
  %v321 = vpack.c.b16 %v317, %v316
  %vm322 = vcmask 523264
  %v324 = vsel %vm322, %v318, 0
  %v327 = vsel %vm322, %v319, 0
  %v330 = vsel %vm322, %v320, 0
  %v333 = vsel %vm322, %v321, 0
  %335 = vmatprep.subr.bf16.mxu0 0
  %336 = vmatpush1.bf16.msra.mxu0 %v298
  %337 = vmatprep.subr.bf16.mxu0 0
  %338 = vmatpush1.bf16.msra.mxu0 %v299
  %339 = vmatprep.subr.bf16.mxu0 0
  %340 = vmatpush1.bf16.msra.mxu0 %v300
  %341 = vmatprep.subr.bf16.mxu0 0
  %342 = vmatpush1.bf16.msra.mxu0 %v301
  %343 = vmatprep.subr.bf16.mxu0 0
  %344 = vmatpush1.bf16.msra.mxu0 0
  %345 = vmatprep.subr.bf16.mxu0 0
  %346 = vmatpush1.bf16.msra.mxu0 0
  %347 = vmatprep.subr.bf16.mxu0 0
  %348 = vmatpush1.bf16.msra.mxu0 0
  %349 = vmatprep.subr.bf16.mxu0 0
  %350 = vmatpush1.bf16.msra.mxu0 0
  %351 = vmatprep.subr.bf16.mxu0 0
  %352 = vmatpush1.bf16.msra.mxu0 0
  %353 = vmatprep.subr.bf16.mxu0 0
  %354 = vmatpush1.bf16.msra.mxu0 0
  %355 = vmatprep.subr.bf16.mxu0 0
  %356 = vmatpush1.bf16.msra.mxu0 0
  %357 = vmatprep.subr.bf16.mxu0 0
  %358 = vmatpush1.bf16.msra.mxu0 0
  %359 = vmatprep.subr.bf16.mxu0 0
  %360 = vmatpush1.bf16.msra.mxu0 0
  %361 = vmatprep.subr.bf16.mxu0 0
  %362 = vmatpush1.bf16.msra.mxu0 0
  %363 = vmatprep.subr.bf16.mxu0 0
  %364 = vmatpush1.bf16.msra.mxu0 0
  %365 = vmatprep.subr.bf16.mxu0 0
  %366 = vmatpush1.bf16.msra.mxu0 0
  %367 = vmatprep.mubr.bf16.mxu0 0
  %368 = vmatmul.mubr.bf16.gmra.mrb[0].mxu0 %v324
  %v369 = vpop.f32.mrb[0].mxu0
  %v370 = vadd.f32 0.0, %v369
  %v371 = vpop.f32.mrb[0].mxu0
  %v372 = vpop.f32.mrb[0].mxu0
  %v373 = vadd.f32 0.0, %v372
  %v374 = vpop.f32.mrb[0].mxu0
  %375 = vmatprep.mubr.bf16.mxu0 0
  %376 = vmatmul.mubr.bf16.gmra.mrb[0].mxu0 %v327
  %v377 = vpop.f32.mrb[0].mxu0
  %v378 = vadd.f32 0.0, %v377
  %v379 = vpop.f32.mrb[0].mxu0
  %v380 = vpop.f32.mrb[0].mxu0
  %v381 = vadd.f32 0.0, %v380
  %v382 = vpop.f32.mrb[0].mxu0
  %383 = vmatprep.mubr.bf16.mxu0 0
  %384 = vmatmul.mubr.bf16.gmra.mrb[0].mxu0 %v330
  %v385 = vpop.f32.mrb[0].mxu0
  %v386 = vadd.f32 0.0, %v385
  %v387 = vpop.f32.mrb[0].mxu0
  %v388 = vpop.f32.mrb[0].mxu0
  %v389 = vadd.f32 0.0, %v388
  %v390 = vpop.f32.mrb[0].mxu0
  %391 = vmatprep.mubr.bf16.mxu0 0
  %392 = vmatmul.mubr.bf16.gmra.mrb[0].mxu0 %v333
  %v393 = vpop.f32.mrb[0].mxu0
  %v394 = vadd.f32 0.0, %v393
  %v395 = vpop.f32.mrb[0].mxu0
  %v396 = vpop.f32.mrb[0].mxu0
  %v397 = vadd.f32 0.0, %v396
  %v398 = vpop.f32.mrb[0].mxu0
  %399 = vdwg.mxu0
  %v400 = vld [vmem:[%s5] sm:$0xf]
  %v401 = vld [vmem:[%s5 + $0x4] sm:$0xf]
  %v402 = vld [vmem:[%s5 + $0x8] sm:$0xf]
  %v403 = vld [vmem:[%s5 + $0xc] sm:$0xf]
  %v404 = vld [vmem:[%s5 + $0x10] sm:$0xf]
  %v405 = vld [vmem:[%s5 + $0x14] sm:$0xf]
  %v406 = vld [vmem:[%s5 + $0x18] sm:$0xf]
  %v407 = vld [vmem:[%s5 + $0x1c] sm:$0xf]
  %v416 = vunpack.c.l.b16 %v400
  %v417 = vunpack.c.l.b16 %v401
  %v418 = vunpack.c.l.b16 %v402
  %v419 = vunpack.c.l.b16 %v403
  %v420 = vunpack.c.l.b16 %v404
  %v421 = vunpack.c.l.b16 %v405
  %v422 = vunpack.c.l.b16 %v406
  %v423 = vunpack.c.l.b16 %v407
  %v424 = vpack.c.b16 %v417, %v416
  %v425 = vpack.c.b16 %v419, %v418
  %v426 = vpack.c.b16 %v421, %v420
  %v427 = vpack.c.b16 %v423, %v422
  %v429 = vsel %vm322, %v424, 0
  %v432 = vsel %vm322, %v425, 0
  %v435 = vsel %vm322, %v426, 0
  %v438 = vsel %vm322, %v427, 0
  %440 = vmatprep.subr.bf16.mxu0 0
  %441 = vmatpush1.bf16.msra.mxu0 %v298
  %442 = vmatprep.subr.bf16.mxu0 0
  %443 = vmatpush1.bf16.msra.mxu0 %v299
  %444 = vmatprep.subr.bf16.mxu0 0
  %445 = vmatpush1.bf16.msra.mxu0 %v300
  %446 = vmatprep.subr.bf16.mxu0 0
  %447 = vmatpush1.bf16.msra.mxu0 %v301
  %448 = vmatprep.subr.bf16.mxu0 0
  %449 = vmatpush1.bf16.msra.mxu0 0
  %450 = vmatprep.subr.bf16.mxu0 0
  %451 = vmatpush1.bf16.msra.mxu0 0
  %452 = vmatprep.subr.bf16.mxu0 0
  %453 = vmatpush1.bf16.msra.mxu0 0
  %454 = vmatprep.subr.bf16.mxu0 0
  %455 = vmatpush1.bf16.msra.mxu0 0
  %456 = vmatprep.subr.bf16.mxu0 0
  %457 = vmatpush1.bf16.msra.mxu0 0
  %458 = vmatprep.subr.bf16.mxu0 0
  %459 = vmatpush1.bf16.msra.mxu0 0
  %460 = vmatprep.subr.bf16.mxu0 0
  %461 = vmatpush1.bf16.msra.mxu0 0
  %462 = vmatprep.subr.bf16.mxu0 0
  %463 = vmatpush1.bf16.msra.mxu0 0
  %464 = vmatprep.subr.bf16.mxu0 0
  %465 = vmatpush1.bf16.msra.mxu0 0
  %466 = vmatprep.subr.bf16.mxu0 0
  %467 = vmatpush1.bf16.msra.mxu0 0
  %468 = vmatprep.subr.bf16.mxu0 0
  %469 = vmatpush1.bf16.msra.mxu0 0
  %470 = vmatprep.subr.bf16.mxu0 0
  %471 = vmatpush1.bf16.msra.mxu0 0
  %472 = vmatprep.mubr.bf16.mxu0 0
  %473 = vmatmul.mubr.bf16.gmra.mrb[0].mxu0 %v429
  %v474 = vpop.f32.mrb[0].mxu0
  %v475 = vadd.f32 0.0, %v474
  %v476 = vpop.f32.mrb[0].mxu0
  %v477 = vpop.f32.mrb[0].mxu0
  %v478 = vadd.f32 0.0, %v477
  %v479 = vpop.f32.mrb[0].mxu0
  %480 = vmatprep.mubr.bf16.mxu0 0
  %481 = vmatmul.mubr.bf16.gmra.mrb[0].mxu0 %v432
  %v482 = vpop.f32.mrb[0].mxu0
  %v483 = vadd.f32 0.0, %v482
  %v484 = vpop.f32.mrb[0].mxu0
  %v485 = vpop.f32.mrb[0].mxu0
  %v486 = vadd.f32 0.0, %v485
  %v487 = vpop.f32.mrb[0].mxu0
  %488 = vmatprep.mubr.bf16.mxu0 0
  %489 = vmatmul.mubr.bf16.gmra.mrb[0].mxu0 %v435
  %v490 = vpop.f32.mrb[0].mxu0
  %v491 = vadd.f32 0.0, %v490
  %v492 = vpop.f32.mrb[0].mxu0
  %v493 = vpop.f32.mrb[0].mxu0
  %v494 = vadd.f32 0.0, %v493
  %v495 = vpop.f32.mrb[0].mxu0
  %496 = vmatprep.mubr.bf16.mxu0 0
  %497 = vmatmul.mubr.bf16.gmra.mrb[0].mxu0 %v438
  %v498 = vpop.f32.mrb[0].mxu0
  %v499 = vadd.f32 0.0, %v498
  %v500 = vpop.f32.mrb[0].mxu0
  %v501 = vpop.f32.mrb[0].mxu0
  %v502 = vadd.f32 0.0, %v501
  %v503 = vpop.f32.mrb[0].mxu0
  %504 = vdwg.mxu0
  %v505 = vld [vmem:[%s6] sm:$0xf]
  %v506 = vld [vmem:[%s6 + $0x4] sm:$0xf]
  %v507 = vld [vmem:[%s6 + $0x8] sm:$0xf]
  %v508 = vld [vmem:[%s6 + $0xc] sm:$0xf]
  %v509 = vld [vmem:[%s6 + $0x10] sm:$0xf]
  %v510 = vld [vmem:[%s6 + $0x14] sm:$0xf]
  %v511 = vld [vmem:[%s6 + $0x18] sm:$0xf]
  %v512 = vld [vmem:[%s6 + $0x1c] sm:$0xf]
  %v513 = vld [vmem:[%s6 + $0x20] sm:$0xf]
  %v514 = vld [vmem:[%s6 + $0x24] sm:$0xf]
  %v515 = vld [vmem:[%s6 + $0x28] sm:$0xf]
  %v516 = vld [vmem:[%s6 + $0x2c] sm:$0xf]
  %v517 = vld [vmem:[%s6 + $0x30] sm:$0xf]
  %v518 = vld [vmem:[%s6 + $0x34] sm:$0xf]
  %v519 = vld [vmem:[%s6 + $0x38] sm:$0xf]
  %v520 = vld [vmem:[%s6 + $0x3c] sm:$0xf]
  %v521 = vpack.c.bf16 %v373, %v370
  %v522 = vpack.c.bf16 %v381, %v378
  %v523 = vpack.c.bf16 %v389, %v386
  %v524 = vpack.c.bf16 %v397, %v394
  %v525 = vld [vmem:[%s7] sm:$0xf]
  %v526 = vld [vmem:[%s7 + $0x4] sm:$0xf]
  %v527 = vld [vmem:[%s7 + $0x8] sm:$0xf]
  %v528 = vld [vmem:[%s7 + $0xc] sm:$0xf]
  %v529 = vld [vmem:[%s7 + $0x10] sm:$0xf]
  %v530 = vld [vmem:[%s7 + $0x14] sm:$0xf]
  %v531 = vld [vmem:[%s7 + $0x18] sm:$0xf]
  %v532 = vld [vmem:[%s7 + $0x1c] sm:$0xf]
  %v533 = vld [vmem:[%s7 + $0x20] sm:$0xf]
  %v534 = vld [vmem:[%s7 + $0x24] sm:$0xf]
  %v535 = vld [vmem:[%s7 + $0x28] sm:$0xf]
  %v536 = vld [vmem:[%s7 + $0x2c] sm:$0xf]
  %v537 = vld [vmem:[%s7 + $0x30] sm:$0xf]
  %v538 = vld [vmem:[%s7 + $0x34] sm:$0xf]
  %v539 = vld [vmem:[%s7 + $0x38] sm:$0xf]
  %v540 = vld [vmem:[%s7 + $0x3c] sm:$0xf]
  %v541 = vpack.c.bf16 %v478, %v475
  %v542 = vpack.c.bf16 %v486, %v483
  %v543 = vpack.c.bf16 %v494, %v491
  %v544 = vpack.c.bf16 %v502, %v499
  %v561 = vunpack.c.l.b16 %v525
  %v562 = vunpack.c.l.b16 %v526
  %v563 = vunpack.c.l.b16 %v527
  %v564 = vunpack.c.l.b16 %v528
  %v565 = vunpack.c.l.b16 %v529
  %v566 = vunpack.c.l.b16 %v530
  %v567 = vunpack.c.l.b16 %v531
  %v568 = vunpack.c.l.b16 %v532
  %v569 = vunpack.c.l.b16 %v533
  %v570 = vunpack.c.l.b16 %v534
  %v571 = vunpack.c.l.b16 %v535
  %v572 = vunpack.c.l.b16 %v536
  %v573 = vunpack.c.l.b16 %v537
  %v574 = vunpack.c.l.b16 %v538
  %v575 = vunpack.c.l.b16 %v539
  %v576 = vunpack.c.l.b16 %v540
  %v577 = vpack.c.b16 %v562, %v561
  %v578 = vpack.c.b16 %v564, %v563
  %v579 = vpack.c.b16 %v566, %v565
  %v580 = vpack.c.b16 %v568, %v567
  %v581 = vpack.c.b16 %v570, %v569
  %v582 = vpack.c.b16 %v572, %v571
  %v583 = vpack.c.b16 %v574, %v573
  %v584 = vpack.c.b16 %v576, %v575
  %593 = vmatprep.subr.bf16.mxu0 0
  %594 = vmatpush1.bf16.msra.mxu0 %v577
  %595 = vmatprep.subr.bf16.mxu0 0
  %596 = vmatpush1.bf16.msra.mxu0 %v578
  %597 = vmatprep.subr.bf16.mxu0 0
  %598 = vmatpush1.bf16.msra.mxu0 %v579
  %599 = vmatprep.subr.bf16.mxu0 0
  %600 = vmatpush1.bf16.msra.mxu0 %v580
  %601 = vmatprep.subr.bf16.mxu0 0
  %602 = vmatpush1.bf16.msra.mxu0 %v581
  %603 = vmatprep.subr.bf16.mxu0 0
  %604 = vmatpush1.bf16.msra.mxu0 %v582
  %605 = vmatprep.subr.bf16.mxu0 0
  %606 = vmatpush1.bf16.msra.mxu0 %v583
  %607 = vmatprep.subr.bf16.mxu0 0
  %608 = vmatpush1.bf16.msra.mxu0 %v584
  %609 = vmatprep.subr.bf16.mxu0 0
  %610 = vmatpush1.bf16.msra.mxu0 0
  %611 = vmatprep.subr.bf16.mxu0 0
  %612 = vmatpush1.bf16.msra.mxu0 0
  %613 = vmatprep.subr.bf16.mxu0 0
  %614 = vmatpush1.bf16.msra.mxu0 0
  %615 = vmatprep.subr.bf16.mxu0 0
  %616 = vmatpush1.bf16.msra.mxu0 0
  %617 = vmatprep.subr.bf16.mxu0 0
  %618 = vmatpush1.bf16.msra.mxu0 0
  %619 = vmatprep.subr.bf16.mxu0 0
  %620 = vmatpush1.bf16.msra.mxu0 0
  %621 = vmatprep.subr.bf16.mxu0 0
  %622 = vmatpush1.bf16.msra.mxu0 0
  %623 = vmatprep.subr.bf16.mxu0 0
  %624 = vmatpush1.bf16.msra.mxu0 0
  %625 = vmatprep.mubr.bf16.mxu0 0
  %626 = vmatmul.mubr.bf16.gmra.mrb[0].mxu0 %v541
  %v627 = vpop.f32.mrb[0].mxu0
  %v628 = vadd.f32 0.0, %v627
  %v629 = vpop.f32.mrb[0].mxu0
  %v630 = vpop.f32.mrb[0].mxu0
  %v631 = vadd.f32 0.0, %v630
  %v632 = vpop.f32.mrb[0].mxu0
  %633 = vmatprep.mubr.bf16.mxu0 0
  %634 = vmatmul.mubr.bf16.gmra.mrb[0].mxu0 %v542
  %v635 = vpop.f32.mrb[0].mxu0
  %v636 = vadd.f32 0.0, %v635
  %v637 = vpop.f32.mrb[0].mxu0
  %v638 = vpop.f32.mrb[0].mxu0
  %v639 = vadd.f32 0.0, %v638
  %v640 = vpop.f32.mrb[0].mxu0
  %641 = vmatprep.mubr.bf16.mxu0 0
  %642 = vmatmul.mubr.bf16.gmra.mrb[0].mxu0 %v543
  %v643 = vpop.f32.mrb[0].mxu0
  %v644 = vadd.f32 0.0, %v643
  %v645 = vpop.f32.mrb[0].mxu0
  %v646 = vpop.f32.mrb[0].mxu0
  %v647 = vadd.f32 0.0, %v646
  %v648 = vpop.f32.mrb[0].mxu0
  %649 = vmatprep.mubr.bf16.mxu0 0
  %650 = vmatmul.mubr.bf16.gmra.mrb[0].mxu0 %v544
  %v651 = vpop.f32.mrb[0].mxu0
  %v652 = vadd.f32 0.0, %v651
  %v653 = vpop.f32.mrb[0].mxu0
  %v654 = vpop.f32.mrb[0].mxu0
  %v655 = vadd.f32 0.0, %v654
  %v656 = vpop.f32.mrb[0].mxu0
  %657 = vdwg.mxu0
  %v674 = vunpack.c.l.b16 %v505
  %v675 = vunpack.c.l.b16 %v506
  %v676 = vunpack.c.l.b16 %v507
  %v677 = vunpack.c.l.b16 %v508
  %v678 = vunpack.c.l.b16 %v509
  %v679 = vunpack.c.l.b16 %v510
  %v680 = vunpack.c.l.b16 %v511
  %v681 = vunpack.c.l.b16 %v512
  %v682 = vunpack.c.l.b16 %v513
  %v683 = vunpack.c.l.b16 %v514
  %v684 = vunpack.c.l.b16 %v515
  %v685 = vunpack.c.l.b16 %v516
  %v686 = vunpack.c.l.b16 %v517
  %v687 = vunpack.c.l.b16 %v518
  %v688 = vunpack.c.l.b16 %v519
  %v689 = vunpack.c.l.b16 %v520
  %v690 = vpack.c.b16 %v675, %v674
  %v691 = vpack.c.b16 %v677, %v676
  %v692 = vpack.c.b16 %v679, %v678
  %v693 = vpack.c.b16 %v681, %v680
  %v694 = vpack.c.b16 %v683, %v682
  %v695 = vpack.c.b16 %v685, %v684
  %v696 = vpack.c.b16 %v687, %v686
  %v697 = vpack.c.b16 %v689, %v688
  %706 = vmatprep.subr.bf16.mxu0 0
  %707 = vmatpush1.bf16.msra.mxu0 %v690
  %708 = vmatprep.subr.bf16.mxu0 0
  %709 = vmatpush1.bf16.msra.mxu0 %v691
  %710 = vmatprep.subr.bf16.mxu0 0
  %711 = vmatpush1.bf16.msra.mxu0 %v692
  %712 = vmatprep.subr.bf16.mxu0 0
  %713 = vmatpush1.bf16.msra.mxu0 %v693
  %714 = vmatprep.subr.bf16.mxu0 0
  %715 = vmatpush1.bf16.msra.mxu0 %v694
  %716 = vmatprep.subr.bf16.mxu0 0
  %717 = vmatpush1.bf16.msra.mxu0 %v695
  %718 = vmatprep.subr.bf16.mxu0 0
  %719 = vmatpush1.bf16.msra.mxu0 %v696
  %720 = vmatprep.subr.bf16.mxu0 0
  %721 = vmatpush1.bf16.msra.mxu0 %v697
  %722 = vmatprep.subr.bf16.mxu0 0
  %723 = vmatpush1.bf16.msra.mxu0 0
  %724 = vmatprep.subr.bf16.mxu0 0
  %725 = vmatpush1.bf16.msra.mxu0 0
  %726 = vmatprep.subr.bf16.mxu0 0
  %727 = vmatpush1.bf16.msra.mxu0 0
  %728 = vmatprep.subr.bf16.mxu0 0
  %729 = vmatpush1.bf16.msra.mxu0 0
  %730 = vmatprep.subr.bf16.mxu0 0
  %731 = vmatpush1.bf16.msra.mxu0 0
  %732 = vmatprep.subr.bf16.mxu0 0
  %733 = vmatpush1.bf16.msra.mxu0 0
  %734 = vmatprep.subr.bf16.mxu0 0
  %735 = vmatpush1.bf16.msra.mxu0 0
  %736 = vmatprep.subr.bf16.mxu0 0
  %737 = vmatpush1.bf16.msra.mxu0 0
  %738 = vmatprep.mubr.bf16.mxu0 0
  %739 = vmatmul.mubr.bf16.gmra.mrb[0].mxu0 %v521
  %v740 = vpop.f32.mrb[0].mxu0
  %v741 = vadd.f32 %v628, %v740
  %v742 = vpop.f32.mrb[0].mxu0
  %v743 = vpop.f32.mrb[0].mxu0
  %v744 = vadd.f32 %v631, %v743
  %v745 = vpop.f32.mrb[0].mxu0
  %746 = vmatprep.mubr.bf16.mxu0 0
  %747 = vmatmul.mubr.bf16.gmra.mrb[0].mxu0 %v522
  %v748 = vpop.f32.mrb[0].mxu0
  %v749 = vadd.f32 %v636, %v748
  %v750 = vpop.f32.mrb[0].mxu0
  %v751 = vpop.f32.mrb[0].mxu0
  %v752 = vadd.f32 %v639, %v751
  %v753 = vpop.f32.mrb[0].mxu0
  %754 = vmatprep.mubr.bf16.mxu0 0
  %755 = vmatmul.mubr.bf16.gmra.mrb[0].mxu0 %v523
  %v756 = vpop.f32.mrb[0].mxu0
  %v757 = vadd.f32 %v644, %v756
  %v758 = vpop.f32.mrb[0].mxu0
  %v759 = vpop.f32.mrb[0].mxu0
  %v760 = vadd.f32 %v647, %v759
  %v761 = vpop.f32.mrb[0].mxu0
  %762 = vmatprep.mubr.bf16.mxu0 0
  %763 = vmatmul.mubr.bf16.gmra.mrb[0].mxu0 %v524
  %v764 = vpop.f32.mrb[0].mxu0
  %v765 = vadd.f32 %v652, %v764
  %v766 = vpop.f32.mrb[0].mxu0
  %v767 = vpop.f32.mrb[0].mxu0
  %v768 = vadd.f32 %v655, %v767
  %v769 = vpop.f32.mrb[0].mxu0
  %770 = vdwg.mxu0
  %v771 = vld [vmem:[%s8] sm:$0x1]
  %v773 = vlaneseq
  %v774 = vshrl.u32 %v773, 7
  %v775 = vsub.s32 0, %v774
  %v776 = vrot.slane %v771, %v775
  %v778 = vadd.f32 %v741, %v776
  %v779 = vadd.f32 %v744, %v776
  %v780 = vadd.f32 %v749, %v776
  %v781 = vadd.f32 %v752, %v776
  %v782 = vadd.f32 %v757, %v776
  %v783 = vadd.f32 %v760, %v776
  %v784 = vadd.f32 %v765, %v776
  %v785 = vadd.f32 %v768, %v776
  %v786 = vmax.f32 %v778, 0.0
  %v787 = vmax.f32 %v779, 0.0
  %v788 = vmax.f32 %v780, 0.0
  %v789 = vmax.f32 %v781, 0.0
  %v790 = vmax.f32 %v782, 0.0
  %v791 = vmax.f32 %v783, 0.0
  %v792 = vmax.f32 %v784, 0.0
  %v793 = vmax.f32 %v785, 0.0
  %v794 = vld [vmem:[%s9] sm:$0xf]
  %v795 = vld [vmem:[%s9 + $0x4] sm:$0xf]
  %v796 = vld [vmem:[%s9 + $0x8] sm:$0xf]
  %v797 = vld [vmem:[%s9 + $0xc] sm:$0xf]
  %v798 = vld [vmem:[%s9 + $0x10] sm:$0xf]
  %v799 = vld [vmem:[%s9 + $0x14] sm:$0xf]
  %v800 = vld [vmem:[%s9 + $0x18] sm:$0xf]
  %v801 = vld [vmem:[%s9 + $0x1c] sm:$0xf]
  %v802 = vld [vmem:[%s9 + $0x20] sm:$0xf]
  %v803 = vld [vmem:[%s9 + $0x24] sm:$0xf]
  %v804 = vld [vmem:[%s9 + $0x28] sm:$0xf]
  %v805 = vld [vmem:[%s9 + $0x2c] sm:$0xf]
  %v806 = vld [vmem:[%s9 + $0x30] sm:$0xf]
  %v807 = vld [vmem:[%s9 + $0x34] sm:$0xf]
  %v808 = vld [vmem:[%s9 + $0x38] sm:$0xf]
  %v809 = vld [vmem:[%s9 + $0x3c] sm:$0xf]
  %v810 = vpack.c.bf16 %v787, %v786
  %v811 = vpack.c.bf16 %v789, %v788
  %v812 = vpack.c.bf16 %v791, %v790
  %v813 = vpack.c.bf16 %v793, %v792
  %v814 = vld [vmem:[%s10] sm:$0x1]
  %v816 = vlaneseq
  %v817 = vshrl.u32 %v816, 7
  %v818 = vsub.s32 0, %v817
  %v819 = vrot.slane %v814, %v818
  %v837 = vunpack.c.l.b16 %v794
  %v838 = vunpack.c.l.b16 %v795
  %v839 = vunpack.c.l.b16 %v796
  %v840 = vunpack.c.l.b16 %v797
  %v841 = vunpack.c.l.b16 %v798
  %v842 = vunpack.c.l.b16 %v799
  %v843 = vunpack.c.l.b16 %v800
  %v844 = vunpack.c.l.b16 %v801
  %v845 = vunpack.c.l.b16 %v802
  %v846 = vunpack.c.l.b16 %v803
  %v847 = vunpack.c.l.b16 %v804
  %v848 = vunpack.c.l.b16 %v805
  %v849 = vunpack.c.l.b16 %v806
  %v850 = vunpack.c.l.b16 %v807
  %v851 = vunpack.c.l.b16 %v808
  %v852 = vunpack.c.l.b16 %v809
  %v853 = vpack.c.b16 %v838, %v837
  %v854 = vpack.c.b16 %v840, %v839
  %v855 = vpack.c.b16 %v842, %v841
  %v856 = vpack.c.b16 %v844, %v843
  %v857 = vpack.c.b16 %v846, %v845
  %v858 = vpack.c.b16 %v848, %v847
  %v859 = vpack.c.b16 %v850, %v849
  %v860 = vpack.c.b16 %v852, %v851
  %869 = vmatprep.subr.bf16.mxu0 0
  %870 = vmatpush1.bf16.msra.mxu0 %v853
  %871 = vmatprep.subr.bf16.mxu0 0
  %872 = vmatpush1.bf16.msra.mxu0 %v854
  %873 = vmatprep.subr.bf16.mxu0 0
  %874 = vmatpush1.bf16.msra.mxu0 %v855
  %875 = vmatprep.subr.bf16.mxu0 0
  %876 = vmatpush1.bf16.msra.mxu0 %v856
  %877 = vmatprep.subr.bf16.mxu0 0
  %878 = vmatpush1.bf16.msra.mxu0 %v857
  %879 = vmatprep.subr.bf16.mxu0 0
  %880 = vmatpush1.bf16.msra.mxu0 %v858
  %881 = vmatprep.subr.bf16.mxu0 0
  %882 = vmatpush1.bf16.msra.mxu0 %v859
  %883 = vmatprep.subr.bf16.mxu0 0
  %884 = vmatpush1.bf16.msra.mxu0 %v860
  %885 = vmatprep.subr.bf16.mxu0 0
  %886 = vmatpush1.bf16.msra.mxu0 0
  %887 = vmatprep.subr.bf16.mxu0 0
  %888 = vmatpush1.bf16.msra.mxu0 0
  %889 = vmatprep.subr.bf16.mxu0 0
  %890 = vmatpush1.bf16.msra.mxu0 0
  %891 = vmatprep.subr.bf16.mxu0 0
  %892 = vmatpush1.bf16.msra.mxu0 0
  %893 = vmatprep.subr.bf16.mxu0 0
  %894 = vmatpush1.bf16.msra.mxu0 0
  %895 = vmatprep.subr.bf16.mxu0 0
  %896 = vmatpush1.bf16.msra.mxu0 0
  %897 = vmatprep.subr.bf16.mxu0 0
  %898 = vmatpush1.bf16.msra.mxu0 0
  %899 = vmatprep.subr.bf16.mxu0 0
  %900 = vmatpush1.bf16.msra.mxu0 0
  %901 = vmatprep.mubr.bf16.mxu0 0
  %902 = vmatmul.mubr.bf16.gmra.mrb[0].mxu0 %v810
  %v903 = vpop.f32.mrb[0].mxu0
  %v904 = vadd.f32 %v819, %v903
  %v905 = vpop.f32.mrb[0].mxu0
  %v906 = vpop.f32.mrb[0].mxu0
  %v907 = vadd.f32 %v819, %v906
  %v908 = vpop.f32.mrb[0].mxu0
  %909 = vmatprep.mubr.bf16.mxu0 0
  %910 = vmatmul.mubr.bf16.gmra.mrb[0].mxu0 %v811
  %v911 = vpop.f32.mrb[0].mxu0
  %v912 = vadd.f32 %v819, %v911
  %v913 = vpop.f32.mrb[0].mxu0
  %v914 = vpop.f32.mrb[0].mxu0
  %v915 = vadd.f32 %v819, %v914
  %v916 = vpop.f32.mrb[0].mxu0
  %917 = vmatprep.mubr.bf16.mxu0 0
  %918 = vmatmul.mubr.bf16.gmra.mrb[0].mxu0 %v812
  %v919 = vpop.f32.mrb[0].mxu0
  %v920 = vadd.f32 %v819, %v919
  %v921 = vpop.f32.mrb[0].mxu0
  %v922 = vpop.f32.mrb[0].mxu0
  %v923 = vadd.f32 %v819, %v922
  %v924 = vpop.f32.mrb[0].mxu0
  %925 = vmatprep.mubr.bf16.mxu0 0
  %926 = vmatmul.mubr.bf16.gmra.mrb[0].mxu0 %v813
  %v927 = vpop.f32.mrb[0].mxu0
  %v928 = vadd.f32 %v819, %v927
  %v929 = vpop.f32.mrb[0].mxu0
  %v930 = vpop.f32.mrb[0].mxu0
  %v931 = vadd.f32 %v819, %v930
  %v932 = vpop.f32.mrb[0].mxu0
  %933 = vdwg.mxu0
  %v934 = vmax.f32 %v904, 0.0
  %v935 = vmax.f32 %v907, 0.0
  %v936 = vmax.f32 %v912, 0.0
  %v937 = vmax.f32 %v915, 0.0
  %v938 = vmax.f32 %v920, 0.0
  %v939 = vmax.f32 %v923, 0.0
  %v940 = vmax.f32 %v928, 0.0
  %v941 = vmax.f32 %v931, 0.0
  %v942 = vld [vmem:[%s11] sm:$0xff]
  %v943 = vld [vmem:[%s11 + $0x8] sm:$0xff]
  %v944 = vld [vmem:[%s11 + $0x10] sm:$0xff]
  %v945 = vld [vmem:[%s11 + $0x18] sm:$0xff]
  %v946 = vld [vmem:[%s11 + $0x20] sm:$0xff]
  %v947 = vld [vmem:[%s11 + $0x28] sm:$0xff]
  %v948 = vld [vmem:[%s11 + $0x30] sm:$0xff]
  %v949 = vld [vmem:[%s11 + $0x38] sm:$0xff]
  %951 = vset.pattern.permute.xlu0 0
  %952 = vperm.xlu0 %951, %v942
  %v953 = vpop.permute.xlu0 %952
  %956 = vset.pattern.permute.xlu0 0
  %957 = vperm.xlu0 %956, %v943
  %v958 = vpop.permute.xlu0 %957
  %961 = vset.pattern.permute.xlu0 0
  %962 = vperm.xlu0 %961, %v944
  %v963 = vpop.permute.xlu0 %962
  %966 = vset.pattern.permute.xlu0 0
  %967 = vperm.xlu0 %966, %v945
  %v968 = vpop.permute.xlu0 %967
  %971 = vset.pattern.permute.xlu0 0
  %972 = vperm.xlu0 %971, %v946
  %v973 = vpop.permute.xlu0 %972
  %976 = vset.pattern.permute.xlu0 0
  %977 = vperm.xlu0 %976, %v947
  %v978 = vpop.permute.xlu0 %977
  %981 = vset.pattern.permute.xlu0 0
  %982 = vperm.xlu0 %981, %v948
  %v983 = vpop.permute.xlu0 %982
  %986 = vset.pattern.permute.xlu0 0
  %987 = vperm.xlu0 %986, %v949
  %v988 = vpop.permute.xlu0 %987
  %v990 = vmul.f32 %v934, %v953
  %v991 = vmul.f32 %v935, %v958
  %v992 = vmul.f32 %v936, %v963
  %v993 = vmul.f32 %v937, %v968
  %v994 = vmul.f32 %v938, %v973
  %v995 = vmul.f32 %v939, %v978
  %v996 = vmul.f32 %v940, %v983
  %v997 = vmul.f32 %v941, %v988
  %s998 = scalar_lea.vmem %s4, 32
  %v999 = vld [vmem:[%s998] sm:$0xf]
  %v1000 = vld [vmem:[%s998 + $0x4] sm:$0xf]
  %v1001 = vld [vmem:[%s998 + $0x8] sm:$0xf]
  %v1002 = vld [vmem:[%s998 + $0xc] sm:$0xf]
  %v1003 = vld [vmem:[%s998 + $0x10] sm:$0xf]
  %v1004 = vld [vmem:[%s998 + $0x14] sm:$0xf]
  %v1005 = vld [vmem:[%s998 + $0x18] sm:$0xf]
  %v1006 = vld [vmem:[%s998 + $0x1c] sm:$0xf]
  %v1007 = vpack.c.bf16 %v991, %v990
  %v1008 = vpack.c.bf16 %v993, %v992
  %v1009 = vpack.c.bf16 %v995, %v994
  %v1010 = vpack.c.bf16 %v997, %v996
  %v1019 = vunpack.c.l.b16 %v999
  %v1020 = vunpack.c.l.b16 %v1000
  %v1021 = vunpack.c.l.b16 %v1001
  %v1022 = vunpack.c.l.b16 %v1002
  %v1023 = vunpack.c.l.b16 %v1003
  %v1024 = vunpack.c.l.b16 %v1004
  %v1025 = vunpack.c.l.b16 %v1005
  %v1026 = vunpack.c.l.b16 %v1006
  %v1027 = vpack.c.b16 %v1020, %v1019
  %v1028 = vpack.c.b16 %v1022, %v1021
  %v1029 = vpack.c.b16 %v1024, %v1023
  %v1030 = vpack.c.b16 %v1026, %v1025
  %v1032 = vsel %vm322, %v1027, 0
  %v1035 = vsel %vm322, %v1028, 0
  %v1038 = vsel %vm322, %v1029, 0
  %v1041 = vsel %vm322, %v1030, 0
  %1043 = vmatprep.subr.bf16.mxu0 0
  %1044 = vmatpush1.bf16.msra.mxu0 %v1007
  %1045 = vmatprep.subr.bf16.mxu0 0
  %1046 = vmatpush1.bf16.msra.mxu0 %v1008
  %1047 = vmatprep.subr.bf16.mxu0 0
  %1048 = vmatpush1.bf16.msra.mxu0 %v1009
  %1049 = vmatprep.subr.bf16.mxu0 0
  %1050 = vmatpush1.bf16.msra.mxu0 %v1010
  %1051 = vmatprep.subr.bf16.mxu0 0
  %1052 = vmatpush1.bf16.msra.mxu0 0
  %1053 = vmatprep.subr.bf16.mxu0 0
  %1054 = vmatpush1.bf16.msra.mxu0 0
  %1055 = vmatprep.subr.bf16.mxu0 0
  %1056 = vmatpush1.bf16.msra.mxu0 0
  %1057 = vmatprep.subr.bf16.mxu0 0
  %1058 = vmatpush1.bf16.msra.mxu0 0
  %1059 = vmatprep.subr.bf16.mxu0 0
  %1060 = vmatpush1.bf16.msra.mxu0 0
  %1061 = vmatprep.subr.bf16.mxu0 0
  %1062 = vmatpush1.bf16.msra.mxu0 0
  %1063 = vmatprep.subr.bf16.mxu0 0
  %1064 = vmatpush1.bf16.msra.mxu0 0
  %1065 = vmatprep.subr.bf16.mxu0 0
  %1066 = vmatpush1.bf16.msra.mxu0 0
  %1067 = vmatprep.subr.bf16.mxu0 0
  %1068 = vmatpush1.bf16.msra.mxu0 0
  %1069 = vmatprep.subr.bf16.mxu0 0
  %1070 = vmatpush1.bf16.msra.mxu0 0
  %1071 = vmatprep.subr.bf16.mxu0 0
  %1072 = vmatpush1.bf16.msra.mxu0 0
  %1073 = vmatprep.subr.bf16.mxu0 0
  %1074 = vmatpush1.bf16.msra.mxu0 0
  %1075 = vmatprep.mubr.bf16.mxu0 0
  %1076 = vmatmul.mubr.bf16.gmra.mrb[0].mxu0 %v1032
  %v1077 = vpop.f32.mrb[0].mxu0
  %v1078 = vadd.f32 0.0, %v1077
  %v1079 = vpop.f32.mrb[0].mxu0
  %v1080 = vpop.f32.mrb[0].mxu0
  %v1081 = vadd.f32 0.0, %v1080
  %v1082 = vpop.f32.mrb[0].mxu0
  %1083 = vmatprep.mubr.bf16.mxu0 0
  %1084 = vmatmul.mubr.bf16.gmra.mrb[0].mxu0 %v1035
  %v1085 = vpop.f32.mrb[0].mxu0
  %v1086 = vadd.f32 0.0, %v1085
  %v1087 = vpop.f32.mrb[0].mxu0
  %v1088 = vpop.f32.mrb[0].mxu0
  %v1089 = vadd.f32 0.0, %v1088
  %v1090 = vpop.f32.mrb[0].mxu0
  %1091 = vmatprep.mubr.bf16.mxu0 0
  %1092 = vmatmul.mubr.bf16.gmra.mrb[0].mxu0 %v1038
  %v1093 = vpop.f32.mrb[0].mxu0
  %v1094 = vadd.f32 0.0, %v1093
  %v1095 = vpop.f32.mrb[0].mxu0
  %v1096 = vpop.f32.mrb[0].mxu0
  %v1097 = vadd.f32 0.0, %v1096
  %v1098 = vpop.f32.mrb[0].mxu0
  %1099 = vmatprep.mubr.bf16.mxu0 0
  %1100 = vmatmul.mubr.bf16.gmra.mrb[0].mxu0 %v1041
  %v1101 = vpop.f32.mrb[0].mxu0
  %v1102 = vadd.f32 0.0, %v1101
  %v1103 = vpop.f32.mrb[0].mxu0
  %v1104 = vpop.f32.mrb[0].mxu0
  %v1105 = vadd.f32 0.0, %v1104
  %v1106 = vpop.f32.mrb[0].mxu0
  %1107 = vdwg.mxu0
  %s1108 = scalar_lea.vmem %s5, 32
  %v1109 = vld [vmem:[%s1108] sm:$0xf]
  %v1110 = vld [vmem:[%s1108 + $0x4] sm:$0xf]
  %v1111 = vld [vmem:[%s1108 + $0x8] sm:$0xf]
  %v1112 = vld [vmem:[%s1108 + $0xc] sm:$0xf]
  %v1113 = vld [vmem:[%s1108 + $0x10] sm:$0xf]
  %v1114 = vld [vmem:[%s1108 + $0x14] sm:$0xf]
  %v1115 = vld [vmem:[%s1108 + $0x18] sm:$0xf]
  %v1116 = vld [vmem:[%s1108 + $0x1c] sm:$0xf]
  %v1125 = vunpack.c.l.b16 %v1109
  %v1126 = vunpack.c.l.b16 %v1110
  %v1127 = vunpack.c.l.b16 %v1111
  %v1128 = vunpack.c.l.b16 %v1112
  %v1129 = vunpack.c.l.b16 %v1113
  %v1130 = vunpack.c.l.b16 %v1114
  %v1131 = vunpack.c.l.b16 %v1115
  %v1132 = vunpack.c.l.b16 %v1116
  %v1133 = vpack.c.b16 %v1126, %v1125
  %v1134 = vpack.c.b16 %v1128, %v1127
  %v1135 = vpack.c.b16 %v1130, %v1129
  %v1136 = vpack.c.b16 %v1132, %v1131
  %v1138 = vsel %vm322, %v1133, 0
  %v1141 = vsel %vm322, %v1134, 0
  %v1144 = vsel %vm322, %v1135, 0
  %v1147 = vsel %vm322, %v1136, 0
  %1149 = vmatprep.subr.bf16.mxu0 0
  %1150 = vmatpush1.bf16.msra.mxu0 %v1007
  %1151 = vmatprep.subr.bf16.mxu0 0
  %1152 = vmatpush1.bf16.msra.mxu0 %v1008
  %1153 = vmatprep.subr.bf16.mxu0 0
  %1154 = vmatpush1.bf16.msra.mxu0 %v1009
  %1155 = vmatprep.subr.bf16.mxu0 0
  %1156 = vmatpush1.bf16.msra.mxu0 %v1010
  %1157 = vmatprep.subr.bf16.mxu0 0
  %1158 = vmatpush1.bf16.msra.mxu0 0
  %1159 = vmatprep.subr.bf16.mxu0 0
  %1160 = vmatpush1.bf16.msra.mxu0 0
  %1161 = vmatprep.subr.bf16.mxu0 0
  %1162 = vmatpush1.bf16.msra.mxu0 0
  %1163 = vmatprep.subr.bf16.mxu0 0
  %1164 = vmatpush1.bf16.msra.mxu0 0
  %1165 = vmatprep.subr.bf16.mxu0 0
  %1166 = vmatpush1.bf16.msra.mxu0 0
  %1167 = vmatprep.subr.bf16.mxu0 0
  %1168 = vmatpush1.bf16.msra.mxu0 0
  %1169 = vmatprep.subr.bf16.mxu0 0
  %1170 = vmatpush1.bf16.msra.mxu0 0
  %1171 = vmatprep.subr.bf16.mxu0 0
  %1172 = vmatpush1.bf16.msra.mxu0 0
  %1173 = vmatprep.subr.bf16.mxu0 0
  %1174 = vmatpush1.bf16.msra.mxu0 0
  %1175 = vmatprep.subr.bf16.mxu0 0
  %1176 = vmatpush1.bf16.msra.mxu0 0
  %1177 = vmatprep.subr.bf16.mxu0 0
  %1178 = vmatpush1.bf16.msra.mxu0 0
  %1179 = vmatprep.subr.bf16.mxu0 0
  %1180 = vmatpush1.bf16.msra.mxu0 0
  %1181 = vmatprep.mubr.bf16.mxu0 0
  %1182 = vmatmul.mubr.bf16.gmra.mrb[0].mxu0 %v1138
  %v1183 = vpop.f32.mrb[0].mxu0
  %v1184 = vadd.f32 0.0, %v1183
  %v1185 = vpop.f32.mrb[0].mxu0
  %v1186 = vpop.f32.mrb[0].mxu0
  %v1187 = vadd.f32 0.0, %v1186
  %v1188 = vpop.f32.mrb[0].mxu0
  %1189 = vmatprep.mubr.bf16.mxu0 0
  %1190 = vmatmul.mubr.bf16.gmra.mrb[0].mxu0 %v1141
  %v1191 = vpop.f32.mrb[0].mxu0
  %v1192 = vadd.f32 0.0, %v1191
  %v1193 = vpop.f32.mrb[0].mxu0
  %v1194 = vpop.f32.mrb[0].mxu0
  %v1195 = vadd.f32 0.0, %v1194
  %v1196 = vpop.f32.mrb[0].mxu0
  %1197 = vmatprep.mubr.bf16.mxu0 0
  %1198 = vmatmul.mubr.bf16.gmra.mrb[0].mxu0 %v1144
  %v1199 = vpop.f32.mrb[0].mxu0
  %v1200 = vadd.f32 0.0, %v1199
  %v1201 = vpop.f32.mrb[0].mxu0
  %v1202 = vpop.f32.mrb[0].mxu0
  %v1203 = vadd.f32 0.0, %v1202
  %v1204 = vpop.f32.mrb[0].mxu0
  %1205 = vmatprep.mubr.bf16.mxu0 0
  %1206 = vmatmul.mubr.bf16.gmra.mrb[0].mxu0 %v1147
  %v1207 = vpop.f32.mrb[0].mxu0
  %v1208 = vadd.f32 0.0, %v1207
  %v1209 = vpop.f32.mrb[0].mxu0
  %v1210 = vpop.f32.mrb[0].mxu0
  %v1211 = vadd.f32 0.0, %v1210
  %v1212 = vpop.f32.mrb[0].mxu0
  %1213 = vdwg.mxu0
  %s1214 = scalar_lea.vmem %s6, 64
  %v1215 = vld [vmem:[%s1214] sm:$0xf]
  %v1216 = vld [vmem:[%s1214 + $0x4] sm:$0xf]
  %v1217 = vld [vmem:[%s1214 + $0x8] sm:$0xf]
  %v1218 = vld [vmem:[%s1214 + $0xc] sm:$0xf]
  %v1219 = vld [vmem:[%s1214 + $0x10] sm:$0xf]
  %v1220 = vld [vmem:[%s1214 + $0x14] sm:$0xf]
  %v1221 = vld [vmem:[%s1214 + $0x18] sm:$0xf]
  %v1222 = vld [vmem:[%s1214 + $0x1c] sm:$0xf]
  %v1223 = vld [vmem:[%s1214 + $0x20] sm:$0xf]
  %v1224 = vld [vmem:[%s1214 + $0x24] sm:$0xf]
  %v1225 = vld [vmem:[%s1214 + $0x28] sm:$0xf]
  %v1226 = vld [vmem:[%s1214 + $0x2c] sm:$0xf]
  %v1227 = vld [vmem:[%s1214 + $0x30] sm:$0xf]
  %v1228 = vld [vmem:[%s1214 + $0x34] sm:$0xf]
  %v1229 = vld [vmem:[%s1214 + $0x38] sm:$0xf]
  %v1230 = vld [vmem:[%s1214 + $0x3c] sm:$0xf]
  %v1231 = vpack.c.bf16 %v1081, %v1078
  %v1232 = vpack.c.bf16 %v1089, %v1086
  %v1233 = vpack.c.bf16 %v1097, %v1094
  %v1234 = vpack.c.bf16 %v1105, %v1102
  %s1235 = scalar_lea.vmem %s7, 64
  %v1236 = vld [vmem:[%s1235] sm:$0xf]
  %v1237 = vld [vmem:[%s1235 + $0x4] sm:$0xf]
  %v1238 = vld [vmem:[%s1235 + $0x8] sm:$0xf]
  %v1239 = vld [vmem:[%s1235 + $0xc] sm:$0xf]
  %v1240 = vld [vmem:[%s1235 + $0x10] sm:$0xf]
  %v1241 = vld [vmem:[%s1235 + $0x14] sm:$0xf]
  %v1242 = vld [vmem:[%s1235 + $0x18] sm:$0xf]
  %v1243 = vld [vmem:[%s1235 + $0x1c] sm:$0xf]
  %v1244 = vld [vmem:[%s1235 + $0x20] sm:$0xf]
  %v1245 = vld [vmem:[%s1235 + $0x24] sm:$0xf]
  %v1246 = vld [vmem:[%s1235 + $0x28] sm:$0xf]
  %v1247 = vld [vmem:[%s1235 + $0x2c] sm:$0xf]
  %v1248 = vld [vmem:[%s1235 + $0x30] sm:$0xf]
  %v1249 = vld [vmem:[%s1235 + $0x34] sm:$0xf]
  %v1250 = vld [vmem:[%s1235 + $0x38] sm:$0xf]
  %v1251 = vld [vmem:[%s1235 + $0x3c] sm:$0xf]
  %v1252 = vpack.c.bf16 %v1187, %v1184
  %v1253 = vpack.c.bf16 %v1195, %v1192
  %v1254 = vpack.c.bf16 %v1203, %v1200
  %v1255 = vpack.c.bf16 %v1211, %v1208
  %v1272 = vunpack.c.l.b16 %v1236
  %v1273 = vunpack.c.l.b16 %v1237
  %v1274 = vunpack.c.l.b16 %v1238
  %v1275 = vunpack.c.l.b16 %v1239
  %v1276 = vunpack.c.l.b16 %v1240
  %v1277 = vunpack.c.l.b16 %v1241
  %v1278 = vunpack.c.l.b16 %v1242
  %v1279 = vunpack.c.l.b16 %v1243
  %v1280 = vunpack.c.l.b16 %v1244
  %v1281 = vunpack.c.l.b16 %v1245
  %v1282 = vunpack.c.l.b16 %v1246
  %v1283 = vunpack.c.l.b16 %v1247
  %v1284 = vunpack.c.l.b16 %v1248
  %v1285 = vunpack.c.l.b16 %v1249
  %v1286 = vunpack.c.l.b16 %v1250
  %v1287 = vunpack.c.l.b16 %v1251
  %v1288 = vpack.c.b16 %v1273, %v1272
  %v1289 = vpack.c.b16 %v1275, %v1274
  %v1290 = vpack.c.b16 %v1277, %v1276
  %v1291 = vpack.c.b16 %v1279, %v1278
  %v1292 = vpack.c.b16 %v1281, %v1280
  %v1293 = vpack.c.b16 %v1283, %v1282
  %v1294 = vpack.c.b16 %v1285, %v1284
  %v1295 = vpack.c.b16 %v1287, %v1286
  %1304 = vmatprep.subr.bf16.mxu0 0
  %1305 = vmatpush1.bf16.msra.mxu0 %v1288
  %1306 = vmatprep.subr.bf16.mxu0 0
  %1307 = vmatpush1.bf16.msra.mxu0 %v1289
  %1308 = vmatprep.subr.bf16.mxu0 0
  %1309 = vmatpush1.bf16.msra.mxu0 %v1290
  %1310 = vmatprep.subr.bf16.mxu0 0
  %1311 = vmatpush1.bf16.msra.mxu0 %v1291
  %1312 = vmatprep.subr.bf16.mxu0 0
  %1313 = vmatpush1.bf16.msra.mxu0 %v1292
  %1314 = vmatprep.subr.bf16.mxu0 0
  %1315 = vmatpush1.bf16.msra.mxu0 %v1293
  %1316 = vmatprep.subr.bf16.mxu0 0
  %1317 = vmatpush1.bf16.msra.mxu0 %v1294
  %1318 = vmatprep.subr.bf16.mxu0 0
  %1319 = vmatpush1.bf16.msra.mxu0 %v1295
  %1320 = vmatprep.subr.bf16.mxu0 0
  %1321 = vmatpush1.bf16.msra.mxu0 0
  %1322 = vmatprep.subr.bf16.mxu0 0
  %1323 = vmatpush1.bf16.msra.mxu0 0
  %1324 = vmatprep.subr.bf16.mxu0 0
  %1325 = vmatpush1.bf16.msra.mxu0 0
  %1326 = vmatprep.subr.bf16.mxu0 0
  %1327 = vmatpush1.bf16.msra.mxu0 0
  %1328 = vmatprep.subr.bf16.mxu0 0
  %1329 = vmatpush1.bf16.msra.mxu0 0
  %1330 = vmatprep.subr.bf16.mxu0 0
  %1331 = vmatpush1.bf16.msra.mxu0 0
  %1332 = vmatprep.subr.bf16.mxu0 0
  %1333 = vmatpush1.bf16.msra.mxu0 0
  %1334 = vmatprep.subr.bf16.mxu0 0
  %1335 = vmatpush1.bf16.msra.mxu0 0
  %1336 = vmatprep.mubr.bf16.mxu0 0
  %1337 = vmatmul.mubr.bf16.gmra.mrb[0].mxu0 %v1252
  %v1338 = vpop.f32.mrb[0].mxu0
  %v1339 = vadd.f32 0.0, %v1338
  %v1340 = vpop.f32.mrb[0].mxu0
  %v1341 = vpop.f32.mrb[0].mxu0
  %v1342 = vadd.f32 0.0, %v1341
  %v1343 = vpop.f32.mrb[0].mxu0
  %1344 = vmatprep.mubr.bf16.mxu0 0
  %1345 = vmatmul.mubr.bf16.gmra.mrb[0].mxu0 %v1253
  %v1346 = vpop.f32.mrb[0].mxu0
  %v1347 = vadd.f32 0.0, %v1346
  %v1348 = vpop.f32.mrb[0].mxu0
  %v1349 = vpop.f32.mrb[0].mxu0
  %v1350 = vadd.f32 0.0, %v1349
  %v1351 = vpop.f32.mrb[0].mxu0
  %1352 = vmatprep.mubr.bf16.mxu0 0
  %1353 = vmatmul.mubr.bf16.gmra.mrb[0].mxu0 %v1254
  %v1354 = vpop.f32.mrb[0].mxu0
  %v1355 = vadd.f32 0.0, %v1354
  %v1356 = vpop.f32.mrb[0].mxu0
  %v1357 = vpop.f32.mrb[0].mxu0
  %v1358 = vadd.f32 0.0, %v1357
  %v1359 = vpop.f32.mrb[0].mxu0
  %1360 = vmatprep.mubr.bf16.mxu0 0
  %1361 = vmatmul.mubr.bf16.gmra.mrb[0].mxu0 %v1255
  %v1362 = vpop.f32.mrb[0].mxu0
  %v1363 = vadd.f32 0.0, %v1362
  %v1364 = vpop.f32.mrb[0].mxu0
  %v1365 = vpop.f32.mrb[0].mxu0
  %v1366 = vadd.f32 0.0, %v1365
  %v1367 = vpop.f32.mrb[0].mxu0
  %1368 = vdwg.mxu0
  %v1385 = vunpack.c.l.b16 %v1215
  %v1386 = vunpack.c.l.b16 %v1216
  %v1387 = vunpack.c.l.b16 %v1217
  %v1388 = vunpack.c.l.b16 %v1218
  %v1389 = vunpack.c.l.b16 %v1219
  %v1390 = vunpack.c.l.b16 %v1220
  %v1391 = vunpack.c.l.b16 %v1221
  %v1392 = vunpack.c.l.b16 %v1222
  %v1393 = vunpack.c.l.b16 %v1223
  %v1394 = vunpack.c.l.b16 %v1224
  %v1395 = vunpack.c.l.b16 %v1225
  %v1396 = vunpack.c.l.b16 %v1226
  %v1397 = vunpack.c.l.b16 %v1227
  %v1398 = vunpack.c.l.b16 %v1228
  %v1399 = vunpack.c.l.b16 %v1229
  %v1400 = vunpack.c.l.b16 %v1230
  %v1401 = vpack.c.b16 %v1386, %v1385
  %v1402 = vpack.c.b16 %v1388, %v1387
  %v1403 = vpack.c.b16 %v1390, %v1389
  %v1404 = vpack.c.b16 %v1392, %v1391
  %v1405 = vpack.c.b16 %v1394, %v1393
  %v1406 = vpack.c.b16 %v1396, %v1395
  %v1407 = vpack.c.b16 %v1398, %v1397
  %v1408 = vpack.c.b16 %v1400, %v1399
  %1417 = vmatprep.subr.bf16.mxu0 0
  %1418 = vmatpush1.bf16.msra.mxu0 %v1401
  %1419 = vmatprep.subr.bf16.mxu0 0
  %1420 = vmatpush1.bf16.msra.mxu0 %v1402
  %1421 = vmatprep.subr.bf16.mxu0 0
  %1422 = vmatpush1.bf16.msra.mxu0 %v1403
  %1423 = vmatprep.subr.bf16.mxu0 0
  %1424 = vmatpush1.bf16.msra.mxu0 %v1404
  %1425 = vmatprep.subr.bf16.mxu0 0
  %1426 = vmatpush1.bf16.msra.mxu0 %v1405
  %1427 = vmatprep.subr.bf16.mxu0 0
  %1428 = vmatpush1.bf16.msra.mxu0 %v1406
  %1429 = vmatprep.subr.bf16.mxu0 0
  %1430 = vmatpush1.bf16.msra.mxu0 %v1407
  %1431 = vmatprep.subr.bf16.mxu0 0
  %1432 = vmatpush1.bf16.msra.mxu0 %v1408
  %1433 = vmatprep.subr.bf16.mxu0 0
  %1434 = vmatpush1.bf16.msra.mxu0 0
  %1435 = vmatprep.subr.bf16.mxu0 0
  %1436 = vmatpush1.bf16.msra.mxu0 0
  %1437 = vmatprep.subr.bf16.mxu0 0
  %1438 = vmatpush1.bf16.msra.mxu0 0
  %1439 = vmatprep.subr.bf16.mxu0 0
  %1440 = vmatpush1.bf16.msra.mxu0 0
  %1441 = vmatprep.subr.bf16.mxu0 0
  %1442 = vmatpush1.bf16.msra.mxu0 0
  %1443 = vmatprep.subr.bf16.mxu0 0
  %1444 = vmatpush1.bf16.msra.mxu0 0
  %1445 = vmatprep.subr.bf16.mxu0 0
  %1446 = vmatpush1.bf16.msra.mxu0 0
  %1447 = vmatprep.subr.bf16.mxu0 0
  %1448 = vmatpush1.bf16.msra.mxu0 0
  %1449 = vmatprep.mubr.bf16.mxu0 0
  %1450 = vmatmul.mubr.bf16.gmra.mrb[0].mxu0 %v1231
  %v1451 = vpop.f32.mrb[0].mxu0
  %v1452 = vadd.f32 %v1339, %v1451
  %v1453 = vpop.f32.mrb[0].mxu0
  %v1454 = vpop.f32.mrb[0].mxu0
  %v1455 = vadd.f32 %v1342, %v1454
  %v1456 = vpop.f32.mrb[0].mxu0
  %1457 = vmatprep.mubr.bf16.mxu0 0
  %1458 = vmatmul.mubr.bf16.gmra.mrb[0].mxu0 %v1232
  %v1459 = vpop.f32.mrb[0].mxu0
  %v1460 = vadd.f32 %v1347, %v1459
  %v1461 = vpop.f32.mrb[0].mxu0
  %v1462 = vpop.f32.mrb[0].mxu0
  %v1463 = vadd.f32 %v1350, %v1462
  %v1464 = vpop.f32.mrb[0].mxu0
  %1465 = vmatprep.mubr.bf16.mxu0 0
  %1466 = vmatmul.mubr.bf16.gmra.mrb[0].mxu0 %v1233
  %v1467 = vpop.f32.mrb[0].mxu0
  %v1468 = vadd.f32 %v1355, %v1467
  %v1469 = vpop.f32.mrb[0].mxu0
  %v1470 = vpop.f32.mrb[0].mxu0
  %v1471 = vadd.f32 %v1358, %v1470
  %v1472 = vpop.f32.mrb[0].mxu0
  %1473 = vmatprep.mubr.bf16.mxu0 0
  %1474 = vmatmul.mubr.bf16.gmra.mrb[0].mxu0 %v1234
  %v1475 = vpop.f32.mrb[0].mxu0
  %v1476 = vadd.f32 %v1363, %v1475
  %v1477 = vpop.f32.mrb[0].mxu0
  %v1478 = vpop.f32.mrb[0].mxu0
  %v1479 = vadd.f32 %v1366, %v1478
  %v1480 = vpop.f32.mrb[0].mxu0
  %1481 = vdwg.mxu0
  %s1482 = scalar_lea.vmem %s8, 1
  %v1483 = vld [vmem:[%s1482] sm:$0x1]
  %v1485 = vlaneseq
  %v1486 = vshrl.u32 %v1485, 7
  %v1487 = vsub.s32 0, %v1486
  %v1488 = vrot.slane %v1483, %v1487
  %v1490 = vadd.f32 %v1452, %v1488
  %v1491 = vadd.f32 %v1455, %v1488
  %v1492 = vadd.f32 %v1460, %v1488
  %v1493 = vadd.f32 %v1463, %v1488
  %v1494 = vadd.f32 %v1468, %v1488
  %v1495 = vadd.f32 %v1471, %v1488
  %v1496 = vadd.f32 %v1476, %v1488
  %v1497 = vadd.f32 %v1479, %v1488
  %v1498 = vmax.f32 %v1490, 0.0
  %v1499 = vmax.f32 %v1491, 0.0
  %v1500 = vmax.f32 %v1492, 0.0
  %v1501 = vmax.f32 %v1493, 0.0
  %v1502 = vmax.f32 %v1494, 0.0
  %v1503 = vmax.f32 %v1495, 0.0
  %v1504 = vmax.f32 %v1496, 0.0
  %v1505 = vmax.f32 %v1497, 0.0
  %s1506 = scalar_lea.vmem %s9, 64
  %v1507 = vld [vmem:[%s1506] sm:$0xf]
  %v1508 = vld [vmem:[%s1506 + $0x4] sm:$0xf]
  %v1509 = vld [vmem:[%s1506 + $0x8] sm:$0xf]
  %v1510 = vld [vmem:[%s1506 + $0xc] sm:$0xf]
  %v1511 = vld [vmem:[%s1506 + $0x10] sm:$0xf]
  %v1512 = vld [vmem:[%s1506 + $0x14] sm:$0xf]
  %v1513 = vld [vmem:[%s1506 + $0x18] sm:$0xf]
  %v1514 = vld [vmem:[%s1506 + $0x1c] sm:$0xf]
  %v1515 = vld [vmem:[%s1506 + $0x20] sm:$0xf]
  %v1516 = vld [vmem:[%s1506 + $0x24] sm:$0xf]
  %v1517 = vld [vmem:[%s1506 + $0x28] sm:$0xf]
  %v1518 = vld [vmem:[%s1506 + $0x2c] sm:$0xf]
  %v1519 = vld [vmem:[%s1506 + $0x30] sm:$0xf]
  %v1520 = vld [vmem:[%s1506 + $0x34] sm:$0xf]
  %v1521 = vld [vmem:[%s1506 + $0x38] sm:$0xf]
  %v1522 = vld [vmem:[%s1506 + $0x3c] sm:$0xf]
  %v1523 = vpack.c.bf16 %v1499, %v1498
  %v1524 = vpack.c.bf16 %v1501, %v1500
  %v1525 = vpack.c.bf16 %v1503, %v1502
  %v1526 = vpack.c.bf16 %v1505, %v1504
  %s1527 = scalar_lea.vmem %s10, 1
  %v1528 = vld [vmem:[%s1527] sm:$0x1]
  %v1530 = vlaneseq
  %v1531 = vshrl.u32 %v1530, 7
  %v1532 = vsub.s32 0, %v1531
  %v1533 = vrot.slane %v1528, %v1532
  %v1551 = vunpack.c.l.b16 %v1507
  %v1552 = vunpack.c.l.b16 %v1508
  %v1553 = vunpack.c.l.b16 %v1509
  %v1554 = vunpack.c.l.b16 %v1510
  %v1555 = vunpack.c.l.b16 %v1511
  %v1556 = vunpack.c.l.b16 %v1512
  %v1557 = vunpack.c.l.b16 %v1513
  %v1558 = vunpack.c.l.b16 %v1514
  %v1559 = vunpack.c.l.b16 %v1515
  %v1560 = vunpack.c.l.b16 %v1516
  %v1561 = vunpack.c.l.b16 %v1517
  %v1562 = vunpack.c.l.b16 %v1518
  %v1563 = vunpack.c.l.b16 %v1519
  %v1564 = vunpack.c.l.b16 %v1520
  %v1565 = vunpack.c.l.b16 %v1521
  %v1566 = vunpack.c.l.b16 %v1522
  %v1567 = vpack.c.b16 %v1552, %v1551
  %v1568 = vpack.c.b16 %v1554, %v1553
  %v1569 = vpack.c.b16 %v1556, %v1555
  %v1570 = vpack.c.b16 %v1558, %v1557
  %v1571 = vpack.c.b16 %v1560, %v1559
  %v1572 = vpack.c.b16 %v1562, %v1561
  %v1573 = vpack.c.b16 %v1564, %v1563
  %v1574 = vpack.c.b16 %v1566, %v1565
  %1583 = vmatprep.subr.bf16.mxu0 0
  %1584 = vmatpush1.bf16.msra.mxu0 %v1567
  %1585 = vmatprep.subr.bf16.mxu0 0
  %1586 = vmatpush1.bf16.msra.mxu0 %v1568
  %1587 = vmatprep.subr.bf16.mxu0 0
  %1588 = vmatpush1.bf16.msra.mxu0 %v1569
  %1589 = vmatprep.subr.bf16.mxu0 0
  %1590 = vmatpush1.bf16.msra.mxu0 %v1570
  %1591 = vmatprep.subr.bf16.mxu0 0
  %1592 = vmatpush1.bf16.msra.mxu0 %v1571
  %1593 = vmatprep.subr.bf16.mxu0 0
  %1594 = vmatpush1.bf16.msra.mxu0 %v1572
  %1595 = vmatprep.subr.bf16.mxu0 0
  %1596 = vmatpush1.bf16.msra.mxu0 %v1573
  %1597 = vmatprep.subr.bf16.mxu0 0
  %1598 = vmatpush1.bf16.msra.mxu0 %v1574
  %1599 = vmatprep.subr.bf16.mxu0 0
  %1600 = vmatpush1.bf16.msra.mxu0 0
  %1601 = vmatprep.subr.bf16.mxu0 0
  %1602 = vmatpush1.bf16.msra.mxu0 0
  %1603 = vmatprep.subr.bf16.mxu0 0
  %1604 = vmatpush1.bf16.msra.mxu0 0
  %1605 = vmatprep.subr.bf16.mxu0 0
  %1606 = vmatpush1.bf16.msra.mxu0 0
  %1607 = vmatprep.subr.bf16.mxu0 0
  %1608 = vmatpush1.bf16.msra.mxu0 0
  %1609 = vmatprep.subr.bf16.mxu0 0
  %1610 = vmatpush1.bf16.msra.mxu0 0
  %1611 = vmatprep.subr.bf16.mxu0 0
  %1612 = vmatpush1.bf16.msra.mxu0 0
  %1613 = vmatprep.subr.bf16.mxu0 0
  %1614 = vmatpush1.bf16.msra.mxu0 0
  %1615 = vmatprep.mubr.bf16.mxu0 0
  %1616 = vmatmul.mubr.bf16.gmra.mrb[0].mxu0 %v1523
  %v1617 = vpop.f32.mrb[0].mxu0
  %v1618 = vadd.f32 %v1533, %v1617
  %v1619 = vpop.f32.mrb[0].mxu0
  %v1620 = vpop.f32.mrb[0].mxu0
  %v1621 = vadd.f32 %v1533, %v1620
  %v1622 = vpop.f32.mrb[0].mxu0
  %1623 = vmatprep.mubr.bf16.mxu0 0
  %1624 = vmatmul.mubr.bf16.gmra.mrb[0].mxu0 %v1524
  %v1625 = vpop.f32.mrb[0].mxu0
  %v1626 = vadd.f32 %v1533, %v1625
  %v1627 = vpop.f32.mrb[0].mxu0
  %v1628 = vpop.f32.mrb[0].mxu0
  %v1629 = vadd.f32 %v1533, %v1628
  %v1630 = vpop.f32.mrb[0].mxu0
  %1631 = vmatprep.mubr.bf16.mxu0 0
  %1632 = vmatmul.mubr.bf16.gmra.mrb[0].mxu0 %v1525
  %v1633 = vpop.f32.mrb[0].mxu0
  %v1634 = vadd.f32 %v1533, %v1633
  %v1635 = vpop.f32.mrb[0].mxu0
  %v1636 = vpop.f32.mrb[0].mxu0
  %v1637 = vadd.f32 %v1533, %v1636
  %v1638 = vpop.f32.mrb[0].mxu0
  %1639 = vmatprep.mubr.bf16.mxu0 0
  %1640 = vmatmul.mubr.bf16.gmra.mrb[0].mxu0 %v1526
  %v1641 = vpop.f32.mrb[0].mxu0
  %v1642 = vadd.f32 %v1533, %v1641
  %v1643 = vpop.f32.mrb[0].mxu0
  %v1644 = vpop.f32.mrb[0].mxu0
  %v1645 = vadd.f32 %v1533, %v1644
  %v1646 = vpop.f32.mrb[0].mxu0
  %1647 = vdwg.mxu0
  %v1648 = vmax.f32 %v1618, 0.0
  %v1649 = vmax.f32 %v1621, 0.0
  %v1650 = vmax.f32 %v1626, 0.0
  %v1651 = vmax.f32 %v1629, 0.0
  %v1652 = vmax.f32 %v1634, 0.0
  %v1653 = vmax.f32 %v1637, 0.0
  %v1654 = vmax.f32 %v1642, 0.0
  %v1655 = vmax.f32 %v1645, 0.0
  %s1656 = scalar_lea.vmem %s11, 64
  %v1657 = vld [vmem:[%s1656] sm:$0xff]
  %v1658 = vld [vmem:[%s1656 + $0x8] sm:$0xff]
  %v1659 = vld [vmem:[%s1656 + $0x10] sm:$0xff]
  %v1660 = vld [vmem:[%s1656 + $0x18] sm:$0xff]
  %v1661 = vld [vmem:[%s1656 + $0x20] sm:$0xff]
  %v1662 = vld [vmem:[%s1656 + $0x28] sm:$0xff]
  %v1663 = vld [vmem:[%s1656 + $0x30] sm:$0xff]
  %v1664 = vld [vmem:[%s1656 + $0x38] sm:$0xff]
  %1666 = vset.pattern.permute.xlu0 0
  %1667 = vperm.xlu0 %1666, %v1657
  %v1668 = vpop.permute.xlu0 %1667
  %1671 = vset.pattern.permute.xlu0 0
  %1672 = vperm.xlu0 %1671, %v1658
  %v1673 = vpop.permute.xlu0 %1672
  %1676 = vset.pattern.permute.xlu0 0
  %1677 = vperm.xlu0 %1676, %v1659
  %v1678 = vpop.permute.xlu0 %1677
  %1681 = vset.pattern.permute.xlu0 0
  %1682 = vperm.xlu0 %1681, %v1660
  %v1683 = vpop.permute.xlu0 %1682
  %1686 = vset.pattern.permute.xlu0 0
  %1687 = vperm.xlu0 %1686, %v1661
  %v1688 = vpop.permute.xlu0 %1687
  %1691 = vset.pattern.permute.xlu0 0
  %1692 = vperm.xlu0 %1691, %v1662
  %v1693 = vpop.permute.xlu0 %1692
  %1696 = vset.pattern.permute.xlu0 0
  %1697 = vperm.xlu0 %1696, %v1663
  %v1698 = vpop.permute.xlu0 %1697
  %1701 = vset.pattern.permute.xlu0 0
  %1702 = vperm.xlu0 %1701, %v1664
  %v1703 = vpop.permute.xlu0 %1702
  %v1705 = vmul.f32 %v1648, %v1668
  %v1706 = vmul.f32 %v1649, %v1673
  %v1707 = vmul.f32 %v1650, %v1678
  %v1708 = vmul.f32 %v1651, %v1683
  %v1709 = vmul.f32 %v1652, %v1688
  %v1710 = vmul.f32 %v1653, %v1693
  %v1711 = vmul.f32 %v1654, %v1698
  %v1712 = vmul.f32 %v1655, %v1703
  %s1713 = scalar_lea.vmem %s4, 64
  %v1714 = vld [vmem:[%s1713] sm:$0xf]
  %v1715 = vld [vmem:[%s1713 + $0x4] sm:$0xf]
  %v1716 = vld [vmem:[%s1713 + $0x8] sm:$0xf]
  %v1717 = vld [vmem:[%s1713 + $0xc] sm:$0xf]
  %v1718 = vld [vmem:[%s1713 + $0x10] sm:$0xf]
  %v1719 = vld [vmem:[%s1713 + $0x14] sm:$0xf]
  %v1720 = vld [vmem:[%s1713 + $0x18] sm:$0xf]
  %v1721 = vld [vmem:[%s1713 + $0x1c] sm:$0xf]
  %v1722 = vpack.c.bf16 %v1706, %v1705
  %v1723 = vpack.c.bf16 %v1708, %v1707
  %v1724 = vpack.c.bf16 %v1710, %v1709
  %v1725 = vpack.c.bf16 %v1712, %v1711
  %v1734 = vunpack.c.l.b16 %v1714
  %v1735 = vunpack.c.l.b16 %v1715
  %v1736 = vunpack.c.l.b16 %v1716
  %v1737 = vunpack.c.l.b16 %v1717
  %v1738 = vunpack.c.l.b16 %v1718
  %v1739 = vunpack.c.l.b16 %v1719
  %v1740 = vunpack.c.l.b16 %v1720
  %v1741 = vunpack.c.l.b16 %v1721
  %v1742 = vpack.c.b16 %v1735, %v1734
  %v1743 = vpack.c.b16 %v1737, %v1736
  %v1744 = vpack.c.b16 %v1739, %v1738
  %v1745 = vpack.c.b16 %v1741, %v1740
  %v1747 = vsel %vm322, %v1742, 0
  %v1750 = vsel %vm322, %v1743, 0
  %v1753 = vsel %vm322, %v1744, 0
  %v1756 = vsel %vm322, %v1745, 0
  %1758 = vmatprep.subr.bf16.mxu0 0
  %1759 = vmatpush1.bf16.msra.mxu0 %v1722
  %1760 = vmatprep.subr.bf16.mxu0 0
  %1761 = vmatpush1.bf16.msra.mxu0 %v1723
  %1762 = vmatprep.subr.bf16.mxu0 0
  %1763 = vmatpush1.bf16.msra.mxu0 %v1724
  %1764 = vmatprep.subr.bf16.mxu0 0
  %1765 = vmatpush1.bf16.msra.mxu0 %v1725
  %1766 = vmatprep.subr.bf16.mxu0 0
  %1767 = vmatpush1.bf16.msra.mxu0 0
  %1768 = vmatprep.subr.bf16.mxu0 0
  %1769 = vmatpush1.bf16.msra.mxu0 0
  %1770 = vmatprep.subr.bf16.mxu0 0
  %1771 = vmatpush1.bf16.msra.mxu0 0
  %1772 = vmatprep.subr.bf16.mxu0 0
  %1773 = vmatpush1.bf16.msra.mxu0 0
  %1774 = vmatprep.subr.bf16.mxu0 0
  %1775 = vmatpush1.bf16.msra.mxu0 0
  %1776 = vmatprep.subr.bf16.mxu0 0
  %1777 = vmatpush1.bf16.msra.mxu0 0
  %1778 = vmatprep.subr.bf16.mxu0 0
  %1779 = vmatpush1.bf16.msra.mxu0 0
  %1780 = vmatprep.subr.bf16.mxu0 0
  %1781 = vmatpush1.bf16.msra.mxu0 0
  %1782 = vmatprep.subr.bf16.mxu0 0
  %1783 = vmatpush1.bf16.msra.mxu0 0
  %1784 = vmatprep.subr.bf16.mxu0 0
  %1785 = vmatpush1.bf16.msra.mxu0 0
  %1786 = vmatprep.subr.bf16.mxu0 0
  %1787 = vmatpush1.bf16.msra.mxu0 0
  %1788 = vmatprep.subr.bf16.mxu0 0
  %1789 = vmatpush1.bf16.msra.mxu0 0
  %1790 = vmatprep.mubr.bf16.mxu0 0
  %1791 = vmatmul.mubr.bf16.gmra.mrb[0].mxu0 %v1747
  %v1792 = vpop.f32.mrb[0].mxu0
  %v1793 = vadd.f32 0.0, %v1792
  %v1794 = vpop.f32.mrb[0].mxu0
  %v1795 = vpop.f32.mrb[0].mxu0
  %v1796 = vadd.f32 0.0, %v1795
  %v1797 = vpop.f32.mrb[0].mxu0
  %1798 = vmatprep.mubr.bf16.mxu0 0
  %1799 = vmatmul.mubr.bf16.gmra.mrb[0].mxu0 %v1750
  %v1800 = vpop.f32.mrb[0].mxu0
  %v1801 = vadd.f32 0.0, %v1800
  %v1802 = vpop.f32.mrb[0].mxu0
  %v1803 = vpop.f32.mrb[0].mxu0
  %v1804 = vadd.f32 0.0, %v1803
  %v1805 = vpop.f32.mrb[0].mxu0
  %1806 = vmatprep.mubr.bf16.mxu0 0
  %1807 = vmatmul.mubr.bf16.gmra.mrb[0].mxu0 %v1753
  %v1808 = vpop.f32.mrb[0].mxu0
  %v1809 = vadd.f32 0.0, %v1808
  %v1810 = vpop.f32.mrb[0].mxu0
  %v1811 = vpop.f32.mrb[0].mxu0
  %v1812 = vadd.f32 0.0, %v1811
  %v1813 = vpop.f32.mrb[0].mxu0
  %1814 = vmatprep.mubr.bf16.mxu0 0
  %1815 = vmatmul.mubr.bf16.gmra.mrb[0].mxu0 %v1756
  %v1816 = vpop.f32.mrb[0].mxu0
  %v1817 = vadd.f32 0.0, %v1816
  %v1818 = vpop.f32.mrb[0].mxu0
  %v1819 = vpop.f32.mrb[0].mxu0
  %v1820 = vadd.f32 0.0, %v1819
  %v1821 = vpop.f32.mrb[0].mxu0
  %1822 = vdwg.mxu0
  %s1823 = scalar_lea.vmem %s5, 64
  %v1824 = vld [vmem:[%s1823] sm:$0xf]
  %v1825 = vld [vmem:[%s1823 + $0x4] sm:$0xf]
  %v1826 = vld [vmem:[%s1823 + $0x8] sm:$0xf]
  %v1827 = vld [vmem:[%s1823 + $0xc] sm:$0xf]
  %v1828 = vld [vmem:[%s1823 + $0x10] sm:$0xf]
  %v1829 = vld [vmem:[%s1823 + $0x14] sm:$0xf]
  %v1830 = vld [vmem:[%s1823 + $0x18] sm:$0xf]
  %v1831 = vld [vmem:[%s1823 + $0x1c] sm:$0xf]
  %v1840 = vunpack.c.l.b16 %v1824
  %v1841 = vunpack.c.l.b16 %v1825
  %v1842 = vunpack.c.l.b16 %v1826
  %v1843 = vunpack.c.l.b16 %v1827
  %v1844 = vunpack.c.l.b16 %v1828
  %v1845 = vunpack.c.l.b16 %v1829
  %v1846 = vunpack.c.l.b16 %v1830
  %v1847 = vunpack.c.l.b16 %v1831
  %v1848 = vpack.c.b16 %v1841, %v1840
  %v1849 = vpack.c.b16 %v1843, %v1842
  %v1850 = vpack.c.b16 %v1845, %v1844
  %v1851 = vpack.c.b16 %v1847, %v1846
  %v1853 = vsel %vm322, %v1848, 0
  %v1856 = vsel %vm322, %v1849, 0
  %v1859 = vsel %vm322, %v1850, 0
  %v1862 = vsel %vm322, %v1851, 0
  %1864 = vmatprep.subr.bf16.mxu0 0
  %1865 = vmatpush1.bf16.msra.mxu0 %v1722
  %1866 = vmatprep.subr.bf16.mxu0 0
  %1867 = vmatpush1.bf16.msra.mxu0 %v1723
  %1868 = vmatprep.subr.bf16.mxu0 0
  %1869 = vmatpush1.bf16.msra.mxu0 %v1724
  %1870 = vmatprep.subr.bf16.mxu0 0
  %1871 = vmatpush1.bf16.msra.mxu0 %v1725
  %1872 = vmatprep.subr.bf16.mxu0 0
  %1873 = vmatpush1.bf16.msra.mxu0 0
  %1874 = vmatprep.subr.bf16.mxu0 0
  %1875 = vmatpush1.bf16.msra.mxu0 0
  %1876 = vmatprep.subr.bf16.mxu0 0
  %1877 = vmatpush1.bf16.msra.mxu0 0
  %1878 = vmatprep.subr.bf16.mxu0 0
  %1879 = vmatpush1.bf16.msra.mxu0 0
  %1880 = vmatprep.subr.bf16.mxu0 0
  %1881 = vmatpush1.bf16.msra.mxu0 0
  %1882 = vmatprep.subr.bf16.mxu0 0
  %1883 = vmatpush1.bf16.msra.mxu0 0
  %1884 = vmatprep.subr.bf16.mxu0 0
  %1885 = vmatpush1.bf16.msra.mxu0 0
  %1886 = vmatprep.subr.bf16.mxu0 0
  %1887 = vmatpush1.bf16.msra.mxu0 0
  %1888 = vmatprep.subr.bf16.mxu0 0
  %1889 = vmatpush1.bf16.msra.mxu0 0
  %1890 = vmatprep.subr.bf16.mxu0 0
  %1891 = vmatpush1.bf16.msra.mxu0 0
  %1892 = vmatprep.subr.bf16.mxu0 0
  %1893 = vmatpush1.bf16.msra.mxu0 0
  %1894 = vmatprep.subr.bf16.mxu0 0
  %1895 = vmatpush1.bf16.msra.mxu0 0
  %1896 = vmatprep.mubr.bf16.mxu0 0
  %1897 = vmatmul.mubr.bf16.gmra.mrb[0].mxu0 %v1853
  %v1898 = vpop.f32.mrb[0].mxu0
  %v1899 = vadd.f32 0.0, %v1898
  %v1900 = vpop.f32.mrb[0].mxu0
  %v1901 = vpop.f32.mrb[0].mxu0
  %v1902 = vadd.f32 0.0, %v1901
  %v1903 = vpop.f32.mrb[0].mxu0
  %1904 = vmatprep.mubr.bf16.mxu0 0
  %1905 = vmatmul.mubr.bf16.gmra.mrb[0].mxu0 %v1856
  %v1906 = vpop.f32.mrb[0].mxu0
  %v1907 = vadd.f32 0.0, %v1906
  %v1908 = vpop.f32.mrb[0].mxu0
  %v1909 = vpop.f32.mrb[0].mxu0
  %v1910 = vadd.f32 0.0, %v1909
  %v1911 = vpop.f32.mrb[0].mxu0
  %1912 = vmatprep.mubr.bf16.mxu0 0
  %1913 = vmatmul.mubr.bf16.gmra.mrb[0].mxu0 %v1859
  %v1914 = vpop.f32.mrb[0].mxu0
  %v1915 = vadd.f32 0.0, %v1914
  %v1916 = vpop.f32.mrb[0].mxu0
  %v1917 = vpop.f32.mrb[0].mxu0
  %v1918 = vadd.f32 0.0, %v1917
  %v1919 = vpop.f32.mrb[0].mxu0
  %1920 = vmatprep.mubr.bf16.mxu0 0
  %1921 = vmatmul.mubr.bf16.gmra.mrb[0].mxu0 %v1862
  %v1922 = vpop.f32.mrb[0].mxu0
  %v1923 = vadd.f32 0.0, %v1922
  %v1924 = vpop.f32.mrb[0].mxu0
  %v1925 = vpop.f32.mrb[0].mxu0
  %v1926 = vadd.f32 0.0, %v1925
  %v1927 = vpop.f32.mrb[0].mxu0
  %1928 = vdwg.mxu0
  %s1929 = scalar_lea.vmem %s6, 128
  %v1930 = vld [vmem:[%s1929] sm:$0xf]
  %v1931 = vld [vmem:[%s1929 + $0x4] sm:$0xf]
  %v1932 = vld [vmem:[%s1929 + $0x8] sm:$0xf]
  %v1933 = vld [vmem:[%s1929 + $0xc] sm:$0xf]
  %v1934 = vld [vmem:[%s1929 + $0x10] sm:$0xf]
  %v1935 = vld [vmem:[%s1929 + $0x14] sm:$0xf]
  %v1936 = vld [vmem:[%s1929 + $0x18] sm:$0xf]
  %v1937 = vld [vmem:[%s1929 + $0x1c] sm:$0xf]
  %v1938 = vld [vmem:[%s1929 + $0x20] sm:$0xf]
  %v1939 = vld [vmem:[%s1929 + $0x24] sm:$0xf]
  %v1940 = vld [vmem:[%s1929 + $0x28] sm:$0xf]
  %v1941 = vld [vmem:[%s1929 + $0x2c] sm:$0xf]
  %v1942 = vld [vmem:[%s1929 + $0x30] sm:$0xf]
  %v1943 = vld [vmem:[%s1929 + $0x34] sm:$0xf]
  %v1944 = vld [vmem:[%s1929 + $0x38] sm:$0xf]
  %v1945 = vld [vmem:[%s1929 + $0x3c] sm:$0xf]
  %v1946 = vpack.c.bf16 %v1796, %v1793
  %v1947 = vpack.c.bf16 %v1804, %v1801
  %v1948 = vpack.c.bf16 %v1812, %v1809
  %v1949 = vpack.c.bf16 %v1820, %v1817
  %s1950 = scalar_lea.vmem %s7, 128
  %v1951 = vld [vmem:[%s1950] sm:$0xf]
  %v1952 = vld [vmem:[%s1950 + $0x4] sm:$0xf]
  %v1953 = vld [vmem:[%s1950 + $0x8] sm:$0xf]
  %v1954 = vld [vmem:[%s1950 + $0xc] sm:$0xf]
  %v1955 = vld [vmem:[%s1950 + $0x10] sm:$0xf]
  %v1956 = vld [vmem:[%s1950 + $0x14] sm:$0xf]
  %v1957 = vld [vmem:[%s1950 + $0x18] sm:$0xf]
  %v1958 = vld [vmem:[%s1950 + $0x1c] sm:$0xf]
  %v1959 = vld [vmem:[%s1950 + $0x20] sm:$0xf]
  %v1960 = vld [vmem:[%s1950 + $0x24] sm:$0xf]
  %v1961 = vld [vmem:[%s1950 + $0x28] sm:$0xf]
  %v1962 = vld [vmem:[%s1950 + $0x2c] sm:$0xf]
  %v1963 = vld [vmem:[%s1950 + $0x30] sm:$0xf]
  %v1964 = vld [vmem:[%s1950 + $0x34] sm:$0xf]
  %v1965 = vld [vmem:[%s1950 + $0x38] sm:$0xf]
  %v1966 = vld [vmem:[%s1950 + $0x3c] sm:$0xf]
  %v1967 = vpack.c.bf16 %v1902, %v1899
  %v1968 = vpack.c.bf16 %v1910, %v1907
  %v1969 = vpack.c.bf16 %v1918, %v1915
  %v1970 = vpack.c.bf16 %v1926, %v1923
  %v1987 = vunpack.c.l.b16 %v1951
  %v1988 = vunpack.c.l.b16 %v1952
  %v1989 = vunpack.c.l.b16 %v1953
  %v1990 = vunpack.c.l.b16 %v1954
  %v1991 = vunpack.c.l.b16 %v1955
  %v1992 = vunpack.c.l.b16 %v1956
  %v1993 = vunpack.c.l.b16 %v1957
  %v1994 = vunpack.c.l.b16 %v1958
  %v1995 = vunpack.c.l.b16 %v1959
  %v1996 = vunpack.c.l.b16 %v1960
  %v1997 = vunpack.c.l.b16 %v1961
  %v1998 = vunpack.c.l.b16 %v1962
  %v1999 = vunpack.c.l.b16 %v1963
  %v2000 = vunpack.c.l.b16 %v1964
  %v2001 = vunpack.c.l.b16 %v1965
  %v2002 = vunpack.c.l.b16 %v1966
  %v2003 = vpack.c.b16 %v1988, %v1987
  %v2004 = vpack.c.b16 %v1990, %v1989
  %v2005 = vpack.c.b16 %v1992, %v1991
  %v2006 = vpack.c.b16 %v1994, %v1993
  %v2007 = vpack.c.b16 %v1996, %v1995
  %v2008 = vpack.c.b16 %v1998, %v1997
  %v2009 = vpack.c.b16 %v2000, %v1999
  %v2010 = vpack.c.b16 %v2002, %v2001
  %2019 = vmatprep.subr.bf16.mxu0 0
  %2020 = vmatpush1.bf16.msra.mxu0 %v2003
  %2021 = vmatprep.subr.bf16.mxu0 0
  %2022 = vmatpush1.bf16.msra.mxu0 %v2004
  %2023 = vmatprep.subr.bf16.mxu0 0
  %2024 = vmatpush1.bf16.msra.mxu0 %v2005
  %2025 = vmatprep.subr.bf16.mxu0 0
  %2026 = vmatpush1.bf16.msra.mxu0 %v2006
  %2027 = vmatprep.subr.bf16.mxu0 0
  %2028 = vmatpush1.bf16.msra.mxu0 %v2007
  %2029 = vmatprep.subr.bf16.mxu0 0
  %2030 = vmatpush1.bf16.msra.mxu0 %v2008
  %2031 = vmatprep.subr.bf16.mxu0 0
  %2032 = vmatpush1.bf16.msra.mxu0 %v2009
  %2033 = vmatprep.subr.bf16.mxu0 0
  %2034 = vmatpush1.bf16.msra.mxu0 %v2010
  %2035 = vmatprep.subr.bf16.mxu0 0
  %2036 = vmatpush1.bf16.msra.mxu0 0
  %2037 = vmatprep.subr.bf16.mxu0 0
  %2038 = vmatpush1.bf16.msra.mxu0 0
  %2039 = vmatprep.subr.bf16.mxu0 0
  %2040 = vmatpush1.bf16.msra.mxu0 0
  %2041 = vmatprep.subr.bf16.mxu0 0
  %2042 = vmatpush1.bf16.msra.mxu0 0
  %2043 = vmatprep.subr.bf16.mxu0 0
  %2044 = vmatpush1.bf16.msra.mxu0 0
  %2045 = vmatprep.subr.bf16.mxu0 0
  %2046 = vmatpush1.bf16.msra.mxu0 0
  %2047 = vmatprep.subr.bf16.mxu0 0
  %2048 = vmatpush1.bf16.msra.mxu0 0
  %2049 = vmatprep.subr.bf16.mxu0 0
  %2050 = vmatpush1.bf16.msra.mxu0 0
  %2051 = vmatprep.mubr.bf16.mxu0 0
  %2052 = vmatmul.mubr.bf16.gmra.mrb[0].mxu0 %v1967
  %v2053 = vpop.f32.mrb[0].mxu0
  %v2054 = vadd.f32 0.0, %v2053
  %v2055 = vpop.f32.mrb[0].mxu0
  %v2056 = vpop.f32.mrb[0].mxu0
  %v2057 = vadd.f32 0.0, %v2056
  %v2058 = vpop.f32.mrb[0].mxu0
  %2059 = vmatprep.mubr.bf16.mxu0 0
  %2060 = vmatmul.mubr.bf16.gmra.mrb[0].mxu0 %v1968
  %v2061 = vpop.f32.mrb[0].mxu0
  %v2062 = vadd.f32 0.0, %v2061
  %v2063 = vpop.f32.mrb[0].mxu0
  %v2064 = vpop.f32.mrb[0].mxu0
  %v2065 = vadd.f32 0.0, %v2064
  %v2066 = vpop.f32.mrb[0].mxu0
  %2067 = vmatprep.mubr.bf16.mxu0 0
  %2068 = vmatmul.mubr.bf16.gmra.mrb[0].mxu0 %v1969
  %v2069 = vpop.f32.mrb[0].mxu0
  %v2070 = vadd.f32 0.0, %v2069
  %v2071 = vpop.f32.mrb[0].mxu0
  %v2072 = vpop.f32.mrb[0].mxu0
  %v2073 = vadd.f32 0.0, %v2072
  %v2074 = vpop.f32.mrb[0].mxu0
  %2075 = vmatprep.mubr.bf16.mxu0 0
  %2076 = vmatmul.mubr.bf16.gmra.mrb[0].mxu0 %v1970
  %v2077 = vpop.f32.mrb[0].mxu0
  %v2078 = vadd.f32 0.0, %v2077
  %v2079 = vpop.f32.mrb[0].mxu0
  %v2080 = vpop.f32.mrb[0].mxu0
  %v2081 = vadd.f32 0.0, %v2080
  %v2082 = vpop.f32.mrb[0].mxu0
  %2083 = vdwg.mxu0
  %v2100 = vunpack.c.l.b16 %v1930
  %v2101 = vunpack.c.l.b16 %v1931
  %v2102 = vunpack.c.l.b16 %v1932
  %v2103 = vunpack.c.l.b16 %v1933
  %v2104 = vunpack.c.l.b16 %v1934
  %v2105 = vunpack.c.l.b16 %v1935
  %v2106 = vunpack.c.l.b16 %v1936
  %v2107 = vunpack.c.l.b16 %v1937
  %v2108 = vunpack.c.l.b16 %v1938
  %v2109 = vunpack.c.l.b16 %v1939
  %v2110 = vunpack.c.l.b16 %v1940
  %v2111 = vunpack.c.l.b16 %v1941
  %v2112 = vunpack.c.l.b16 %v1942
  %v2113 = vunpack.c.l.b16 %v1943
  %v2114 = vunpack.c.l.b16 %v1944
  %v2115 = vunpack.c.l.b16 %v1945
  %v2116 = vpack.c.b16 %v2101, %v2100
  %v2117 = vpack.c.b16 %v2103, %v2102
  %v2118 = vpack.c.b16 %v2105, %v2104
  %v2119 = vpack.c.b16 %v2107, %v2106
  %v2120 = vpack.c.b16 %v2109, %v2108
  %v2121 = vpack.c.b16 %v2111, %v2110
  %v2122 = vpack.c.b16 %v2113, %v2112
  %v2123 = vpack.c.b16 %v2115, %v2114
  %2132 = vmatprep.subr.bf16.mxu0 0
  %2133 = vmatpush1.bf16.msra.mxu0 %v2116
  %2134 = vmatprep.subr.bf16.mxu0 0
  %2135 = vmatpush1.bf16.msra.mxu0 %v2117
  %2136 = vmatprep.subr.bf16.mxu0 0
  %2137 = vmatpush1.bf16.msra.mxu0 %v2118
  %2138 = vmatprep.subr.bf16.mxu0 0
  %2139 = vmatpush1.bf16.msra.mxu0 %v2119
  %2140 = vmatprep.subr.bf16.mxu0 0
  %2141 = vmatpush1.bf16.msra.mxu0 %v2120
  %2142 = vmatprep.subr.bf16.mxu0 0
  %2143 = vmatpush1.bf16.msra.mxu0 %v2121
  %2144 = vmatprep.subr.bf16.mxu0 0
  %2145 = vmatpush1.bf16.msra.mxu0 %v2122
  %2146 = vmatprep.subr.bf16.mxu0 0
  %2147 = vmatpush1.bf16.msra.mxu0 %v2123
  %2148 = vmatprep.subr.bf16.mxu0 0
  %2149 = vmatpush1.bf16.msra.mxu0 0
  %2150 = vmatprep.subr.bf16.mxu0 0
  %2151 = vmatpush1.bf16.msra.mxu0 0
  %2152 = vmatprep.subr.bf16.mxu0 0
  %2153 = vmatpush1.bf16.msra.mxu0 0
  %2154 = vmatprep.subr.bf16.mxu0 0
  %2155 = vmatpush1.bf16.msra.mxu0 0
  %2156 = vmatprep.subr.bf16.mxu0 0
  %2157 = vmatpush1.bf16.msra.mxu0 0
  %2158 = vmatprep.subr.bf16.mxu0 0
  %2159 = vmatpush1.bf16.msra.mxu0 0
  %2160 = vmatprep.subr.bf16.mxu0 0
  %2161 = vmatpush1.bf16.msra.mxu0 0
  %2162 = vmatprep.subr.bf16.mxu0 0
  %2163 = vmatpush1.bf16.msra.mxu0 0
  %2164 = vmatprep.mubr.bf16.mxu0 0
  %2165 = vmatmul.mubr.bf16.gmra.mrb[0].mxu0 %v1946
  %v2166 = vpop.f32.mrb[0].mxu0
  %v2167 = vadd.f32 %v2054, %v2166
  %v2168 = vpop.f32.mrb[0].mxu0
  %v2169 = vpop.f32.mrb[0].mxu0
  %v2170 = vadd.f32 %v2057, %v2169
  %v2171 = vpop.f32.mrb[0].mxu0
  %2172 = vmatprep.mubr.bf16.mxu0 0
  %2173 = vmatmul.mubr.bf16.gmra.mrb[0].mxu0 %v1947
  %v2174 = vpop.f32.mrb[0].mxu0
  %v2175 = vadd.f32 %v2062, %v2174
  %v2176 = vpop.f32.mrb[0].mxu0
  %v2177 = vpop.f32.mrb[0].mxu0
  %v2178 = vadd.f32 %v2065, %v2177
  %v2179 = vpop.f32.mrb[0].mxu0
  %2180 = vmatprep.mubr.bf16.mxu0 0
  %2181 = vmatmul.mubr.bf16.gmra.mrb[0].mxu0 %v1948
  %v2182 = vpop.f32.mrb[0].mxu0
  %v2183 = vadd.f32 %v2070, %v2182
  %v2184 = vpop.f32.mrb[0].mxu0
  %v2185 = vpop.f32.mrb[0].mxu0
  %v2186 = vadd.f32 %v2073, %v2185
  %v2187 = vpop.f32.mrb[0].mxu0
  %2188 = vmatprep.mubr.bf16.mxu0 0
  %2189 = vmatmul.mubr.bf16.gmra.mrb[0].mxu0 %v1949
  %v2190 = vpop.f32.mrb[0].mxu0
  %v2191 = vadd.f32 %v2078, %v2190
  %v2192 = vpop.f32.mrb[0].mxu0
  %v2193 = vpop.f32.mrb[0].mxu0
  %v2194 = vadd.f32 %v2081, %v2193
  %v2195 = vpop.f32.mrb[0].mxu0
  %2196 = vdwg.mxu0
  %s2197 = scalar_lea.vmem %s8, 2
  %v2198 = vld [vmem:[%s2197] sm:$0x1]
  %v2200 = vlaneseq
  %v2201 = vshrl.u32 %v2200, 7
  %v2202 = vsub.s32 0, %v2201
  %v2203 = vrot.slane %v2198, %v2202
  %v2205 = vadd.f32 %v2167, %v2203
  %v2206 = vadd.f32 %v2170, %v2203
  %v2207 = vadd.f32 %v2175, %v2203
  %v2208 = vadd.f32 %v2178, %v2203
  %v2209 = vadd.f32 %v2183, %v2203
  %v2210 = vadd.f32 %v2186, %v2203
  %v2211 = vadd.f32 %v2191, %v2203
  %v2212 = vadd.f32 %v2194, %v2203
  %v2213 = vmax.f32 %v2205, 0.0
  %v2214 = vmax.f32 %v2206, 0.0
  %v2215 = vmax.f32 %v2207, 0.0
  %v2216 = vmax.f32 %v2208, 0.0
  %v2217 = vmax.f32 %v2209, 0.0
  %v2218 = vmax.f32 %v2210, 0.0
  %v2219 = vmax.f32 %v2211, 0.0
  %v2220 = vmax.f32 %v2212, 0.0
  %s2221 = scalar_lea.vmem %s9, 128
  %v2222 = vld [vmem:[%s2221] sm:$0xf]
  %v2223 = vld [vmem:[%s2221 + $0x4] sm:$0xf]
  %v2224 = vld [vmem:[%s2221 + $0x8] sm:$0xf]
  %v2225 = vld [vmem:[%s2221 + $0xc] sm:$0xf]
  %v2226 = vld [vmem:[%s2221 + $0x10] sm:$0xf]
  %v2227 = vld [vmem:[%s2221 + $0x14] sm:$0xf]
  %v2228 = vld [vmem:[%s2221 + $0x18] sm:$0xf]
  %v2229 = vld [vmem:[%s2221 + $0x1c] sm:$0xf]
  %v2230 = vld [vmem:[%s2221 + $0x20] sm:$0xf]
  %v2231 = vld [vmem:[%s2221 + $0x24] sm:$0xf]
  %v2232 = vld [vmem:[%s2221 + $0x28] sm:$0xf]
  %v2233 = vld [vmem:[%s2221 + $0x2c] sm:$0xf]
  %v2234 = vld [vmem:[%s2221 + $0x30] sm:$0xf]
  %v2235 = vld [vmem:[%s2221 + $0x34] sm:$0xf]
  %v2236 = vld [vmem:[%s2221 + $0x38] sm:$0xf]
  %v2237 = vld [vmem:[%s2221 + $0x3c] sm:$0xf]
  %v2238 = vpack.c.bf16 %v2214, %v2213
  %v2239 = vpack.c.bf16 %v2216, %v2215
  %v2240 = vpack.c.bf16 %v2218, %v2217
  %v2241 = vpack.c.bf16 %v2220, %v2219
  %s2242 = scalar_lea.vmem %s10, 2
  %v2243 = vld [vmem:[%s2242] sm:$0x1]
  %v2245 = vlaneseq
  %v2246 = vshrl.u32 %v2245, 7
  %v2247 = vsub.s32 0, %v2246
  %v2248 = vrot.slane %v2243, %v2247
  %v2266 = vunpack.c.l.b16 %v2222
  %v2267 = vunpack.c.l.b16 %v2223
  %v2268 = vunpack.c.l.b16 %v2224
  %v2269 = vunpack.c.l.b16 %v2225
  %v2270 = vunpack.c.l.b16 %v2226
  %v2271 = vunpack.c.l.b16 %v2227
  %v2272 = vunpack.c.l.b16 %v2228
  %v2273 = vunpack.c.l.b16 %v2229
  %v2274 = vunpack.c.l.b16 %v2230
  %v2275 = vunpack.c.l.b16 %v2231
  %v2276 = vunpack.c.l.b16 %v2232
  %v2277 = vunpack.c.l.b16 %v2233
  %v2278 = vunpack.c.l.b16 %v2234
  %v2279 = vunpack.c.l.b16 %v2235
  %v2280 = vunpack.c.l.b16 %v2236
  %v2281 = vunpack.c.l.b16 %v2237
  %v2282 = vpack.c.b16 %v2267, %v2266
  %v2283 = vpack.c.b16 %v2269, %v2268
  %v2284 = vpack.c.b16 %v2271, %v2270
  %v2285 = vpack.c.b16 %v2273, %v2272
  %v2286 = vpack.c.b16 %v2275, %v2274
  %v2287 = vpack.c.b16 %v2277, %v2276
  %v2288 = vpack.c.b16 %v2279, %v2278
  %v2289 = vpack.c.b16 %v2281, %v2280
  %2298 = vmatprep.subr.bf16.mxu0 0
  %2299 = vmatpush1.bf16.msra.mxu0 %v2282
  %2300 = vmatprep.subr.bf16.mxu0 0
  %2301 = vmatpush1.bf16.msra.mxu0 %v2283
  %2302 = vmatprep.subr.bf16.mxu0 0
  %2303 = vmatpush1.bf16.msra.mxu0 %v2284
  %2304 = vmatprep.subr.bf16.mxu0 0
  %2305 = vmatpush1.bf16.msra.mxu0 %v2285
  %2306 = vmatprep.subr.bf16.mxu0 0
  %2307 = vmatpush1.bf16.msra.mxu0 %v2286
  %2308 = vmatprep.subr.bf16.mxu0 0
  %2309 = vmatpush1.bf16.msra.mxu0 %v2287
  %2310 = vmatprep.subr.bf16.mxu0 0
  %2311 = vmatpush1.bf16.msra.mxu0 %v2288
  %2312 = vmatprep.subr.bf16.mxu0 0
  %2313 = vmatpush1.bf16.msra.mxu0 %v2289
  %2314 = vmatprep.subr.bf16.mxu0 0
  %2315 = vmatpush1.bf16.msra.mxu0 0
  %2316 = vmatprep.subr.bf16.mxu0 0
  %2317 = vmatpush1.bf16.msra.mxu0 0
  %2318 = vmatprep.subr.bf16.mxu0 0
  %2319 = vmatpush1.bf16.msra.mxu0 0
  %2320 = vmatprep.subr.bf16.mxu0 0
  %2321 = vmatpush1.bf16.msra.mxu0 0
  %2322 = vmatprep.subr.bf16.mxu0 0
  %2323 = vmatpush1.bf16.msra.mxu0 0
  %2324 = vmatprep.subr.bf16.mxu0 0
  %2325 = vmatpush1.bf16.msra.mxu0 0
  %2326 = vmatprep.subr.bf16.mxu0 0
  %2327 = vmatpush1.bf16.msra.mxu0 0
  %2328 = vmatprep.subr.bf16.mxu0 0
  %2329 = vmatpush1.bf16.msra.mxu0 0
  %2330 = vmatprep.mubr.bf16.mxu0 0
  %2331 = vmatmul.mubr.bf16.gmra.mrb[0].mxu0 %v2238
  %v2332 = vpop.f32.mrb[0].mxu0
  %v2333 = vadd.f32 %v2248, %v2332
  %v2334 = vpop.f32.mrb[0].mxu0
  %v2335 = vpop.f32.mrb[0].mxu0
  %v2336 = vadd.f32 %v2248, %v2335
  %v2337 = vpop.f32.mrb[0].mxu0
  %2338 = vmatprep.mubr.bf16.mxu0 0
  %2339 = vmatmul.mubr.bf16.gmra.mrb[0].mxu0 %v2239
  %v2340 = vpop.f32.mrb[0].mxu0
  %v2341 = vadd.f32 %v2248, %v2340
  %v2342 = vpop.f32.mrb[0].mxu0
  %v2343 = vpop.f32.mrb[0].mxu0
  %v2344 = vadd.f32 %v2248, %v2343
  %v2345 = vpop.f32.mrb[0].mxu0
  %2346 = vmatprep.mubr.bf16.mxu0 0
  %2347 = vmatmul.mubr.bf16.gmra.mrb[0].mxu0 %v2240
  %v2348 = vpop.f32.mrb[0].mxu0
  %v2349 = vadd.f32 %v2248, %v2348
  %v2350 = vpop.f32.mrb[0].mxu0
  %v2351 = vpop.f32.mrb[0].mxu0
  %v2352 = vadd.f32 %v2248, %v2351
  %v2353 = vpop.f32.mrb[0].mxu0
  %2354 = vmatprep.mubr.bf16.mxu0 0
  %2355 = vmatmul.mubr.bf16.gmra.mrb[0].mxu0 %v2241
  %v2356 = vpop.f32.mrb[0].mxu0
  %v2357 = vadd.f32 %v2248, %v2356
  %v2358 = vpop.f32.mrb[0].mxu0
  %v2359 = vpop.f32.mrb[0].mxu0
  %v2360 = vadd.f32 %v2248, %v2359
  %v2361 = vpop.f32.mrb[0].mxu0
  %2362 = vdwg.mxu0
  %v2363 = vmax.f32 %v2333, 0.0
  %v2364 = vmax.f32 %v2336, 0.0
  %v2365 = vmax.f32 %v2341, 0.0
  %v2366 = vmax.f32 %v2344, 0.0
  %v2367 = vmax.f32 %v2349, 0.0
  %v2368 = vmax.f32 %v2352, 0.0
  %v2369 = vmax.f32 %v2357, 0.0
  %v2370 = vmax.f32 %v2360, 0.0
  %s2371 = scalar_lea.vmem %s11, 128
  %v2372 = vld [vmem:[%s2371] sm:$0xff]
  %v2373 = vld [vmem:[%s2371 + $0x8] sm:$0xff]
  %v2374 = vld [vmem:[%s2371 + $0x10] sm:$0xff]
  %v2375 = vld [vmem:[%s2371 + $0x18] sm:$0xff]
  %v2376 = vld [vmem:[%s2371 + $0x20] sm:$0xff]
  %v2377 = vld [vmem:[%s2371 + $0x28] sm:$0xff]
  %v2378 = vld [vmem:[%s2371 + $0x30] sm:$0xff]
  %v2379 = vld [vmem:[%s2371 + $0x38] sm:$0xff]
  %2381 = vset.pattern.permute.xlu0 0
  %2382 = vperm.xlu0 %2381, %v2372
  %v2383 = vpop.permute.xlu0 %2382
  %2386 = vset.pattern.permute.xlu0 0
  %2387 = vperm.xlu0 %2386, %v2373
  %v2388 = vpop.permute.xlu0 %2387
  %2391 = vset.pattern.permute.xlu0 0
  %2392 = vperm.xlu0 %2391, %v2374
  %v2393 = vpop.permute.xlu0 %2392
  %2396 = vset.pattern.permute.xlu0 0
  %2397 = vperm.xlu0 %2396, %v2375
  %v2398 = vpop.permute.xlu0 %2397
  %2401 = vset.pattern.permute.xlu0 0
  %2402 = vperm.xlu0 %2401, %v2376
  %v2403 = vpop.permute.xlu0 %2402
  %2406 = vset.pattern.permute.xlu0 0
  %2407 = vperm.xlu0 %2406, %v2377
  %v2408 = vpop.permute.xlu0 %2407
  %2411 = vset.pattern.permute.xlu0 0
  %2412 = vperm.xlu0 %2411, %v2378
  %v2413 = vpop.permute.xlu0 %2412
  %2416 = vset.pattern.permute.xlu0 0
  %2417 = vperm.xlu0 %2416, %v2379
  %v2418 = vpop.permute.xlu0 %2417
  %v2420 = vmul.f32 %v2363, %v2383
  %v2421 = vmul.f32 %v2364, %v2388
  %v2422 = vmul.f32 %v2365, %v2393
  %v2423 = vmul.f32 %v2366, %v2398
  %v2424 = vmul.f32 %v2367, %v2403
  %v2425 = vmul.f32 %v2368, %v2408
  %v2426 = vmul.f32 %v2369, %v2413
  %v2427 = vmul.f32 %v2370, %v2418
  %s2428 = scalar_lea.vmem %s4, 96
  %v2429 = vld [vmem:[%s2428] sm:$0xf]
  %v2430 = vld [vmem:[%s2428 + $0x4] sm:$0xf]
  %v2431 = vld [vmem:[%s2428 + $0x8] sm:$0xf]
  %v2432 = vld [vmem:[%s2428 + $0xc] sm:$0xf]
  %v2433 = vld [vmem:[%s2428 + $0x10] sm:$0xf]
  %v2434 = vld [vmem:[%s2428 + $0x14] sm:$0xf]
  %v2435 = vld [vmem:[%s2428 + $0x18] sm:$0xf]
  %v2436 = vld [vmem:[%s2428 + $0x1c] sm:$0xf]
  %v2437 = vpack.c.bf16 %v2421, %v2420
  %v2438 = vpack.c.bf16 %v2423, %v2422
  %v2439 = vpack.c.bf16 %v2425, %v2424
  %v2440 = vpack.c.bf16 %v2427, %v2426
  %v2449 = vunpack.c.l.b16 %v2429
  %v2450 = vunpack.c.l.b16 %v2430
  %v2451 = vunpack.c.l.b16 %v2431
  %v2452 = vunpack.c.l.b16 %v2432
  %v2453 = vunpack.c.l.b16 %v2433
  %v2454 = vunpack.c.l.b16 %v2434
  %v2455 = vunpack.c.l.b16 %v2435
  %v2456 = vunpack.c.l.b16 %v2436
  %v2457 = vpack.c.b16 %v2450, %v2449
  %v2458 = vpack.c.b16 %v2452, %v2451
  %v2459 = vpack.c.b16 %v2454, %v2453
  %v2460 = vpack.c.b16 %v2456, %v2455
  %v2462 = vsel %vm322, %v2457, 0
  %v2465 = vsel %vm322, %v2458, 0
  %v2468 = vsel %vm322, %v2459, 0
  %v2471 = vsel %vm322, %v2460, 0
  %2473 = vmatprep.subr.bf16.mxu0 0
  %2474 = vmatpush1.bf16.msra.mxu0 %v2437
  %2475 = vmatprep.subr.bf16.mxu0 0
  %2476 = vmatpush1.bf16.msra.mxu0 %v2438
  %2477 = vmatprep.subr.bf16.mxu0 0
  %2478 = vmatpush1.bf16.msra.mxu0 %v2439
  %2479 = vmatprep.subr.bf16.mxu0 0
  %2480 = vmatpush1.bf16.msra.mxu0 %v2440
  %2481 = vmatprep.subr.bf16.mxu0 0
  %2482 = vmatpush1.bf16.msra.mxu0 0
  %2483 = vmatprep.subr.bf16.mxu0 0
  %2484 = vmatpush1.bf16.msra.mxu0 0
  %2485 = vmatprep.subr.bf16.mxu0 0
  %2486 = vmatpush1.bf16.msra.mxu0 0
  %2487 = vmatprep.subr.bf16.mxu0 0
  %2488 = vmatpush1.bf16.msra.mxu0 0
  %2489 = vmatprep.subr.bf16.mxu0 0
  %2490 = vmatpush1.bf16.msra.mxu0 0
  %2491 = vmatprep.subr.bf16.mxu0 0
  %2492 = vmatpush1.bf16.msra.mxu0 0
  %2493 = vmatprep.subr.bf16.mxu0 0
  %2494 = vmatpush1.bf16.msra.mxu0 0
  %2495 = vmatprep.subr.bf16.mxu0 0
  %2496 = vmatpush1.bf16.msra.mxu0 0
  %2497 = vmatprep.subr.bf16.mxu0 0
  %2498 = vmatpush1.bf16.msra.mxu0 0
  %2499 = vmatprep.subr.bf16.mxu0 0
  %2500 = vmatpush1.bf16.msra.mxu0 0
  %2501 = vmatprep.subr.bf16.mxu0 0
  %2502 = vmatpush1.bf16.msra.mxu0 0
  %2503 = vmatprep.subr.bf16.mxu0 0
  %2504 = vmatpush1.bf16.msra.mxu0 0
  %2505 = vmatprep.mubr.bf16.mxu0 0
  %2506 = vmatmul.mubr.bf16.gmra.mrb[0].mxu0 %v2462
  %v2507 = vpop.f32.mrb[0].mxu0
  %v2508 = vadd.f32 0.0, %v2507
  %v2509 = vpop.f32.mrb[0].mxu0
  %v2510 = vpop.f32.mrb[0].mxu0
  %v2511 = vadd.f32 0.0, %v2510
  %v2512 = vpop.f32.mrb[0].mxu0
  %2513 = vmatprep.mubr.bf16.mxu0 0
  %2514 = vmatmul.mubr.bf16.gmra.mrb[0].mxu0 %v2465
  %v2515 = vpop.f32.mrb[0].mxu0
  %v2516 = vadd.f32 0.0, %v2515
  %v2517 = vpop.f32.mrb[0].mxu0
  %v2518 = vpop.f32.mrb[0].mxu0
  %v2519 = vadd.f32 0.0, %v2518
  %v2520 = vpop.f32.mrb[0].mxu0
  %2521 = vmatprep.mubr.bf16.mxu0 0
  %2522 = vmatmul.mubr.bf16.gmra.mrb[0].mxu0 %v2468
  %v2523 = vpop.f32.mrb[0].mxu0
  %v2524 = vadd.f32 0.0, %v2523
  %v2525 = vpop.f32.mrb[0].mxu0
  %v2526 = vpop.f32.mrb[0].mxu0
  %v2527 = vadd.f32 0.0, %v2526
  %v2528 = vpop.f32.mrb[0].mxu0
  %2529 = vmatprep.mubr.bf16.mxu0 0
  %2530 = vmatmul.mubr.bf16.gmra.mrb[0].mxu0 %v2471
  %v2531 = vpop.f32.mrb[0].mxu0
  %v2532 = vadd.f32 0.0, %v2531
  %v2533 = vpop.f32.mrb[0].mxu0
  %v2534 = vpop.f32.mrb[0].mxu0
  %v2535 = vadd.f32 0.0, %v2534
  %v2536 = vpop.f32.mrb[0].mxu0
  %2537 = vdwg.mxu0
  %s2538 = scalar_lea.vmem %s5, 96
  %v2539 = vld [vmem:[%s2538] sm:$0xf]
  %v2540 = vld [vmem:[%s2538 + $0x4] sm:$0xf]
  %v2541 = vld [vmem:[%s2538 + $0x8] sm:$0xf]
  %v2542 = vld [vmem:[%s2538 + $0xc] sm:$0xf]
  %v2543 = vld [vmem:[%s2538 + $0x10] sm:$0xf]
  %v2544 = vld [vmem:[%s2538 + $0x14] sm:$0xf]
  %v2545 = vld [vmem:[%s2538 + $0x18] sm:$0xf]
  %v2546 = vld [vmem:[%s2538 + $0x1c] sm:$0xf]
  %v2555 = vunpack.c.l.b16 %v2539
  %v2556 = vunpack.c.l.b16 %v2540
  %v2557 = vunpack.c.l.b16 %v2541
  %v2558 = vunpack.c.l.b16 %v2542
  %v2559 = vunpack.c.l.b16 %v2543
  %v2560 = vunpack.c.l.b16 %v2544
  %v2561 = vunpack.c.l.b16 %v2545
  %v2562 = vunpack.c.l.b16 %v2546
  %v2563 = vpack.c.b16 %v2556, %v2555
  %v2564 = vpack.c.b16 %v2558, %v2557
  %v2565 = vpack.c.b16 %v2560, %v2559
  %v2566 = vpack.c.b16 %v2562, %v2561
  %v2568 = vsel %vm322, %v2563, 0
  %v2571 = vsel %vm322, %v2564, 0
  %v2574 = vsel %vm322, %v2565, 0
  %v2577 = vsel %vm322, %v2566, 0
  %2579 = vmatprep.subr.bf16.mxu0 0
  %2580 = vmatpush1.bf16.msra.mxu0 %v2437
  %2581 = vmatprep.subr.bf16.mxu0 0
  %2582 = vmatpush1.bf16.msra.mxu0 %v2438
  %2583 = vmatprep.subr.bf16.mxu0 0
  %2584 = vmatpush1.bf16.msra.mxu0 %v2439
  %2585 = vmatprep.subr.bf16.mxu0 0
  %2586 = vmatpush1.bf16.msra.mxu0 %v2440
  %2587 = vmatprep.subr.bf16.mxu0 0
  %2588 = vmatpush1.bf16.msra.mxu0 0
  %2589 = vmatprep.subr.bf16.mxu0 0
  %2590 = vmatpush1.bf16.msra.mxu0 0
  %2591 = vmatprep.subr.bf16.mxu0 0
  %2592 = vmatpush1.bf16.msra.mxu0 0
  %2593 = vmatprep.subr.bf16.mxu0 0
  %2594 = vmatpush1.bf16.msra.mxu0 0
  %2595 = vmatprep.subr.bf16.mxu0 0
  %2596 = vmatpush1.bf16.msra.mxu0 0
  %2597 = vmatprep.subr.bf16.mxu0 0
  %2598 = vmatpush1.bf16.msra.mxu0 0
  %2599 = vmatprep.subr.bf16.mxu0 0
  %2600 = vmatpush1.bf16.msra.mxu0 0
  %2601 = vmatprep.subr.bf16.mxu0 0
  %2602 = vmatpush1.bf16.msra.mxu0 0
  %2603 = vmatprep.subr.bf16.mxu0 0
  %2604 = vmatpush1.bf16.msra.mxu0 0
  %2605 = vmatprep.subr.bf16.mxu0 0
  %2606 = vmatpush1.bf16.msra.mxu0 0
  %2607 = vmatprep.subr.bf16.mxu0 0
  %2608 = vmatpush1.bf16.msra.mxu0 0
  %2609 = vmatprep.subr.bf16.mxu0 0
  %2610 = vmatpush1.bf16.msra.mxu0 0
  %2611 = vmatprep.mubr.bf16.mxu0 0
  %2612 = vmatmul.mubr.bf16.gmra.mrb[0].mxu0 %v2568
  %v2613 = vpop.f32.mrb[0].mxu0
  %v2614 = vadd.f32 0.0, %v2613
  %v2615 = vpop.f32.mrb[0].mxu0
  %v2616 = vpop.f32.mrb[0].mxu0
  %v2617 = vadd.f32 0.0, %v2616
  %v2618 = vpop.f32.mrb[0].mxu0
  %2619 = vmatprep.mubr.bf16.mxu0 0
  %2620 = vmatmul.mubr.bf16.gmra.mrb[0].mxu0 %v2571
  %v2621 = vpop.f32.mrb[0].mxu0
  %v2622 = vadd.f32 0.0, %v2621
  %v2623 = vpop.f32.mrb[0].mxu0
  %v2624 = vpop.f32.mrb[0].mxu0
  %v2625 = vadd.f32 0.0, %v2624
  %v2626 = vpop.f32.mrb[0].mxu0
  %2627 = vmatprep.mubr.bf16.mxu0 0
  %2628 = vmatmul.mubr.bf16.gmra.mrb[0].mxu0 %v2574
  %v2629 = vpop.f32.mrb[0].mxu0
  %v2630 = vadd.f32 0.0, %v2629
  %v2631 = vpop.f32.mrb[0].mxu0
  %v2632 = vpop.f32.mrb[0].mxu0
  %v2633 = vadd.f32 0.0, %v2632
  %v2634 = vpop.f32.mrb[0].mxu0
  %2635 = vmatprep.mubr.bf16.mxu0 0
  %2636 = vmatmul.mubr.bf16.gmra.mrb[0].mxu0 %v2577
  %v2637 = vpop.f32.mrb[0].mxu0
  %v2638 = vadd.f32 0.0, %v2637
  %v2639 = vpop.f32.mrb[0].mxu0
  %v2640 = vpop.f32.mrb[0].mxu0
  %v2641 = vadd.f32 0.0, %v2640
  %v2642 = vpop.f32.mrb[0].mxu0
  %2643 = vdwg.mxu0
  %s2644 = scalar_lea.vmem %s6, 192
  %v2645 = vld [vmem:[%s2644] sm:$0xf]
  %v2646 = vld [vmem:[%s2644 + $0x4] sm:$0xf]
  %v2647 = vld [vmem:[%s2644 + $0x8] sm:$0xf]
  %v2648 = vld [vmem:[%s2644 + $0xc] sm:$0xf]
  %v2649 = vld [vmem:[%s2644 + $0x10] sm:$0xf]
  %v2650 = vld [vmem:[%s2644 + $0x14] sm:$0xf]
  %v2651 = vld [vmem:[%s2644 + $0x18] sm:$0xf]
  %v2652 = vld [vmem:[%s2644 + $0x1c] sm:$0xf]
  %v2653 = vld [vmem:[%s2644 + $0x20] sm:$0xf]
  %v2654 = vld [vmem:[%s2644 + $0x24] sm:$0xf]
  %v2655 = vld [vmem:[%s2644 + $0x28] sm:$0xf]
  %v2656 = vld [vmem:[%s2644 + $0x2c] sm:$0xf]
  %v2657 = vld [vmem:[%s2644 + $0x30] sm:$0xf]
  %v2658 = vld [vmem:[%s2644 + $0x34] sm:$0xf]
  %v2659 = vld [vmem:[%s2644 + $0x38] sm:$0xf]
  %v2660 = vld [vmem:[%s2644 + $0x3c] sm:$0xf]
  %v2661 = vpack.c.bf16 %v2511, %v2508
  %v2662 = vpack.c.bf16 %v2519, %v2516
  %v2663 = vpack.c.bf16 %v2527, %v2524
  %v2664 = vpack.c.bf16 %v2535, %v2532
  %s2665 = scalar_lea.vmem %s7, 192
  %v2666 = vld [vmem:[%s2665] sm:$0xf]
  %v2667 = vld [vmem:[%s2665 + $0x4] sm:$0xf]
  %v2668 = vld [vmem:[%s2665 + $0x8] sm:$0xf]
  %v2669 = vld [vmem:[%s2665 + $0xc] sm:$0xf]
  %v2670 = vld [vmem:[%s2665 + $0x10] sm:$0xf]
  %v2671 = vld [vmem:[%s2665 + $0x14] sm:$0xf]
  %v2672 = vld [vmem:[%s2665 + $0x18] sm:$0xf]
  %v2673 = vld [vmem:[%s2665 + $0x1c] sm:$0xf]
  %v2674 = vld [vmem:[%s2665 + $0x20] sm:$0xf]
  %v2675 = vld [vmem:[%s2665 + $0x24] sm:$0xf]
  %v2676 = vld [vmem:[%s2665 + $0x28] sm:$0xf]
  %v2677 = vld [vmem:[%s2665 + $0x2c] sm:$0xf]
  %v2678 = vld [vmem:[%s2665 + $0x30] sm:$0xf]
  %v2679 = vld [vmem:[%s2665 + $0x34] sm:$0xf]
  %v2680 = vld [vmem:[%s2665 + $0x38] sm:$0xf]
  %v2681 = vld [vmem:[%s2665 + $0x3c] sm:$0xf]
  %v2682 = vpack.c.bf16 %v2617, %v2614
  %v2683 = vpack.c.bf16 %v2625, %v2622
  %v2684 = vpack.c.bf16 %v2633, %v2630
  %v2685 = vpack.c.bf16 %v2641, %v2638
  %v2702 = vunpack.c.l.b16 %v2666
  %v2703 = vunpack.c.l.b16 %v2667
  %v2704 = vunpack.c.l.b16 %v2668
  %v2705 = vunpack.c.l.b16 %v2669
  %v2706 = vunpack.c.l.b16 %v2670
  %v2707 = vunpack.c.l.b16 %v2671
  %v2708 = vunpack.c.l.b16 %v2672
  %v2709 = vunpack.c.l.b16 %v2673
  %v2710 = vunpack.c.l.b16 %v2674
  %v2711 = vunpack.c.l.b16 %v2675
  %v2712 = vunpack.c.l.b16 %v2676
  %v2713 = vunpack.c.l.b16 %v2677
  %v2714 = vunpack.c.l.b16 %v2678
  %v2715 = vunpack.c.l.b16 %v2679
  %v2716 = vunpack.c.l.b16 %v2680
  %v2717 = vunpack.c.l.b16 %v2681
  %v2718 = vpack.c.b16 %v2703, %v2702
  %v2719 = vpack.c.b16 %v2705, %v2704
  %v2720 = vpack.c.b16 %v2707, %v2706
  %v2721 = vpack.c.b16 %v2709, %v2708
  %v2722 = vpack.c.b16 %v2711, %v2710
  %v2723 = vpack.c.b16 %v2713, %v2712
  %v2724 = vpack.c.b16 %v2715, %v2714
  %v2725 = vpack.c.b16 %v2717, %v2716
  %2734 = vmatprep.subr.bf16.mxu0 0
  %2735 = vmatpush1.bf16.msra.mxu0 %v2718
  %2736 = vmatprep.subr.bf16.mxu0 0
  %2737 = vmatpush1.bf16.msra.mxu0 %v2719
  %2738 = vmatprep.subr.bf16.mxu0 0
  %2739 = vmatpush1.bf16.msra.mxu0 %v2720
  %2740 = vmatprep.subr.bf16.mxu0 0
  %2741 = vmatpush1.bf16.msra.mxu0 %v2721
  %2742 = vmatprep.subr.bf16.mxu0 0
  %2743 = vmatpush1.bf16.msra.mxu0 %v2722
  %2744 = vmatprep.subr.bf16.mxu0 0
  %2745 = vmatpush1.bf16.msra.mxu0 %v2723
  %2746 = vmatprep.subr.bf16.mxu0 0
  %2747 = vmatpush1.bf16.msra.mxu0 %v2724
  %2748 = vmatprep.subr.bf16.mxu0 0
  %2749 = vmatpush1.bf16.msra.mxu0 %v2725
  %2750 = vmatprep.subr.bf16.mxu0 0
  %2751 = vmatpush1.bf16.msra.mxu0 0
  %2752 = vmatprep.subr.bf16.mxu0 0
  %2753 = vmatpush1.bf16.msra.mxu0 0
  %2754 = vmatprep.subr.bf16.mxu0 0
  %2755 = vmatpush1.bf16.msra.mxu0 0
  %2756 = vmatprep.subr.bf16.mxu0 0
  %2757 = vmatpush1.bf16.msra.mxu0 0
  %2758 = vmatprep.subr.bf16.mxu0 0
  %2759 = vmatpush1.bf16.msra.mxu0 0
  %2760 = vmatprep.subr.bf16.mxu0 0
  %2761 = vmatpush1.bf16.msra.mxu0 0
  %2762 = vmatprep.subr.bf16.mxu0 0
  %2763 = vmatpush1.bf16.msra.mxu0 0
  %2764 = vmatprep.subr.bf16.mxu0 0
  %2765 = vmatpush1.bf16.msra.mxu0 0
  %2766 = vmatprep.mubr.bf16.mxu0 0
  %2767 = vmatmul.mubr.bf16.gmra.mrb[0].mxu0 %v2682
  %v2768 = vpop.f32.mrb[0].mxu0
  %v2769 = vadd.f32 0.0, %v2768
  %v2770 = vpop.f32.mrb[0].mxu0
  %v2771 = vpop.f32.mrb[0].mxu0
  %v2772 = vadd.f32 0.0, %v2771
  %v2773 = vpop.f32.mrb[0].mxu0
  %2774 = vmatprep.mubr.bf16.mxu0 0
  %2775 = vmatmul.mubr.bf16.gmra.mrb[0].mxu0 %v2683
  %v2776 = vpop.f32.mrb[0].mxu0
  %v2777 = vadd.f32 0.0, %v2776
  %v2778 = vpop.f32.mrb[0].mxu0
  %v2779 = vpop.f32.mrb[0].mxu0
  %v2780 = vadd.f32 0.0, %v2779
  %v2781 = vpop.f32.mrb[0].mxu0
  %2782 = vmatprep.mubr.bf16.mxu0 0
  %2783 = vmatmul.mubr.bf16.gmra.mrb[0].mxu0 %v2684
  %v2784 = vpop.f32.mrb[0].mxu0
  %v2785 = vadd.f32 0.0, %v2784
  %v2786 = vpop.f32.mrb[0].mxu0
  %v2787 = vpop.f32.mrb[0].mxu0
  %v2788 = vadd.f32 0.0, %v2787
  %v2789 = vpop.f32.mrb[0].mxu0
  %2790 = vmatprep.mubr.bf16.mxu0 0
  %2791 = vmatmul.mubr.bf16.gmra.mrb[0].mxu0 %v2685
  %v2792 = vpop.f32.mrb[0].mxu0
  %v2793 = vadd.f32 0.0, %v2792
  %v2794 = vpop.f32.mrb[0].mxu0
  %v2795 = vpop.f32.mrb[0].mxu0
  %v2796 = vadd.f32 0.0, %v2795
  %v2797 = vpop.f32.mrb[0].mxu0
  %2798 = vdwg.mxu0
  %v2815 = vunpack.c.l.b16 %v2645
  %v2816 = vunpack.c.l.b16 %v2646
  %v2817 = vunpack.c.l.b16 %v2647
  %v2818 = vunpack.c.l.b16 %v2648
  %v2819 = vunpack.c.l.b16 %v2649
  %v2820 = vunpack.c.l.b16 %v2650
  %v2821 = vunpack.c.l.b16 %v2651
  %v2822 = vunpack.c.l.b16 %v2652
  %v2823 = vunpack.c.l.b16 %v2653
  %v2824 = vunpack.c.l.b16 %v2654
  %v2825 = vunpack.c.l.b16 %v2655
  %v2826 = vunpack.c.l.b16 %v2656
  %v2827 = vunpack.c.l.b16 %v2657
  %v2828 = vunpack.c.l.b16 %v2658
  %v2829 = vunpack.c.l.b16 %v2659
  %v2830 = vunpack.c.l.b16 %v2660
  %v2831 = vpack.c.b16 %v2816, %v2815
  %v2832 = vpack.c.b16 %v2818, %v2817
  %v2833 = vpack.c.b16 %v2820, %v2819
  %v2834 = vpack.c.b16 %v2822, %v2821
  %v2835 = vpack.c.b16 %v2824, %v2823
  %v2836 = vpack.c.b16 %v2826, %v2825
  %v2837 = vpack.c.b16 %v2828, %v2827
  %v2838 = vpack.c.b16 %v2830, %v2829
  %2847 = vmatprep.subr.bf16.mxu0 0
  %2848 = vmatpush1.bf16.msra.mxu0 %v2831
  %2849 = vmatprep.subr.bf16.mxu0 0
  %2850 = vmatpush1.bf16.msra.mxu0 %v2832
  %2851 = vmatprep.subr.bf16.mxu0 0
  %2852 = vmatpush1.bf16.msra.mxu0 %v2833
  %2853 = vmatprep.subr.bf16.mxu0 0
  %2854 = vmatpush1.bf16.msra.mxu0 %v2834
  %2855 = vmatprep.subr.bf16.mxu0 0
  %2856 = vmatpush1.bf16.msra.mxu0 %v2835
  %2857 = vmatprep.subr.bf16.mxu0 0
  %2858 = vmatpush1.bf16.msra.mxu0 %v2836
  %2859 = vmatprep.subr.bf16.mxu0 0
  %2860 = vmatpush1.bf16.msra.mxu0 %v2837
  %2861 = vmatprep.subr.bf16.mxu0 0
  %2862 = vmatpush1.bf16.msra.mxu0 %v2838
  %2863 = vmatprep.subr.bf16.mxu0 0
  %2864 = vmatpush1.bf16.msra.mxu0 0
  %2865 = vmatprep.subr.bf16.mxu0 0
  %2866 = vmatpush1.bf16.msra.mxu0 0
  %2867 = vmatprep.subr.bf16.mxu0 0
  %2868 = vmatpush1.bf16.msra.mxu0 0
  %2869 = vmatprep.subr.bf16.mxu0 0
  %2870 = vmatpush1.bf16.msra.mxu0 0
  %2871 = vmatprep.subr.bf16.mxu0 0
  %2872 = vmatpush1.bf16.msra.mxu0 0
  %2873 = vmatprep.subr.bf16.mxu0 0
  %2874 = vmatpush1.bf16.msra.mxu0 0
  %2875 = vmatprep.subr.bf16.mxu0 0
  %2876 = vmatpush1.bf16.msra.mxu0 0
  %2877 = vmatprep.subr.bf16.mxu0 0
  %2878 = vmatpush1.bf16.msra.mxu0 0
  %2879 = vmatprep.mubr.bf16.mxu0 0
  %2880 = vmatmul.mubr.bf16.gmra.mrb[0].mxu0 %v2661
  %v2881 = vpop.f32.mrb[0].mxu0
  %v2882 = vadd.f32 %v2769, %v2881
  %v2883 = vpop.f32.mrb[0].mxu0
  %v2884 = vpop.f32.mrb[0].mxu0
  %v2885 = vadd.f32 %v2772, %v2884
  %v2886 = vpop.f32.mrb[0].mxu0
  %2887 = vmatprep.mubr.bf16.mxu0 0
  %2888 = vmatmul.mubr.bf16.gmra.mrb[0].mxu0 %v2662
  %v2889 = vpop.f32.mrb[0].mxu0
  %v2890 = vadd.f32 %v2777, %v2889
  %v2891 = vpop.f32.mrb[0].mxu0
  %v2892 = vpop.f32.mrb[0].mxu0
  %v2893 = vadd.f32 %v2780, %v2892
  %v2894 = vpop.f32.mrb[0].mxu0
  %2895 = vmatprep.mubr.bf16.mxu0 0
  %2896 = vmatmul.mubr.bf16.gmra.mrb[0].mxu0 %v2663
  %v2897 = vpop.f32.mrb[0].mxu0
  %v2898 = vadd.f32 %v2785, %v2897
  %v2899 = vpop.f32.mrb[0].mxu0
  %v2900 = vpop.f32.mrb[0].mxu0
  %v2901 = vadd.f32 %v2788, %v2900
  %v2902 = vpop.f32.mrb[0].mxu0
  %2903 = vmatprep.mubr.bf16.mxu0 0
  %2904 = vmatmul.mubr.bf16.gmra.mrb[0].mxu0 %v2664
  %v2905 = vpop.f32.mrb[0].mxu0
  %v2906 = vadd.f32 %v2793, %v2905
  %v2907 = vpop.f32.mrb[0].mxu0
  %v2908 = vpop.f32.mrb[0].mxu0
  %v2909 = vadd.f32 %v2796, %v2908
  %v2910 = vpop.f32.mrb[0].mxu0
  %2911 = vdwg.mxu0
  %s2912 = scalar_lea.vmem %s8, 3
  %v2913 = vld [vmem:[%s2912] sm:$0x1]
  %v2915 = vlaneseq
  %v2916 = vshrl.u32 %v2915, 7
  %v2917 = vsub.s32 0, %v2916
  %v2918 = vrot.slane %v2913, %v2917
  %v2920 = vadd.f32 %v2882, %v2918
  %v2921 = vadd.f32 %v2885, %v2918
  %v2922 = vadd.f32 %v2890, %v2918
  %v2923 = vadd.f32 %v2893, %v2918
  %v2924 = vadd.f32 %v2898, %v2918
  %v2925 = vadd.f32 %v2901, %v2918
  %v2926 = vadd.f32 %v2906, %v2918
  %v2927 = vadd.f32 %v2909, %v2918
  %v2928 = vmax.f32 %v2920, 0.0
  %v2929 = vmax.f32 %v2921, 0.0
  %v2930 = vmax.f32 %v2922, 0.0
  %v2931 = vmax.f32 %v2923, 0.0
  %v2932 = vmax.f32 %v2924, 0.0
  %v2933 = vmax.f32 %v2925, 0.0
  %v2934 = vmax.f32 %v2926, 0.0
  %v2935 = vmax.f32 %v2927, 0.0
  %s2936 = scalar_lea.vmem %s9, 192
  %v2937 = vld [vmem:[%s2936] sm:$0xf]
  %v2938 = vld [vmem:[%s2936 + $0x4] sm:$0xf]
  %v2939 = vld [vmem:[%s2936 + $0x8] sm:$0xf]
  %v2940 = vld [vmem:[%s2936 + $0xc] sm:$0xf]
  %v2941 = vld [vmem:[%s2936 + $0x10] sm:$0xf]
  %v2942 = vld [vmem:[%s2936 + $0x14] sm:$0xf]
  %v2943 = vld [vmem:[%s2936 + $0x18] sm:$0xf]
  %v2944 = vld [vmem:[%s2936 + $0x1c] sm:$0xf]
  %v2945 = vld [vmem:[%s2936 + $0x20] sm:$0xf]
  %v2946 = vld [vmem:[%s2936 + $0x24] sm:$0xf]
  %v2947 = vld [vmem:[%s2936 + $0x28] sm:$0xf]
  %v2948 = vld [vmem:[%s2936 + $0x2c] sm:$0xf]
  %v2949 = vld [vmem:[%s2936 + $0x30] sm:$0xf]
  %v2950 = vld [vmem:[%s2936 + $0x34] sm:$0xf]
  %v2951 = vld [vmem:[%s2936 + $0x38] sm:$0xf]
  %v2952 = vld [vmem:[%s2936 + $0x3c] sm:$0xf]
  %v2953 = vpack.c.bf16 %v2929, %v2928
  %v2954 = vpack.c.bf16 %v2931, %v2930
  %v2955 = vpack.c.bf16 %v2933, %v2932
  %v2956 = vpack.c.bf16 %v2935, %v2934
  %s2957 = scalar_lea.vmem %s10, 3
  %v2958 = vld [vmem:[%s2957] sm:$0x1]
  %v2960 = vlaneseq
  %v2961 = vshrl.u32 %v2960, 7
  %v2962 = vsub.s32 0, %v2961
  %v2963 = vrot.slane %v2958, %v2962
  %v2981 = vunpack.c.l.b16 %v2937
  %v2982 = vunpack.c.l.b16 %v2938
  %v2983 = vunpack.c.l.b16 %v2939
  %v2984 = vunpack.c.l.b16 %v2940
  %v2985 = vunpack.c.l.b16 %v2941
  %v2986 = vunpack.c.l.b16 %v2942
  %v2987 = vunpack.c.l.b16 %v2943
  %v2988 = vunpack.c.l.b16 %v2944
  %v2989 = vunpack.c.l.b16 %v2945
  %v2990 = vunpack.c.l.b16 %v2946
  %v2991 = vunpack.c.l.b16 %v2947
  %v2992 = vunpack.c.l.b16 %v2948
  %v2993 = vunpack.c.l.b16 %v2949
  %v2994 = vunpack.c.l.b16 %v2950
  %v2995 = vunpack.c.l.b16 %v2951
  %v2996 = vunpack.c.l.b16 %v2952
  %v2997 = vpack.c.b16 %v2982, %v2981
  %v2998 = vpack.c.b16 %v2984, %v2983
  %v2999 = vpack.c.b16 %v2986, %v2985
  %v3000 = vpack.c.b16 %v2988, %v2987
  %v3001 = vpack.c.b16 %v2990, %v2989
  %v3002 = vpack.c.b16 %v2992, %v2991
  %v3003 = vpack.c.b16 %v2994, %v2993
  %v3004 = vpack.c.b16 %v2996, %v2995
  %3013 = vmatprep.subr.bf16.mxu0 0
  %3014 = vmatpush1.bf16.msra.mxu0 %v2997
  %3015 = vmatprep.subr.bf16.mxu0 0
  %3016 = vmatpush1.bf16.msra.mxu0 %v2998
  %3017 = vmatprep.subr.bf16.mxu0 0
  %3018 = vmatpush1.bf16.msra.mxu0 %v2999
  %3019 = vmatprep.subr.bf16.mxu0 0
  %3020 = vmatpush1.bf16.msra.mxu0 %v3000
  %3021 = vmatprep.subr.bf16.mxu0 0
  %3022 = vmatpush1.bf16.msra.mxu0 %v3001
  %3023 = vmatprep.subr.bf16.mxu0 0
  %3024 = vmatpush1.bf16.msra.mxu0 %v3002
  %3025 = vmatprep.subr.bf16.mxu0 0
  %3026 = vmatpush1.bf16.msra.mxu0 %v3003
  %3027 = vmatprep.subr.bf16.mxu0 0
  %3028 = vmatpush1.bf16.msra.mxu0 %v3004
  %3029 = vmatprep.subr.bf16.mxu0 0
  %3030 = vmatpush1.bf16.msra.mxu0 0
  %3031 = vmatprep.subr.bf16.mxu0 0
  %3032 = vmatpush1.bf16.msra.mxu0 0
  %3033 = vmatprep.subr.bf16.mxu0 0
  %3034 = vmatpush1.bf16.msra.mxu0 0
  %3035 = vmatprep.subr.bf16.mxu0 0
  %3036 = vmatpush1.bf16.msra.mxu0 0
  %3037 = vmatprep.subr.bf16.mxu0 0
  %3038 = vmatpush1.bf16.msra.mxu0 0
  %3039 = vmatprep.subr.bf16.mxu0 0
  %3040 = vmatpush1.bf16.msra.mxu0 0
  %3041 = vmatprep.subr.bf16.mxu0 0
  %3042 = vmatpush1.bf16.msra.mxu0 0
  %3043 = vmatprep.subr.bf16.mxu0 0
  %3044 = vmatpush1.bf16.msra.mxu0 0
  %3045 = vmatprep.mubr.bf16.mxu0 0
  %3046 = vmatmul.mubr.bf16.gmra.mrb[0].mxu0 %v2953
  %v3047 = vpop.f32.mrb[0].mxu0
  %v3048 = vadd.f32 %v2963, %v3047
  %v3049 = vpop.f32.mrb[0].mxu0
  %v3050 = vpop.f32.mrb[0].mxu0
  %v3051 = vadd.f32 %v2963, %v3050
  %v3052 = vpop.f32.mrb[0].mxu0
  %3053 = vmatprep.mubr.bf16.mxu0 0
  %3054 = vmatmul.mubr.bf16.gmra.mrb[0].mxu0 %v2954
  %v3055 = vpop.f32.mrb[0].mxu0
  %v3056 = vadd.f32 %v2963, %v3055
  %v3057 = vpop.f32.mrb[0].mxu0
  %v3058 = vpop.f32.mrb[0].mxu0
  %v3059 = vadd.f32 %v2963, %v3058
  %v3060 = vpop.f32.mrb[0].mxu0
  %3061 = vmatprep.mubr.bf16.mxu0 0
  %3062 = vmatmul.mubr.bf16.gmra.mrb[0].mxu0 %v2955
  %v3063 = vpop.f32.mrb[0].mxu0
  %v3064 = vadd.f32 %v2963, %v3063
  %v3065 = vpop.f32.mrb[0].mxu0
  %v3066 = vpop.f32.mrb[0].mxu0
  %v3067 = vadd.f32 %v2963, %v3066
  %v3068 = vpop.f32.mrb[0].mxu0
  %3069 = vmatprep.mubr.bf16.mxu0 0
  %3070 = vmatmul.mubr.bf16.gmra.mrb[0].mxu0 %v2956
  %v3071 = vpop.f32.mrb[0].mxu0
  %v3072 = vadd.f32 %v2963, %v3071
  %v3073 = vpop.f32.mrb[0].mxu0
  %v3074 = vpop.f32.mrb[0].mxu0
  %v3075 = vadd.f32 %v2963, %v3074
  %v3076 = vpop.f32.mrb[0].mxu0
  %3077 = vdwg.mxu0
  %v3078 = vmax.f32 %v3048, 0.0
  %v3079 = vmax.f32 %v3051, 0.0
  %v3080 = vmax.f32 %v3056, 0.0
  %v3081 = vmax.f32 %v3059, 0.0
  %v3082 = vmax.f32 %v3064, 0.0
  %v3083 = vmax.f32 %v3067, 0.0
  %v3084 = vmax.f32 %v3072, 0.0
  %v3085 = vmax.f32 %v3075, 0.0
  %s3086 = scalar_lea.vmem %s11, 192
  %v3087 = vld [vmem:[%s3086] sm:$0xff]
  %v3088 = vld [vmem:[%s3086 + $0x8] sm:$0xff]
  %v3089 = vld [vmem:[%s3086 + $0x10] sm:$0xff]
  %v3090 = vld [vmem:[%s3086 + $0x18] sm:$0xff]
  %v3091 = vld [vmem:[%s3086 + $0x20] sm:$0xff]
  %v3092 = vld [vmem:[%s3086 + $0x28] sm:$0xff]
  %v3093 = vld [vmem:[%s3086 + $0x30] sm:$0xff]
  %v3094 = vld [vmem:[%s3086 + $0x38] sm:$0xff]
  %3096 = vset.pattern.permute.xlu0 0
  %3097 = vperm.xlu0 %3096, %v3087
  %v3098 = vpop.permute.xlu0 %3097
  %3101 = vset.pattern.permute.xlu0 0
  %3102 = vperm.xlu0 %3101, %v3088
  %v3103 = vpop.permute.xlu0 %3102
  %3106 = vset.pattern.permute.xlu0 0
  %3107 = vperm.xlu0 %3106, %v3089
  %v3108 = vpop.permute.xlu0 %3107
  %3111 = vset.pattern.permute.xlu0 0
  %3112 = vperm.xlu0 %3111, %v3090
  %v3113 = vpop.permute.xlu0 %3112
  %3116 = vset.pattern.permute.xlu0 0
  %3117 = vperm.xlu0 %3116, %v3091
  %v3118 = vpop.permute.xlu0 %3117
  %3121 = vset.pattern.permute.xlu0 0
  %3122 = vperm.xlu0 %3121, %v3092
  %v3123 = vpop.permute.xlu0 %3122
  %3126 = vset.pattern.permute.xlu0 0
  %3127 = vperm.xlu0 %3126, %v3093
  %v3128 = vpop.permute.xlu0 %3127
  %3131 = vset.pattern.permute.xlu0 0
  %3132 = vperm.xlu0 %3131, %v3094
  %v3133 = vpop.permute.xlu0 %3132
  %v3135 = vmul.f32 %v3078, %v3098
  %v3136 = vmul.f32 %v3079, %v3103
  %v3137 = vmul.f32 %v3080, %v3108
  %v3138 = vmul.f32 %v3081, %v3113
  %v3139 = vmul.f32 %v3082, %v3118
  %v3140 = vmul.f32 %v3083, %v3123
  %v3141 = vmul.f32 %v3084, %v3128
  %v3142 = vmul.f32 %v3085, %v3133
  %v3143 = vld [vmem:[%s12] sm:$0xf]
  %v3144 = vpack.c.bf16 %v3136, %v3135
  %v3145 = vpack.c.bf16 %v3138, %v3137
  %v3146 = vpack.c.bf16 %v3140, %v3139
  %v3147 = vpack.c.bf16 %v3142, %v3141
  %v3149 = vsel %vm322, %v3143, 0
  %3151 = vmatprep.subr.bf16.mxu0 0
  %3152 = vmatpush1.bf16.msra.mxu0 %v3144
  %3153 = vmatprep.subr.bf16.mxu0 0
  %3154 = vmatpush1.bf16.msra.mxu0 %v3145
  %3155 = vmatprep.subr.bf16.mxu0 0
  %3156 = vmatpush1.bf16.msra.mxu0 %v3146
  %3157 = vmatprep.subr.bf16.mxu0 0
  %3158 = vmatpush1.bf16.msra.mxu0 %v3147
  %3159 = vmatprep.subr.bf16.mxu0 0
  %3160 = vmatpush1.bf16.msra.mxu0 0
  %3161 = vmatprep.subr.bf16.mxu0 0
  %3162 = vmatpush1.bf16.msra.mxu0 0
  %3163 = vmatprep.subr.bf16.mxu0 0
  %3164 = vmatpush1.bf16.msra.mxu0 0
  %3165 = vmatprep.subr.bf16.mxu0 0
  %3166 = vmatpush1.bf16.msra.mxu0 0
  %3167 = vmatprep.subr.bf16.mxu0 0
  %3168 = vmatpush1.bf16.msra.mxu0 0
  %3169 = vmatprep.subr.bf16.mxu0 0
  %3170 = vmatpush1.bf16.msra.mxu0 0
  %3171 = vmatprep.subr.bf16.mxu0 0
  %3172 = vmatpush1.bf16.msra.mxu0 0
  %3173 = vmatprep.subr.bf16.mxu0 0
  %3174 = vmatpush1.bf16.msra.mxu0 0
  %3175 = vmatprep.subr.bf16.mxu0 0
  %3176 = vmatpush1.bf16.msra.mxu0 0
  %3177 = vmatprep.subr.bf16.mxu0 0
  %3178 = vmatpush1.bf16.msra.mxu0 0
  %3179 = vmatprep.subr.bf16.mxu0 0
  %3180 = vmatpush1.bf16.msra.mxu0 0
  %3181 = vmatprep.subr.bf16.mxu0 0
  %3182 = vmatpush1.bf16.msra.mxu0 0
  %3183 = vmatprep.mubr.bf16.mxu0 0
  %3184 = vmatmul.mubr.bf16.gmra.mrb[0].mxu0 %v3149
  %v3185 = vpop.f32.mrb[0].mxu0
  %v3186 = vadd.f32 0.0, %v3185
  %v3187 = vpop.f32.mrb[0].mxu0
  %v3188 = vpop.f32.mrb[0].mxu0
  %v3189 = vpop.f32.mrb[0].mxu0
  %3190 = vdwg.mxu0
  %v3191 = vld [vmem:[%s13] sm:$0xf]
  %v3192 = vpack.c.bf16 %v3186, %v3186
  %v3194 = vsel %vm208, %v3191, 0
  %v3197 = vsel %vm221, %v3192, 0
  %3199 = vmatprep.subr.bf16.mxu0 0
  %3200 = vmatpush1.bf16.msra.mxu0 %v3197
  %3201 = vmatprep.subr.bf16.mxu0 0
  %3202 = vmatpush1.bf16.msra.mxu0 0
  %3203 = vmatprep.subr.bf16.mxu0 0
  %3204 = vmatpush1.bf16.msra.mxu0 0
  %3205 = vmatprep.subr.bf16.mxu0 0
  %3206 = vmatpush1.bf16.msra.mxu0 0
  %3207 = vmatprep.subr.bf16.mxu0 0
  %3208 = vmatpush1.bf16.msra.mxu0 0
  %3209 = vmatprep.subr.bf16.mxu0 0
  %3210 = vmatpush1.bf16.msra.mxu0 0
  %3211 = vmatprep.subr.bf16.mxu0 0
  %3212 = vmatpush1.bf16.msra.mxu0 0
  %3213 = vmatprep.subr.bf16.mxu0 0
  %3214 = vmatpush1.bf16.msra.mxu0 0
  %3215 = vmatprep.subr.bf16.mxu0 0
  %3216 = vmatpush1.bf16.msra.mxu0 0
  %3217 = vmatprep.subr.bf16.mxu0 0
  %3218 = vmatpush1.bf16.msra.mxu0 0
  %3219 = vmatprep.subr.bf16.mxu0 0
  %3220 = vmatpush1.bf16.msra.mxu0 0
  %3221 = vmatprep.subr.bf16.mxu0 0
  %3222 = vmatpush1.bf16.msra.mxu0 0
  %3223 = vmatprep.subr.bf16.mxu0 0
  %3224 = vmatpush1.bf16.msra.mxu0 0
  %3225 = vmatprep.subr.bf16.mxu0 0
  %3226 = vmatpush1.bf16.msra.mxu0 0
  %3227 = vmatprep.subr.bf16.mxu0 0
  %3228 = vmatpush1.bf16.msra.mxu0 0
  %3229 = vmatprep.subr.bf16.mxu0 0
  %3230 = vmatpush1.bf16.msra.mxu0 0
  %3231 = vmatprep.mubr.bf16.mxu0 0
  %3232 = vmatmul.mubr.bf16.gmra.mrb[0].mxu0 %v3194
  %v3233 = vpop.f32.mrb[0].mxu0
  %v3234 = vadd.f32 0.0, %v3233
  %v3235 = vpop.f32.mrb[0].mxu0
  %v3236 = vpop.f32.mrb[0].mxu0
  %v3237 = vpop.f32.mrb[0].mxu0
  %3238 = vdwg.mxu0
  %v3239 = vld [vmem:[%s14] sm:$0xf]
  %v3240 = vld [vmem:[%s14 + $0x4] sm:$0xf]
  %v3241 = vld [vmem:[%s14 + $0x8] sm:$0xf]
  %v3242 = vld [vmem:[%s14 + $0xc] sm:$0xf]
  %v3243 = vld [vmem:[%s14 + $0x10] sm:$0xf]
  %v3244 = vld [vmem:[%s14 + $0x14] sm:$0xf]
  %v3245 = vld [vmem:[%s14 + $0x18] sm:$0xf]
  %v3246 = vld [vmem:[%s14 + $0x1c] sm:$0xf]
  %v3247 = vld [vmem:[%s14 + $0x20] sm:$0xf]
  %v3248 = vld [vmem:[%s14 + $0x24] sm:$0xf]
  %v3249 = vld [vmem:[%s14 + $0x28] sm:$0xf]
  %v3250 = vld [vmem:[%s14 + $0x2c] sm:$0xf]
  %v3251 = vld [vmem:[%s14 + $0x30] sm:$0xf]
  %v3252 = vld [vmem:[%s14 + $0x34] sm:$0xf]
  %v3253 = vld [vmem:[%s14 + $0x38] sm:$0xf]
  %v3254 = vld [vmem:[%s14 + $0x3c] sm:$0xf]
  %v3255 = vpack.c.bf16 %v3234, %v3234
  %v3256 = vld [vmem:[%s15] sm:$0x1]
  %v3258 = vlaneseq
  %v3259 = vshrl.u32 %v3258, 7
  %v3260 = vsub.s32 0, %v3259
  %v3261 = vrot.slane %v3256, %v3260
  %v3279 = vunpack.c.l.b16 %v3239
  %v3280 = vunpack.c.l.b16 %v3240
  %v3281 = vunpack.c.l.b16 %v3241
  %v3282 = vunpack.c.l.b16 %v3242
  %v3283 = vunpack.c.l.b16 %v3243
  %v3284 = vunpack.c.l.b16 %v3244
  %v3285 = vunpack.c.l.b16 %v3245
  %v3286 = vunpack.c.l.b16 %v3246
  %v3287 = vunpack.c.l.b16 %v3247
  %v3288 = vunpack.c.l.b16 %v3248
  %v3289 = vunpack.c.l.b16 %v3249
  %v3290 = vunpack.c.l.b16 %v3250
  %v3291 = vunpack.c.l.b16 %v3251
  %v3292 = vunpack.c.l.b16 %v3252
  %v3293 = vunpack.c.l.b16 %v3253
  %v3294 = vunpack.c.l.b16 %v3254
  %v3295 = vpack.c.b16 %v3280, %v3279
  %v3296 = vpack.c.b16 %v3282, %v3281
  %v3297 = vpack.c.b16 %v3284, %v3283
  %v3298 = vpack.c.b16 %v3286, %v3285
  %v3299 = vpack.c.b16 %v3288, %v3287
  %v3300 = vpack.c.b16 %v3290, %v3289
  %v3301 = vpack.c.b16 %v3292, %v3291
  %v3302 = vpack.c.b16 %v3294, %v3293
  %3311 = vmatprep.subr.bf16.mxu0 0
  %3312 = vmatpush1.bf16.msra.mxu0 %v3295
  %3313 = vmatprep.subr.bf16.mxu0 0
  %3314 = vmatpush1.bf16.msra.mxu0 %v3296
  %3315 = vmatprep.subr.bf16.mxu0 0
  %3316 = vmatpush1.bf16.msra.mxu0 %v3297
  %3317 = vmatprep.subr.bf16.mxu0 0
  %3318 = vmatpush1.bf16.msra.mxu0 %v3298
  %3319 = vmatprep.subr.bf16.mxu0 0
  %3320 = vmatpush1.bf16.msra.mxu0 %v3299
  %3321 = vmatprep.subr.bf16.mxu0 0
  %3322 = vmatpush1.bf16.msra.mxu0 %v3300
  %3323 = vmatprep.subr.bf16.mxu0 0
  %3324 = vmatpush1.bf16.msra.mxu0 %v3301
  %3325 = vmatprep.subr.bf16.mxu0 0
  %3326 = vmatpush1.bf16.msra.mxu0 %v3302
  %3327 = vmatprep.subr.bf16.mxu0 0
  %3328 = vmatpush1.bf16.msra.mxu0 0
  %3329 = vmatprep.subr.bf16.mxu0 0
  %3330 = vmatpush1.bf16.msra.mxu0 0
  %3331 = vmatprep.subr.bf16.mxu0 0
  %3332 = vmatpush1.bf16.msra.mxu0 0
  %3333 = vmatprep.subr.bf16.mxu0 0
  %3334 = vmatpush1.bf16.msra.mxu0 0
  %3335 = vmatprep.subr.bf16.mxu0 0
  %3336 = vmatpush1.bf16.msra.mxu0 0
  %3337 = vmatprep.subr.bf16.mxu0 0
  %3338 = vmatpush1.bf16.msra.mxu0 0
  %3339 = vmatprep.subr.bf16.mxu0 0
  %3340 = vmatpush1.bf16.msra.mxu0 0
  %3341 = vmatprep.subr.bf16.mxu0 0
  %3342 = vmatpush1.bf16.msra.mxu0 0
  %3343 = vmatprep.mubr.bf16.mxu0 0
  %3344 = vmatmul.mubr.bf16.gmra.mrb[0].mxu0 %v3255
  %v3345 = vpop.f32.mrb[0].mxu0
  %v3346 = vadd.f32 %v3261, %v3345
  %v3347 = vpop.f32.mrb[0].mxu0
  %v3348 = vpop.f32.mrb[0].mxu0
  %v3349 = vpop.f32.mrb[0].mxu0
  %3350 = vdwg.mxu0
  %v3351 = vmax.f32 %v3346, 0.0
  %v3352 = vld [vmem:[%s16] sm:$0xf]
  %v3353 = vld [vmem:[%s16 + $0x4] sm:$0xf]
  %v3354 = vld [vmem:[%s16 + $0x8] sm:$0xf]
  %v3355 = vld [vmem:[%s16 + $0xc] sm:$0xf]
  %v3356 = vld [vmem:[%s16 + $0x10] sm:$0xf]
  %v3357 = vld [vmem:[%s16 + $0x14] sm:$0xf]
  %v3358 = vld [vmem:[%s16 + $0x18] sm:$0xf]
  %v3359 = vld [vmem:[%s16 + $0x1c] sm:$0xf]
  %v3360 = vld [vmem:[%s16 + $0x20] sm:$0xf]
  %v3361 = vld [vmem:[%s16 + $0x24] sm:$0xf]
  %v3362 = vld [vmem:[%s16 + $0x28] sm:$0xf]
  %v3363 = vld [vmem:[%s16 + $0x2c] sm:$0xf]
  %v3364 = vld [vmem:[%s16 + $0x30] sm:$0xf]
  %v3365 = vld [vmem:[%s16 + $0x34] sm:$0xf]
  %v3366 = vld [vmem:[%s16 + $0x38] sm:$0xf]
  %v3367 = vld [vmem:[%s16 + $0x3c] sm:$0xf]
  %v3368 = vpack.c.bf16 %v3351, %v3351
  %v3369 = vld [vmem:[%s17] sm:$0x1]
  %v3371 = vlaneseq
  %v3372 = vshrl.u32 %v3371, 7
  %v3373 = vsub.s32 0, %v3372
  %v3374 = vrot.slane %v3369, %v3373
  %v3392 = vunpack.c.l.b16 %v3352
  %v3393 = vunpack.c.l.b16 %v3353
  %v3394 = vunpack.c.l.b16 %v3354
  %v3395 = vunpack.c.l.b16 %v3355
  %v3396 = vunpack.c.l.b16 %v3356
  %v3397 = vunpack.c.l.b16 %v3357
  %v3398 = vunpack.c.l.b16 %v3358
  %v3399 = vunpack.c.l.b16 %v3359
  %v3400 = vunpack.c.l.b16 %v3360
  %v3401 = vunpack.c.l.b16 %v3361
  %v3402 = vunpack.c.l.b16 %v3362
  %v3403 = vunpack.c.l.b16 %v3363
  %v3404 = vunpack.c.l.b16 %v3364
  %v3405 = vunpack.c.l.b16 %v3365
  %v3406 = vunpack.c.l.b16 %v3366
  %v3407 = vunpack.c.l.b16 %v3367
  %v3408 = vpack.c.b16 %v3393, %v3392
  %v3409 = vpack.c.b16 %v3395, %v3394
  %v3410 = vpack.c.b16 %v3397, %v3396
  %v3411 = vpack.c.b16 %v3399, %v3398
  %v3412 = vpack.c.b16 %v3401, %v3400
  %v3413 = vpack.c.b16 %v3403, %v3402
  %v3414 = vpack.c.b16 %v3405, %v3404
  %v3415 = vpack.c.b16 %v3407, %v3406
  %3424 = vmatprep.subr.bf16.mxu0 0
  %3425 = vmatpush1.bf16.msra.mxu0 %v3408
  %3426 = vmatprep.subr.bf16.mxu0 0
  %3427 = vmatpush1.bf16.msra.mxu0 %v3409
  %3428 = vmatprep.subr.bf16.mxu0 0
  %3429 = vmatpush1.bf16.msra.mxu0 %v3410
  %3430 = vmatprep.subr.bf16.mxu0 0
  %3431 = vmatpush1.bf16.msra.mxu0 %v3411
  %3432 = vmatprep.subr.bf16.mxu0 0
  %3433 = vmatpush1.bf16.msra.mxu0 %v3412
  %3434 = vmatprep.subr.bf16.mxu0 0
  %3435 = vmatpush1.bf16.msra.mxu0 %v3413
  %3436 = vmatprep.subr.bf16.mxu0 0
  %3437 = vmatpush1.bf16.msra.mxu0 %v3414
  %3438 = vmatprep.subr.bf16.mxu0 0
  %3439 = vmatpush1.bf16.msra.mxu0 %v3415
  %3440 = vmatprep.subr.bf16.mxu0 0
  %3441 = vmatpush1.bf16.msra.mxu0 0
  %3442 = vmatprep.subr.bf16.mxu0 0
  %3443 = vmatpush1.bf16.msra.mxu0 0
  %3444 = vmatprep.subr.bf16.mxu0 0
  %3445 = vmatpush1.bf16.msra.mxu0 0
  %3446 = vmatprep.subr.bf16.mxu0 0
  %3447 = vmatpush1.bf16.msra.mxu0 0
  %3448 = vmatprep.subr.bf16.mxu0 0
  %3449 = vmatpush1.bf16.msra.mxu0 0
  %3450 = vmatprep.subr.bf16.mxu0 0
  %3451 = vmatpush1.bf16.msra.mxu0 0
  %3452 = vmatprep.subr.bf16.mxu0 0
  %3453 = vmatpush1.bf16.msra.mxu0 0
  %3454 = vmatprep.subr.bf16.mxu0 0
  %3455 = vmatpush1.bf16.msra.mxu0 0
  %3456 = vmatprep.mubr.bf16.mxu0 0
  %3457 = vmatmul.mubr.bf16.gmra.mrb[0].mxu0 %v3368
  %v3458 = vpop.f32.mrb[0].mxu0
  %v3459 = vadd.f32 %v3374, %v3458
  %v3460 = vpop.f32.mrb[0].mxu0
  %v3461 = vpop.f32.mrb[0].mxu0
  %v3462 = vpop.f32.mrb[0].mxu0
  %3463 = vdwg.mxu0
  %v3464 = vmax.f32 %v3459, 0.0
  %v3465 = vld [vmem:[%s18] sm:$0xf]
  %v3466 = vld [vmem:[%s18 + $0x4] sm:$0xf]
  %v3467 = vld [vmem:[%s18 + $0x8] sm:$0xf]
  %v3468 = vld [vmem:[%s18 + $0xc] sm:$0xf]
  %v3469 = vld [vmem:[%s18 + $0x10] sm:$0xf]
  %v3470 = vld [vmem:[%s18 + $0x14] sm:$0xf]
  %v3471 = vld [vmem:[%s18 + $0x18] sm:$0xf]
  %v3472 = vld [vmem:[%s18 + $0x1c] sm:$0xf]
  %v3473 = vld [vmem:[%s18 + $0x20] sm:$0xf]
  %v3474 = vld [vmem:[%s18 + $0x24] sm:$0xf]
  %v3475 = vld [vmem:[%s18 + $0x28] sm:$0xf]
  %v3476 = vld [vmem:[%s18 + $0x2c] sm:$0xf]
  %v3477 = vld [vmem:[%s18 + $0x30] sm:$0xf]
  %v3478 = vld [vmem:[%s18 + $0x34] sm:$0xf]
  %v3479 = vld [vmem:[%s18 + $0x38] sm:$0xf]
  %v3480 = vld [vmem:[%s18 + $0x3c] sm:$0xf]
  %v3481 = vpack.c.bf16 %v3464, %v3464
  %v3482 = vld [vmem:[%s19] sm:$0x1]
  %v3484 = vlaneseq
  %v3485 = vshrl.u32 %v3484, 7
  %v3486 = vsub.s32 0, %v3485
  %v3487 = vrot.slane %v3482, %v3486
  %v3505 = vunpack.c.l.b16 %v3465
  %v3506 = vunpack.c.l.b16 %v3466
  %v3507 = vunpack.c.l.b16 %v3467
  %v3508 = vunpack.c.l.b16 %v3468
  %v3509 = vunpack.c.l.b16 %v3469
  %v3510 = vunpack.c.l.b16 %v3470
  %v3511 = vunpack.c.l.b16 %v3471
  %v3512 = vunpack.c.l.b16 %v3472
  %v3513 = vunpack.c.l.b16 %v3473
  %v3514 = vunpack.c.l.b16 %v3474
  %v3515 = vunpack.c.l.b16 %v3475
  %v3516 = vunpack.c.l.b16 %v3476
  %v3517 = vunpack.c.l.b16 %v3477
  %v3518 = vunpack.c.l.b16 %v3478
  %v3519 = vunpack.c.l.b16 %v3479
  %v3520 = vunpack.c.l.b16 %v3480
  %v3521 = vpack.c.b16 %v3506, %v3505
  %v3522 = vpack.c.b16 %v3508, %v3507
  %v3523 = vpack.c.b16 %v3510, %v3509
  %v3524 = vpack.c.b16 %v3512, %v3511
  %v3525 = vpack.c.b16 %v3514, %v3513
  %v3526 = vpack.c.b16 %v3516, %v3515
  %v3527 = vpack.c.b16 %v3518, %v3517
  %v3528 = vpack.c.b16 %v3520, %v3519
  %3537 = vmatprep.subr.bf16.mxu0 0
  %3538 = vmatpush1.bf16.msra.mxu0 %v3521
  %3539 = vmatprep.subr.bf16.mxu0 0
  %3540 = vmatpush1.bf16.msra.mxu0 %v3522
  %3541 = vmatprep.subr.bf16.mxu0 0
  %3542 = vmatpush1.bf16.msra.mxu0 %v3523
  %3543 = vmatprep.subr.bf16.mxu0 0
  %3544 = vmatpush1.bf16.msra.mxu0 %v3524
  %3545 = vmatprep.subr.bf16.mxu0 0
  %3546 = vmatpush1.bf16.msra.mxu0 %v3525
  %3547 = vmatprep.subr.bf16.mxu0 0
  %3548 = vmatpush1.bf16.msra.mxu0 %v3526
  %3549 = vmatprep.subr.bf16.mxu0 0
  %3550 = vmatpush1.bf16.msra.mxu0 %v3527
  %3551 = vmatprep.subr.bf16.mxu0 0
  %3552 = vmatpush1.bf16.msra.mxu0 %v3528
  %3553 = vmatprep.subr.bf16.mxu0 0
  %3554 = vmatpush1.bf16.msra.mxu0 0
  %3555 = vmatprep.subr.bf16.mxu0 0
  %3556 = vmatpush1.bf16.msra.mxu0 0
  %3557 = vmatprep.subr.bf16.mxu0 0
  %3558 = vmatpush1.bf16.msra.mxu0 0
  %3559 = vmatprep.subr.bf16.mxu0 0
  %3560 = vmatpush1.bf16.msra.mxu0 0
  %3561 = vmatprep.subr.bf16.mxu0 0
  %3562 = vmatpush1.bf16.msra.mxu0 0
  %3563 = vmatprep.subr.bf16.mxu0 0
  %3564 = vmatpush1.bf16.msra.mxu0 0
  %3565 = vmatprep.subr.bf16.mxu0 0
  %3566 = vmatpush1.bf16.msra.mxu0 0
  %3567 = vmatprep.subr.bf16.mxu0 0
  %3568 = vmatpush1.bf16.msra.mxu0 0
  %3569 = vmatprep.mubr.bf16.mxu0 0
  %3570 = vmatmul.mubr.bf16.gmra.mrb[0].mxu0 %v3481
  %v3571 = vpop.f32.mrb[0].mxu0
  %v3572 = vadd.f32 %v3487, %v3571
  %v3573 = vpop.f32.mrb[0].mxu0
  %v3574 = vpop.f32.mrb[0].mxu0
  %v3575 = vpop.f32.mrb[0].mxu0
  %3576 = vdwg.mxu0
  %3577 = vst [vmem:[%s20] sm:$0xff] %v3572
  // Predicated region
  $region82: #{model_forward.1} parent=0 // pred_check
    _
  $region83: #{model_forward.1} parent=0 // pred_check_branch
    %3579 = sbr.rel (0) target = $region85
  $region84: #{model_forward.1} parent=0 // pred_region
    _
  $region85: #{model_forward.1} parent=0 // pred_fallthru
    _
  // Predicated region
  $region86: #{model_forward.1} parent=0 // pred_check
    _
  $region87: #{model_forward.1} parent=0 // pred_check_branch
    %3581 = sbr.rel (0) target = $region89
  $region88: #{model_forward.1} parent=0 // pred_region
    _
  $region89: #{model_forward.1} parent=0 // pred_fallthru
    _

</llo_original>
